<compile_context>
chip_gen: v7x
topology: tpu7x:2x2x1
jax: 0.10.0
libtpu: 0.0.40
codegen_flags: <defaults>
</compile_context>

<pallas_src>
import functools

import jax
import jax.numpy as jnp
from jax.experimental import pallas as pl
from jax.experimental.pallas import tpu as pltpu


def patch_decoder_kernel(
    lat_ref,       # (TM, z_dim)                 f32
    pc_w_ref,      # (z_dim, (NB+1)*H)           bf16  [fc_p | fc_c[0] | fc_c[1] | ...]
    pc_b_ref,      # (1, (NB+1)*H)               f32
    b0_w_ref,      # (NB, H, H)                  bf16  ResnetBlockFC.fc_0
    b0_b_ref,      # (NB, 1, H)                  f32
    b1_w_ref,      # (NB, H, H)                  bf16  ResnetBlockFC.fc_1
    b1_b_ref,      # (NB, 1, H)                  f32
    fco_w_ref,     # (1, H)                      f32   fc_out weight (row vector)
    fco_b_ref,     # (1, 1)  SMEM                f32   fc_out bias (scalar)
    out_ref,       # (1, TM//128, 128)           f32   lane-dense output tile
    *,
    num_blocks: int,
    leaky_activation: bool,
):
    H = b0_w_ref.shape[-1]

    # Fused fc_p + all fc_c: one (TM, z) @ (z, (NB+1)*H) MXU matmul,
    # bf16 operands, f32 accumulation.
    lat = lat_ref[...].astype(jnp.bfloat16)
    pc = jnp.dot(lat, pc_w_ref[...], preferred_element_type=jnp.float32)
    pc = pc + pc_b_ref[...]

    net = pc[:, 0:H]                                   # fc_p(latents)
    for b in range(num_blocks):
        # net = net + fc_c[b](latents)
        net = net + pc[:, (b + 1) * H:(b + 2) * H]

        # ResnetBlockFC(hidden_dim): size_in == size_out -> identity shortcut
        t = jnp.maximum(net, 0.0).astype(jnp.bfloat16)
        u = jnp.dot(t, b0_w_ref[b], preferred_element_type=jnp.float32)
        u = u + b0_b_ref[b]
        v = jnp.maximum(u, 0.0).astype(jnp.bfloat16)
        dx = jnp.dot(v, b1_w_ref[b], preferred_element_type=jnp.float32)
        dx = dx + b1_b_ref[b]
        net = net + dx

    # out = fc_out(actvn(net)) — done on the VPU (mul) + XLU (lane reduce)
    # instead of a badly-shaped (TM, H) @ (H, 1) MXU matmul; result is written
    # as a lane-dense (TM//128, 128) tile.
    if leaky_activation:
        act = jnp.maximum(net, 0.2 * net)              # leaky_relu(x, 0.2)
    else:
        act = jnp.maximum(net, 0.0)

    t_sub = out_ref.shape[1]                           # TM // 128
    prod = act * fco_w_ref[...]                        # (TM, H)
    o = jnp.sum(prod.reshape(t_sub, 128, H), axis=-1)  # (TM//128, 128)
    out_ref[0] = o + fco_b_ref[0, 0]


def patch_decoder_forward(latents, packed, *, num_blocks, leaky_activation, tm=512):
    """latents: (N, z_dim) f32 -> (N,) f32 (== out.squeeze(1) of the MLP)."""
    N, z_dim = latents.shape

    # Large point tile to amortize the ~0.35us per-grid-step overhead; keep it
    # a multiple of 128 so the output tile is lane-dense. Shrink for tiny N,
    # pad N up to a tile multiple (padded rows sliced off below).
    assert tm % 128 == 0
    tm = min(tm, max(128, -(-N // 128) * 128))
    n_pad = -(-N // tm) * tm
    if n_pad != N:
        latents = jnp.pad(latents, ((0, n_pad - N), (0, 0)))
    grid = n_pad // tm
    t_sub = tm // 128

    full = lambda a: pl.BlockSpec(a.shape, lambda i: (0,) * a.ndim)

    kernel = functools.partial(
        patch_decoder_kernel,
        num_blocks=num_blocks,
        leaky_activation=leaky_activation,
    )

    out3 = pl.pallas_call(
        kernel,
        out_shape=jax.ShapeDtypeStruct((grid, t_sub, 128), jnp.float32),
        grid_spec=pltpu.PrefetchScalarGridSpec(
            num_scalar_prefetch=0,
            grid=(grid,),
            in_specs=[
                pl.BlockSpec((tm, z_dim), lambda i: (i, 0)),
                full(packed["pc_w"]), full(packed["pc_b"]),
                full(packed["b0_w"]), full(packed["b0_b"]),
                full(packed["b1_w"]), full(packed["b1_b"]),
                full(packed["fco_w"]),
                pl.BlockSpec(memory_space=pltpu.MemorySpace.SMEM),
            ],
            out_specs=pl.BlockSpec((1, t_sub, 128), lambda i: (i, 0, 0)),
        ),
        compiler_params=pltpu.CompilerParams(
            dimension_semantics=("parallel",)),
    )(
        latents,
        packed["pc_w"], packed["pc_b"],
        packed["b0_w"], packed["b0_b"],
        packed["b1_w"], packed["b1_b"],
        packed["fco_w"], packed["fco_b"],
    )
    return out3.reshape(n_pad)[:N]


def pack_params(params):
    """Fuse fc_p / fc_c weights into one wide matmul operand, cast MXU operands
    to bf16, and lay out fc_out for the VPU path."""
    nb, z_dim, H = params["fcc_w"].shape
    w_all = jnp.concatenate([params["fcp_w"][None], params["fcc_w"]], axis=0)  # (NB+1, z, H)
    b_all = jnp.concatenate([params["fcp_b"][None], params["fcc_b"]], axis=0)  # (NB+1, 1, H)
    pc_w = jnp.transpose(w_all, (1, 0, 2)).reshape(z_dim, (nb + 1) * H)
    pc_b = jnp.transpose(b_all, (1, 0, 2)).reshape(1, (nb + 1) * H)
    return {
        "pc_w": pc_w.astype(jnp.bfloat16),
        "pc_b": pc_b,
        "b0_w": params["b0_w"].astype(jnp.bfloat16),
        "b0_b": params["b0_b"],
        "b1_w": params["b1_w"].astype(jnp.bfloat16),
        "b1_b": params["b1_b"],
        "fco_w": params["fco_w"].T,     # (1, H) f32, used on VPU
        "fco_b": params["fco_b"],       # (1, 1) f32, SMEM scalar
    }


def patch_decoder_reference(latents, params, *, num_blocks, leaky_activation):
    """Pure-JAX reference in the original (unfused) module form; weights are
    rounded through bf16 to match the kernel's MXU operand precision."""
    bf = lambda w: w.astype(jnp.bfloat16).astype(jnp.float32)
    net = latents @ bf(params["fcp_w"]) + params["fcp_b"]
    for b in range(num_blocks):
        net = net + latents @ bf(params["fcc_w"][b]) + params["fcc_b"][b]
        u = jnp.maximum(net, 0.0) @ bf(params["b0_w"][b]) + params["b0_b"][b]
        dx = jnp.maximum(u, 0.0) @ bf(params["b1_w"][b]) + params["b1_b"][b]
        net = net + dx
    act = jnp.maximum(net, 0.2 * net) if leaky_activation else jnp.maximum(net, 0.0)
    return (act @ params["fco_w"] + params["fco_b"])[:, 0]


def init_params(key, z_dim, hidden_dim, num_blocks):
    """Deterministic synthetic init; PyTorch (out,in) weights stored as (in,out)."""
    ks = jax.random.split(key, 12)
    s = 0.1
    # NOTE: PyTorch zeros-inits ResnetBlockFC.fc_1.weight; we use small random
    # values here so the second matmul of each block is actually exercised.
    return {
        "fcp_w": s * jax.random.normal(ks[0], (z_dim, hidden_dim), jnp.float32),
        "fcp_b": s * jax.random.normal(ks[1], (1, hidden_dim), jnp.float32),
        "fcc_w": s * jax.random.normal(ks[2], (num_blocks, z_dim, hidden_dim), jnp.float32),
        "fcc_b": s * jax.random.normal(ks[3], (num_blocks, 1, hidden_dim), jnp.float32),
        "b0_w":  s * jax.random.normal(ks[4], (num_blocks, hidden_dim, hidden_dim), jnp.float32),
        "b0_b":  s * jax.random.normal(ks[5], (num_blocks, 1, hidden_dim), jnp.float32),
        "b1_w":  s * jax.random.normal(ks[6], (num_blocks, hidden_dim, hidden_dim), jnp.float32),
        "b1_b":  s * jax.random.normal(ks[7], (num_blocks, 1, hidden_dim), jnp.float32),
        "fco_w": s * jax.random.normal(ks[8], (hidden_dim, 1), jnp.float32),
        "fco_b": s * jax.random.normal(ks[9], (1, 1), jnp.float32),
    }


if __name__ == "__main__":
    # Small config consistent with the module: z_dim latents per query point,
    # hidden_dim MLP, num_blocks ResNet-FC blocks, leaky activation.
    N_POINTS = 1024     # total interpolated query points (post out_idx gather)
    Z_DIM = 32
    HIDDEN_DIM = 128
    NUM_BLOCKS = 2
    LEAKY = True

    key = jax.random.PRNGKey(0)
    k_lat, k_par = jax.random.split(key)

    # Stand-in for the Minkowski-interpolated latents[out_idx, :]  (N, z_dim).
    latents = jax.random.normal(k_lat, (N_POINTS, Z_DIM), jnp.float32)
    params = init_params(k_par, Z_DIM, HIDDEN_DIM, NUM_BLOCKS)
    packed = pack_params(params)

    out = patch_decoder_forward(
        latents, packed, num_blocks=NUM_BLOCKS, leaky_activation=LEAKY, tm=512)
    out = jax.block_until_ready(out)

    ref = patch_decoder_reference(
        latents, params, num_blocks=NUM_BLOCKS, leaky_activation=LEAKY)

    assert out.shape == (N_POINTS,)
    max_err = float(jnp.max(jnp.abs(out - ref)))
    assert jnp.allclose(out, ref, atol=5e-2, rtol=5e-2), (
        f"mismatch vs JAX reference, max|err|={max_err}")
    print("KERNEL_OK")
</pallas_src>

<mosaic_0001>
module attributes {stable_mosaic.version = 11 : i64} {
  func.func @patch_decoder_kernel(%arg0: i32, %arg1: memref<512x32xf32, #tpu.memory_space<vmem>>, %arg2: memref<32x384xbf16, #tpu.memory_space<vmem>>, %arg3: memref<1x384xf32, #tpu.memory_space<vmem>>, %arg4: memref<2x128x128xbf16, #tpu.memory_space<vmem>>, %arg5: memref<2x1x128xf32, #tpu.memory_space<vmem>>, %arg6: memref<2x128x128xbf16, #tpu.memory_space<vmem>>, %arg7: memref<2x1x128xf32, #tpu.memory_space<vmem>>, %arg8: memref<1x128xf32, #tpu.memory_space<vmem>>, %arg9: memref<1x1xf32, #tpu.memory_space<smem>>, %arg10: memref<1x4x128xf32, #tpu.memory_space<vmem>>) attributes {dimension_semantics = [#tpu.dimension_semantics<parallel>], iteration_bounds = array<i64: 2>, scalar_prefetch = 0 : i64, scratch_operands = 0 : i64, tpu.core_type = #tpu.core_type<tc>, window_params = [{transform_indices = @transform_0, window_bounds = array<i64: 512, 32>}, {pipeline_mode = #tpu.pipeline_mode<synchronous>, transform_indices = @transform_1, window_bounds = array<i64: 32, 384>}, {pipeline_mode = #tpu.pipeline_mode<synchronous>, transform_indices = @transform_2, window_bounds = array<i64: 1, 384>}, {pipeline_mode = #tpu.pipeline_mode<synchronous>, transform_indices = @transform_3, window_bounds = array<i64: 2, 128, 128>}, {pipeline_mode = #tpu.pipeline_mode<synchronous>, transform_indices = @transform_4, window_bounds = array<i64: 2, 1, 128>}, {pipeline_mode = #tpu.pipeline_mode<synchronous>, transform_indices = @transform_5, window_bounds = array<i64: 2, 128, 128>}, {pipeline_mode = #tpu.pipeline_mode<synchronous>, transform_indices = @transform_6, window_bounds = array<i64: 2, 1, 128>}, {pipeline_mode = #tpu.pipeline_mode<synchronous>, transform_indices = @transform_7, window_bounds = array<i64: 1, 128>}, {transform_indices = @transform_8, window_bounds = array<i64: 1, 1>}, {transform_indices = @transform_9, window_bounds = array<i64: 1, 4, 128>}]} {
    %c0 = arith.constant 0 : index
    %c0_0 = arith.constant 0 : index
    %0 = vector.load %arg1[%c0, %c0_0] : memref<512x32xf32, #tpu.memory_space<vmem>>, vector<512x32xf32>
    %1 = arith.truncf %0 : vector<512x32xf32> to vector<512x32xbf16>
    %c0_1 = arith.constant 0 : index
    %c0_2 = arith.constant 0 : index
    %2 = vector.load %arg2[%c0_1, %c0_2] : memref<32x384xbf16, #tpu.memory_space<vmem>>, vector<32x384xbf16>
    %cst = arith.constant dense<0.000000e+00> : vector<512x384xf32>
    %3 = tpu.matmul %1, %2, %cst {dimension_numbers = #tpu.dot_dimension_numbers<[1], [0], [0], [1], [0, 0, 1, 1], [], []>} : vector<512x32xbf16>, vector<32x384xbf16>, vector<512x384xf32> -> vector<512x384xf32>
    %c0_3 = arith.constant 0 : index
    %c0_4 = arith.constant 0 : index
    %4 = vector.load %arg3[%c0_3, %c0_4] : memref<1x384xf32, #tpu.memory_space<vmem>>, vector<1x384xf32>
    %5 = vector.broadcast %4 : vector<1x384xf32> to vector<512x384xf32>
    %6 = arith.addf %3, %5 : vector<512x384xf32>
    %7 = vector.extract_strided_slice %6 {offsets = [0, 0], sizes = [512, 128], strides = [1, 1]} : vector<512x384xf32> to vector<512x128xf32>
    %8 = vector.extract_strided_slice %6 {offsets = [0, 128], sizes = [512, 128], strides = [1, 1]} : vector<512x384xf32> to vector<512x128xf32>
    %9 = arith.addf %7, %8 : vector<512x128xf32>
    %cst_5 = arith.constant 0.000000e+00 : f32
    %10 = vector.broadcast %cst_5 : f32 to vector<512x128xf32>
    %11 = arith.maximumf %9, %10 : vector<512x128xf32>
    %12 = arith.truncf %11 : vector<512x128xf32> to vector<512x128xbf16>
    %c0_6 = arith.constant 0 : index
    %c0_7 = arith.constant 0 : index
    %c0_8 = arith.constant 0 : index
    %13 = vector.load %arg4[%c0_6, %c0_7, %c0_8] : memref<2x128x128xbf16, #tpu.memory_space<vmem>>, vector<1x128x128xbf16>
    %14 = vector.shape_cast %13 : vector<1x128x128xbf16> to vector<128x128xbf16>
    %cst_9 = arith.constant dense<0.000000e+00> : vector<512x128xf32>
    %15 = tpu.matmul %12, %14, %cst_9 {dimension_numbers = #tpu.dot_dimension_numbers<[1], [0], [0], [1], [0, 0, 1, 1], [], []>} : vector<512x128xbf16>, vector<128x128xbf16>, vector<512x128xf32> -> vector<512x128xf32>
    %c0_10 = arith.constant 0 : index
    %c0_11 = arith.constant 0 : index
    %c0_12 = arith.constant 0 : index
    %16 = vector.load %arg5[%c0_10, %c0_11, %c0_12] : memref<2x1x128xf32, #tpu.memory_space<vmem>>, vector<1x1x128xf32>
    %17 = vector.shape_cast %16 : vector<1x1x128xf32> to vector<1x128xf32>
    %18 = vector.broadcast %17 : vector<1x128xf32> to vector<512x128xf32>
    %19 = arith.addf %15, %18 : vector<512x128xf32>
    %cst_13 = arith.constant 0.000000e+00 : f32
    %20 = vector.broadcast %cst_13 : f32 to vector<512x128xf32>
    %21 = arith.maximumf %19, %20 : vector<512x128xf32>
    %22 = arith.truncf %21 : vector<512x128xf32> to vector<512x128xbf16>
    %c0_14 = arith.constant 0 : index
    %c0_15 = arith.constant 0 : index
    %c0_16 = arith.constant 0 : index
    %23 = vector.load %arg6[%c0_14, %c0_15, %c0_16] : memref<2x128x128xbf16, #tpu.memory_space<vmem>>, vector<1x128x128xbf16>
    %24 = vector.shape_cast %23 : vector<1x128x128xbf16> to vector<128x128xbf16>
    %cst_17 = arith.constant dense<0.000000e+00> : vector<512x128xf32>
    %25 = tpu.matmul %22, %24, %cst_17 {dimension_numbers = #tpu.dot_dimension_numbers<[1], [0], [0], [1], [0, 0, 1, 1], [], []>} : vector<512x128xbf16>, vector<128x128xbf16>, vector<512x128xf32> -> vector<512x128xf32>
    %c0_18 = arith.constant 0 : index
    %c0_19 = arith.constant 0 : index
    %c0_20 = arith.constant 0 : index
    %26 = vector.load %arg7[%c0_18, %c0_19, %c0_20] : memref<2x1x128xf32, #tpu.memory_space<vmem>>, vector<1x1x128xf32>
    %27 = vector.shape_cast %26 : vector<1x1x128xf32> to vector<1x128xf32>
    %28 = vector.broadcast %27 : vector<1x128xf32> to vector<512x128xf32>
    %29 = arith.addf %25, %28 : vector<512x128xf32>
    %30 = arith.addf %9, %29 : vector<512x128xf32>
    %31 = vector.extract_strided_slice %6 {offsets = [0, 256], sizes = [512, 128], strides = [1, 1]} : vector<512x384xf32> to vector<512x128xf32>
    %32 = arith.addf %30, %31 : vector<512x128xf32>
    %cst_21 = arith.constant 0.000000e+00 : f32
    %33 = vector.broadcast %cst_21 : f32 to vector<512x128xf32>
    %34 = arith.maximumf %32, %33 : vector<512x128xf32>
    %35 = arith.truncf %34 : vector<512x128xf32> to vector<512x128xbf16>
    %c1 = arith.constant 1 : index
    %c0_22 = arith.constant 0 : index
    %c0_23 = arith.constant 0 : index
    %36 = vector.load %arg4[%c1, %c0_22, %c0_23] : memref<2x128x128xbf16, #tpu.memory_space<vmem>>, vector<1x128x128xbf16>
    %37 = vector.shape_cast %36 : vector<1x128x128xbf16> to vector<128x128xbf16>
    %cst_24 = arith.constant dense<0.000000e+00> : vector<512x128xf32>
    %38 = tpu.matmul %35, %37, %cst_24 {dimension_numbers = #tpu.dot_dimension_numbers<[1], [0], [0], [1], [0, 0, 1, 1], [], []>} : vector<512x128xbf16>, vector<128x128xbf16>, vector<512x128xf32> -> vector<512x128xf32>
    %c1_25 = arith.constant 1 : index
    %c0_26 = arith.constant 0 : index
    %c0_27 = arith.constant 0 : index
    %39 = vector.load %arg5[%c1_25, %c0_26, %c0_27] : memref<2x1x128xf32, #tpu.memory_space<vmem>>, vector<1x1x128xf32>
    %40 = vector.shape_cast %39 : vector<1x1x128xf32> to vector<1x128xf32>
    %41 = vector.broadcast %40 : vector<1x128xf32> to vector<512x128xf32>
    %42 = arith.addf %38, %41 : vector<512x128xf32>
    %cst_28 = arith.constant 0.000000e+00 : f32
    %43 = vector.broadcast %cst_28 : f32 to vector<512x128xf32>
    %44 = arith.maximumf %42, %43 : vector<512x128xf32>
    %45 = arith.truncf %44 : vector<512x128xf32> to vector<512x128xbf16>
    %c1_29 = arith.constant 1 : index
    %c0_30 = arith.constant 0 : index
    %c0_31 = arith.constant 0 : index
    %46 = vector.load %arg6[%c1_29, %c0_30, %c0_31] : memref<2x128x128xbf16, #tpu.memory_space<vmem>>, vector<1x128x128xbf16>
    %47 = vector.shape_cast %46 : vector<1x128x128xbf16> to vector<128x128xbf16>
    %cst_32 = arith.constant dense<0.000000e+00> : vector<512x128xf32>
    %48 = tpu.matmul %45, %47, %cst_32 {dimension_numbers = #tpu.dot_dimension_numbers<[1], [0], [0], [1], [0, 0, 1, 1], [], []>} : vector<512x128xbf16>, vector<128x128xbf16>, vector<512x128xf32> -> vector<512x128xf32>
    %c1_33 = arith.constant 1 : index
    %c0_34 = arith.constant 0 : index
    %c0_35 = arith.constant 0 : index
    %49 = vector.load %arg7[%c1_33, %c0_34, %c0_35] : memref<2x1x128xf32, #tpu.memory_space<vmem>>, vector<1x1x128xf32>
    %50 = vector.shape_cast %49 : vector<1x1x128xf32> to vector<1x128xf32>
    %51 = vector.broadcast %50 : vector<1x128xf32> to vector<512x128xf32>
    %52 = arith.addf %48, %51 : vector<512x128xf32>
    %53 = arith.addf %32, %52 : vector<512x128xf32>
    %cst_36 = arith.constant 2.000000e-01 : f32
    %54 = vector.broadcast %cst_36 : f32 to vector<512x128xf32>
    %55 = arith.mulf %54, %53 : vector<512x128xf32>
    %56 = arith.maximumf %53, %55 : vector<512x128xf32>
    %c0_37 = arith.constant 0 : index
    %c0_38 = arith.constant 0 : index
    %57 = vector.load %arg8[%c0_37, %c0_38] : memref<1x128xf32, #tpu.memory_space<vmem>>, vector<1x128xf32>
    %58 = vector.broadcast %57 : vector<1x128xf32> to vector<512x128xf32>
    %59 = arith.mulf %56, %58 : vector<512x128xf32>
    %60 = vector.shape_cast %59 : vector<512x128xf32> to vector<4x128x128xf32>
    %cst_39 = arith.constant dense<0.000000e+00> : vector<4x128xf32>
    %61 = vector.multi_reduction <add>, %60, %cst_39 [2] : vector<4x128x128xf32> to vector<4x128xf32>
    %c0_40 = arith.constant 0 : index
    %c0_41 = arith.constant 0 : index
    %62 = memref.load %arg9[%c0_40, %c0_41] : memref<1x1xf32, #tpu.memory_space<smem>>
    %63 = vector.broadcast %62 : f32 to vector<4x128xf32>
    %64 = arith.addf %61, %63 : vector<4x128xf32>
    %c0_42 = arith.constant 0 : index
    %c0_43 = arith.constant 0 : index
    %c0_44 = arith.constant 0 : index
    %65 = vector.load %arg10[%c0_42, %c0_43, %c0_44] : memref<1x4x128xf32, #tpu.memory_space<vmem>>, vector<1x4x128xf32>
    %66 = vector.shape_cast %65 : vector<1x4x128xf32> to vector<4x128xf32>
    %67 = vector.shape_cast %64 : vector<4x128xf32> to vector<1x4x128xf32>
    tpu.vector_store %arg10[%c0_42, %c0_43, %c0_44], %67 {strides = array<i32>} : memref<1x4x128xf32, #tpu.memory_space<vmem>>, vector<1x4x128xf32>,
    return
  }
  func.func @transform_0(%arg0: i32) -> (i32, i32) {
    %c0_i32 = arith.constant 0 : i32
    %c0_i32_0 = arith.constant 0 : i32
    return %arg0, %c0_i32 : i32, i32
  }
  func.func @transform_1(%arg0: i32) -> (i32, i32) {
    %c0_i32 = arith.constant 0 : i32
    %c0_i32_0 = arith.constant 0 : i32
    %c0_i32_1 = arith.constant 0 : i32
    return %c0_i32, %c0_i32_0 : i32, i32
  }
  func.func @transform_2(%arg0: i32) -> (i32, i32) {
    %c0_i32 = arith.constant 0 : i32
    %c0_i32_0 = arith.constant 0 : i32
    %c0_i32_1 = arith.constant 0 : i32
    return %c0_i32, %c0_i32_0 : i32, i32
  }
  func.func @transform_3(%arg0: i32) -> (i32, i32, i32) {
    %c0_i32 = arith.constant 0 : i32
    %c0_i32_0 = arith.constant 0 : i32
    %c0_i32_1 = arith.constant 0 : i32
    %c0_i32_2 = arith.constant 0 : i32
    return %c0_i32, %c0_i32_0, %c0_i32_1 : i32, i32, i32
  }
  func.func @transform_4(%arg0: i32) -> (i32, i32, i32) {
    %c0_i32 = arith.constant 0 : i32
    %c0_i32_0 = arith.constant 0 : i32
    %c0_i32_1 = arith.constant 0 : i32
    %c0_i32_2 = arith.constant 0 : i32
    return %c0_i32, %c0_i32_0, %c0_i32_1 : i32, i32, i32
  }
  func.func @transform_5(%arg0: i32) -> (i32, i32, i32) {
    %c0_i32 = arith.constant 0 : i32
    %c0_i32_0 = arith.constant 0 : i32
    %c0_i32_1 = arith.constant 0 : i32
    %c0_i32_2 = arith.constant 0 : i32
    return %c0_i32, %c0_i32_0, %c0_i32_1 : i32, i32, i32
  }
  func.func @transform_6(%arg0: i32) -> (i32, i32, i32) {
    %c0_i32 = arith.constant 0 : i32
    %c0_i32_0 = arith.constant 0 : i32
    %c0_i32_1 = arith.constant 0 : i32
    %c0_i32_2 = arith.constant 0 : i32
    return %c0_i32, %c0_i32_0, %c0_i32_1 : i32, i32, i32
  }
  func.func @transform_7(%arg0: i32) -> (i32, i32) {
    %c0_i32 = arith.constant 0 : i32
    %c0_i32_0 = arith.constant 0 : i32
    %c0_i32_1 = arith.constant 0 : i32
    return %c0_i32, %c0_i32_0 : i32, i32
  }
  func.func @transform_8(%arg0: i32) -> (i32, i32) {
    %c0_i32 = arith.constant 0 : i32
    %c0_i32_0 = arith.constant 0 : i32
    %c0_i32_1 = arith.constant 0 : i32
    return %c0_i32, %c0_i32_0 : i32, i32
  }
  func.func @transform_9(%arg0: i32) -> (i32, i32, i32) {
    %c0_i32 = arith.constant 0 : i32
    %c0_i32_0 = arith.constant 0 : i32
    %c0_i32_1 = arith.constant 0 : i32
    return %arg0, %c0_i32, %c0_i32_0 : i32, i32, i32
  }
}

</mosaic_0001>

<llo_original>
// kernel: tpu_custom_call.1
$region0: #{tpu_custom_call.1}
  #allocation0 [shape = 'u32[]', space=smem, size = 0x4, offset = 0x4, fixed_abs, tag = 'smem constant byte address 0x4 - core index']
  #allocation1 [shape = 'u32[144,128]{1,0:T(1,128)}', space=vmem, size = 0x12000, scoped, tag = 'internal scratch']
  #allocation2 [shape = 'f32[1,1]{1,0:T(1,128)S(6)}', space=smem, size = 0x200, scoped, tag = 'scoped memory for tpu_custom_call.1']
  %s0 = inlined_call_operand.vmem [shape: f32[1024,32], index: 0, kind: input, shape index: {}]
  %s1 = inlined_call_operand.vmem [shape: bf16[32,384], index: 1, kind: input, shape index: {}]
  %s2 = inlined_call_operand.vmem [shape: f32[1,384], index: 2, kind: input, shape index: {}]
  %s3 = inlined_call_operand.vmem [shape: bf16[2,128,128], index: 3, kind: input, shape index: {}]
  %s4 = inlined_call_operand.vmem [shape: f32[2,1,128], index: 4, kind: input, shape index: {}]
  %s5 = inlined_call_operand.vmem [shape: bf16[2,128,128], index: 5, kind: input, shape index: {}]
  %s6 = inlined_call_operand.vmem [shape: f32[2,1,128], index: 6, kind: input, shape index: {}]
  %s7 = inlined_call_operand.vmem [shape: f32[1,128], index: 7, kind: input, shape index: {}]
  %s8 = inlined_call_operand.<no memory space> [shape: f32[1,1], index: 8, kind: input, shape index: {}]
  %s9 = inlined_call_operand.hbm [shape: f32[2,4,128], index: 9, kind: output, shape index: {}]
  %s10 = sld [smem:[#allocation0]]
  $region69: #{tpu_custom_call.1} parent=0
    _
  %s12 = ssub.s32 1, %s10
  %s13 = scalar_select 0, %s12, %s10
  %14 = sst [smem:[#allocation2]] %s8
  $region1: #{tpu_custom_call.1} parent=0
    #allocation3 [shape = 'u8[4096]{0}', space=vmem, size = 0x1000, scoped, tag = 'output window, operand 0']
    #allocation4 [shape = 's32[2]{0}', space=sflag, size = 0x8, scoped, tag = 'scoped memory for tpu_custom_call.1']
    %15 = vsyncpa [#allocation4], 0
    %s16 = scalar_lea.sflag [#allocation4], 1
    %17 = vsyncpa %s16, 0
    loop: start=0, step=1, limit=4
    $region2: #{tpu_custom_call.1} parent=1 // loop_pre_header
      _
    $region3: #{tpu_custom_call.1} parent=1 // loop_header
      %s19 = sphi 0, %s23
      %p20 = scmp.ge.s32.totalorder %s19, 4
      %s29 = sphi 0, %s31
      %s32 = sphi 0, %s29
      %s33 = sphi 0, %s32
      %s49 = sphi 0, %s33
      %s53 = sphi 0, %s53
      %s55 = sphi 0, %s53
      %s56 = sphi 0, %s55
      %s70 = sphi 0, %s56
      %s74 = sphi 0, %s74
      %s76 = sphi 0, %s74
      %s77 = sphi 0, %s76
      %s91 = sphi 0, %s77
      %s95 = sphi 0, %s95
      %s97 = sphi 0, %s95
      %s98 = sphi 0, %s97
      %s112 = sphi 0, %s98
      %s116 = sphi 0, %s116
      %s118 = sphi 0, %s116
      %s119 = sphi 0, %s118
      %s133 = sphi 0, %s119
      %s137 = sphi 0, %s137
      %s139 = sphi 0, %s137
      %s140 = sphi 0, %s139
      %s154 = sphi 0, %s140
      %s158 = sphi 0, %s158
      %s160 = sphi 0, %s158
      %s161 = sphi 0, %s160
      %s175 = sphi 0, %s161
      %s179 = sphi 0, %s179
      %s181 = sphi 0, %s179
      %s182 = sphi 0, %s181
      %s196 = sphi 0, %s182
      %s200 = sphi 0, %s200
      %s202 = sphi 0, %s200
      %s203 = sphi 0, %s202
      %s217 = sphi 0, %s203
      %s223 = sphi 0, %s225
      %s226 = sphi 0, %s223
      %s227 = sphi 0, %s226
      %s243 = sphi 0, %s227
    $region4: #{tpu_custom_call.1} parent=1 // loop_header_branch
      %22 = sbr.rel (%p20) target = $region8
    $region5: #{tpu_custom_call.1} parent=1 // loop_body
      %s24 = ssub.s32 %s19, 1
      %s25 = ssub.s32 %s19, 2
      %s26 = sadd.s32 %s19, 1
      %s27 = ssub.s32 %s19, %s26
      %p28 = scmp.eq.s32.totalorder %s27, 0
      %s30 = sadd.s32 %s29, 1
      %s31 = scalar_select %p28, %s29, %s30
      %p34 = pneg %p28
      %p35 = scmp.eq.s32.totalorder %s19, 1
      %p36 = por %p34, %p35
      %p37 = scmp.ne.s32.totalorder %s29, %s32
      %p38 = scmp.eq.s32.totalorder %s19, 0
      %p39 = por %p37, %p38
      %p40 = scmp.ne.s32.totalorder %s29, %s32
      %p41 = scmp.eq.s32.totalorder %s24, 1
      %p42 = por %p40, %p41
      %p43 = scmp.ne.s32.totalorder %s32, %s33
      %p44 = scmp.eq.s32.totalorder %s24, 0
      %p45 = por %p43, %p44
      %p46 = scmp.ne.s32.totalorder %s32, %s33
      %p47 = scmp.eq.s32.totalorder %s25, 1
      %p48 = por %p46, %p47
      %p50 = scmp.ne.s32.totalorder %s33, %s49
      %p51 = scmp.eq.s32.totalorder %s25, 0
      %p52 = por %p50, %p51
      %s54 = sadd.s32 %s53, 1
      %p57 = scmp.eq.s32.totalorder %s19, 1
      %p58 = scmp.ne.s32.totalorder %s53, %s55
      %p59 = scmp.eq.s32.totalorder %s19, 0
      %p60 = por %p58, %p59
      %p61 = scmp.ne.s32.totalorder %s53, %s55
      %p62 = scmp.eq.s32.totalorder %s24, 1
      %p63 = por %p61, %p62
      %p64 = scmp.ne.s32.totalorder %s55, %s56
      %p65 = scmp.eq.s32.totalorder %s24, 0
      %p66 = por %p64, %p65
      %p67 = scmp.ne.s32.totalorder %s55, %s56
      %p68 = scmp.eq.s32.totalorder %s25, 1
      %p69 = por %p67, %p68
      %p71 = scmp.ne.s32.totalorder %s56, %s70
      %p72 = scmp.eq.s32.totalorder %s25, 0
      %p73 = por %p71, %p72
      %s75 = sadd.s32 %s74, 1
      %p78 = scmp.eq.s32.totalorder %s19, 1
      %p79 = scmp.ne.s32.totalorder %s74, %s76
      %p80 = scmp.eq.s32.totalorder %s19, 0
      %p81 = por %p79, %p80
      %p82 = scmp.ne.s32.totalorder %s74, %s76
      %p83 = scmp.eq.s32.totalorder %s24, 1
      %p84 = por %p82, %p83
      %p85 = scmp.ne.s32.totalorder %s76, %s77
      %p86 = scmp.eq.s32.totalorder %s24, 0
      %p87 = por %p85, %p86
      %p88 = scmp.ne.s32.totalorder %s76, %s77
      %p89 = scmp.eq.s32.totalorder %s25, 1
      %p90 = por %p88, %p89
      %p92 = scmp.ne.s32.totalorder %s77, %s91
      %p93 = scmp.eq.s32.totalorder %s25, 0
      %p94 = por %p92, %p93
      %s96 = sadd.s32 %s95, 1
      %p99 = scmp.eq.s32.totalorder %s19, 1
      %p100 = scmp.ne.s32.totalorder %s95, %s97
      %p101 = scmp.eq.s32.totalorder %s19, 0
      %p102 = por %p100, %p101
      %p103 = scmp.ne.s32.totalorder %s95, %s97
      %p104 = scmp.eq.s32.totalorder %s24, 1
      %p105 = por %p103, %p104
      %p106 = scmp.ne.s32.totalorder %s97, %s98
      %p107 = scmp.eq.s32.totalorder %s24, 0
      %p108 = por %p106, %p107
      %p109 = scmp.ne.s32.totalorder %s97, %s98
      %p110 = scmp.eq.s32.totalorder %s25, 1
      %p111 = por %p109, %p110
      %p113 = scmp.ne.s32.totalorder %s98, %s112
      %p114 = scmp.eq.s32.totalorder %s25, 0
      %p115 = por %p113, %p114
      %s117 = sadd.s32 %s116, 1
      %p120 = scmp.eq.s32.totalorder %s19, 1
      %p121 = scmp.ne.s32.totalorder %s116, %s118
      %p122 = scmp.eq.s32.totalorder %s19, 0
      %p123 = por %p121, %p122
      %p124 = scmp.ne.s32.totalorder %s116, %s118
      %p125 = scmp.eq.s32.totalorder %s24, 1
      %p126 = por %p124, %p125
      %p127 = scmp.ne.s32.totalorder %s118, %s119
      %p128 = scmp.eq.s32.totalorder %s24, 0
      %p129 = por %p127, %p128
      %p130 = scmp.ne.s32.totalorder %s118, %s119
      %p131 = scmp.eq.s32.totalorder %s25, 1
      %p132 = por %p130, %p131
      %p134 = scmp.ne.s32.totalorder %s119, %s133
      %p135 = scmp.eq.s32.totalorder %s25, 0
      %p136 = por %p134, %p135
      %s138 = sadd.s32 %s137, 1
      %p141 = scmp.eq.s32.totalorder %s19, 1
      %p142 = scmp.ne.s32.totalorder %s137, %s139
      %p143 = scmp.eq.s32.totalorder %s19, 0
      %p144 = por %p142, %p143
      %p145 = scmp.ne.s32.totalorder %s137, %s139
      %p146 = scmp.eq.s32.totalorder %s24, 1
      %p147 = por %p145, %p146
      %p148 = scmp.ne.s32.totalorder %s139, %s140
      %p149 = scmp.eq.s32.totalorder %s24, 0
      %p150 = por %p148, %p149
      %p151 = scmp.ne.s32.totalorder %s139, %s140
      %p152 = scmp.eq.s32.totalorder %s25, 1
      %p153 = por %p151, %p152
      %p155 = scmp.ne.s32.totalorder %s140, %s154
      %p156 = scmp.eq.s32.totalorder %s25, 0
      %p157 = por %p155, %p156
      %s159 = sadd.s32 %s158, 1
      %p162 = scmp.eq.s32.totalorder %s19, 1
      %p163 = scmp.ne.s32.totalorder %s158, %s160
      %p164 = scmp.eq.s32.totalorder %s19, 0
      %p165 = por %p163, %p164
      %p166 = scmp.ne.s32.totalorder %s158, %s160
      %p167 = scmp.eq.s32.totalorder %s24, 1
      %p168 = por %p166, %p167
      %p169 = scmp.ne.s32.totalorder %s160, %s161
      %p170 = scmp.eq.s32.totalorder %s24, 0
      %p171 = por %p169, %p170
      %p172 = scmp.ne.s32.totalorder %s160, %s161
      %p173 = scmp.eq.s32.totalorder %s25, 1
      %p174 = por %p172, %p173
      %p176 = scmp.ne.s32.totalorder %s161, %s175
      %p177 = scmp.eq.s32.totalorder %s25, 0
      %p178 = por %p176, %p177
      %s180 = sadd.s32 %s179, 1
      %p183 = scmp.eq.s32.totalorder %s19, 1
      %p184 = scmp.ne.s32.totalorder %s179, %s181
      %p185 = scmp.eq.s32.totalorder %s19, 0
      %p186 = por %p184, %p185
      %p187 = scmp.ne.s32.totalorder %s179, %s181
      %p188 = scmp.eq.s32.totalorder %s24, 1
      %p189 = por %p187, %p188
      %p190 = scmp.ne.s32.totalorder %s181, %s182
      %p191 = scmp.eq.s32.totalorder %s24, 0
      %p192 = por %p190, %p191
      %p193 = scmp.ne.s32.totalorder %s181, %s182
      %p194 = scmp.eq.s32.totalorder %s25, 1
      %p195 = por %p193, %p194
      %p197 = scmp.ne.s32.totalorder %s182, %s196
      %p198 = scmp.eq.s32.totalorder %s25, 0
      %p199 = por %p197, %p198
      %s201 = sadd.s32 %s200, 1
      %p204 = scmp.eq.s32.totalorder %s19, 1
      %p205 = scmp.ne.s32.totalorder %s200, %s202
      %p206 = scmp.eq.s32.totalorder %s19, 0
      %p207 = por %p205, %p206
      %p208 = scmp.ne.s32.totalorder %s200, %s202
      %p209 = scmp.eq.s32.totalorder %s24, 1
      %p210 = por %p208, %p209
      %p211 = scmp.ne.s32.totalorder %s202, %s203
      %p212 = scmp.eq.s32.totalorder %s24, 0
      %p213 = por %p211, %p212
      %p214 = scmp.ne.s32.totalorder %s202, %s203
      %p215 = scmp.eq.s32.totalorder %s25, 1
      %p216 = por %p214, %p215
      %p218 = scmp.ne.s32.totalorder %s203, %s217
      %p219 = scmp.eq.s32.totalorder %s25, 0
      %p220 = por %p218, %p219
      %s221 = ssub.s32 %s19, %s26
      %p222 = scmp.eq.s32.totalorder %s221, 0
      %s224 = sadd.s32 %s223, 1
      %s225 = scalar_select %p222, %s223, %s224
      %p228 = pneg %p222
      %p229 = scmp.eq.s32.totalorder %s19, 1
      %p230 = por %p228, %p229
      %p231 = scmp.ne.s32.totalorder %s223, %s226
      %p232 = scmp.eq.s32.totalorder %s19, 0
      %p233 = por %p231, %p232
      %p234 = scmp.ne.s32.totalorder %s223, %s226
      %p235 = scmp.eq.s32.totalorder %s24, 1
      %p236 = por %p234, %p235
      %p237 = scmp.ne.s32.totalorder %s226, %s227
      %p238 = scmp.eq.s32.totalorder %s24, 0
      %p239 = por %p237, %p238
      %p240 = scmp.ne.s32.totalorder %s226, %s227
      %p241 = scmp.eq.s32.totalorder %s25, 1
      %p242 = por %p240, %p241
      %p244 = scmp.ne.s32.totalorder %s227, %s243
      %p245 = scmp.eq.s32.totalorder %s25, 0
      %p246 = por %p244, %p245
      %p247 = scmp.le.s32.totalorder 1, %s19
      %p248 = scmp.lt.s32.totalorder %s19, 3
      %p249 = pnand %p247, %p248
      %p250 = pneg %p249
      // Predicated region
      $region9: #{tpu_custom_call.1} parent=5 // pred_check
        _
      $region10: #{tpu_custom_call.1} parent=5 // pred_check_branch
        %252 = sbr.rel (%p249) target = $region12
      $region11: #{tpu_custom_call.1} parent=5 // pred_region
        %s253 = ssub.s32 %s19, 1
        // Predicated region
        $region13: #{tpu_custom_call.1} parent=11 // pred_check
          %p254 = pneg %p66
        $region14: #{tpu_custom_call.1} parent=11 // pred_check_branch
          %256 = sbr.rel (%p254) target = $region16
        $region15: #{tpu_custom_call.1} parent=11 // pred_region
          _
        $region16: #{tpu_custom_call.1} parent=11 // pred_fallthru
          _
        // Predicated region
        $region17: #{tpu_custom_call.1} parent=11 // pred_check
          %p257 = pneg %p87
        $region18: #{tpu_custom_call.1} parent=11 // pred_check_branch
          %259 = sbr.rel (%p257) target = $region20
        $region19: #{tpu_custom_call.1} parent=11 // pred_region
          _
        $region20: #{tpu_custom_call.1} parent=11 // pred_fallthru
          _
        // Predicated region
        $region21: #{tpu_custom_call.1} parent=11 // pred_check
          %p260 = pneg %p108
        $region22: #{tpu_custom_call.1} parent=11 // pred_check_branch
          %262 = sbr.rel (%p260) target = $region24
        $region23: #{tpu_custom_call.1} parent=11 // pred_region
          _
        $region24: #{tpu_custom_call.1} parent=11 // pred_fallthru
          _
        // Predicated region
        $region25: #{tpu_custom_call.1} parent=11 // pred_check
          %p263 = pneg %p129
        $region26: #{tpu_custom_call.1} parent=11 // pred_check_branch
          %265 = sbr.rel (%p263) target = $region28
        $region27: #{tpu_custom_call.1} parent=11 // pred_region
          _
        $region28: #{tpu_custom_call.1} parent=11 // pred_fallthru
          _
        // Predicated region
        $region29: #{tpu_custom_call.1} parent=11 // pred_check
          %p266 = pneg %p150
        $region30: #{tpu_custom_call.1} parent=11 // pred_check_branch
          %268 = sbr.rel (%p266) target = $region32
        $region31: #{tpu_custom_call.1} parent=11 // pred_region
          _
        $region32: #{tpu_custom_call.1} parent=11 // pred_fallthru
          _
        // Predicated region
        $region33: #{tpu_custom_call.1} parent=11 // pred_check
          %p269 = pneg %p171
        $region34: #{tpu_custom_call.1} parent=11 // pred_check_branch
          %271 = sbr.rel (%p269) target = $region36
        $region35: #{tpu_custom_call.1} parent=11 // pred_region
          _
        $region36: #{tpu_custom_call.1} parent=11 // pred_fallthru
          _
        // Predicated region
        $region37: #{tpu_custom_call.1} parent=11 // pred_check
          %p272 = pneg %p192
        $region38: #{tpu_custom_call.1} parent=11 // pred_check_branch
          %274 = sbr.rel (%p272) target = $region40
        $region39: #{tpu_custom_call.1} parent=11 // pred_region
          _
        $region40: #{tpu_custom_call.1} parent=11 // pred_fallthru
          _
        // Predicated region
        $region41: #{tpu_custom_call.1} parent=11 // pred_check
          %p275 = pneg %p213
        $region42: #{tpu_custom_call.1} parent=11 // pred_check_branch
          %277 = sbr.rel (%p275) target = $region44
        $region43: #{tpu_custom_call.1} parent=11 // pred_region
          _
        $region44: #{tpu_custom_call.1} parent=11 // pred_fallthru
          _
      $region12: #{tpu_custom_call.1} parent=5 // pred_fallthru
        _
      %p278 = scmp.lt.s32.totalorder %s19, 2
      // Predicated region
      $region45: #{tpu_custom_call.1} parent=5 // pred_check
        %p279 = pneg %p278
      $region46: #{tpu_custom_call.1} parent=5 // pred_check_branch
        %281 = sbr.rel (%p279) target = $region48
      $region47: #{tpu_custom_call.1} parent=5 // pred_region
        // Predicated region
        $region49: #{tpu_custom_call.1} parent=47 // pred_check
          %p282 = pneg %p39
        $region50: #{tpu_custom_call.1} parent=47 // pred_check_branch
          %284 = sbr.rel (%p282) target = $region52
        $region51: #{tpu_custom_call.1} parent=47 // pred_region
          %s285 = smul.u32 64, %s19
          %p286 = scmp.lt.s32.totalorder %s285, 127
          %s287 = scalar_select %p286, %s285, 127
          %s288 = smul.addr %s287, 8
          %s289 = scalar_lea.vmem %s0, %s288
          %s290 = smul.u32 64, %s19
        $region52: #{tpu_custom_call.1} parent=47 // pred_fallthru
          _
      $region48: #{tpu_custom_call.1} parent=5 // pred_fallthru
        _
      %p291 = scmp.le.s32.totalorder 1, %s19
      %p292 = scmp.lt.s32.totalorder %s19, 3
      %p293 = pnand %p291, %p292
      %p294 = pneg %p293
      // Predicated region
      $region53: #{tpu_custom_call.1} parent=5 // pred_check
        _
      $region54: #{tpu_custom_call.1} parent=5 // pred_check_branch
        %296 = sbr.rel (%p293) target = $region56
      $region55: #{tpu_custom_call.1} parent=5 // pred_region
        %s297 = ssub.s32 %s19, 1
        %s298 = smul.u32 64, %s24
        %p299 = scmp.lt.s32.totalorder %s298, 127
        %s300 = scalar_select %p299, %s298, 127
        %s301 = smul.addr %s300, 8
        %s302 = scalar_lea.vmem %s0, %s301
        %p303 = pneg %p45
        %p304 = pneg %p42
        %p305 = pneg %p66
        %p306 = pneg %p63
        %p307 = pneg %p87
        %p308 = pneg %p84
        %p309 = pneg %p108
        %p310 = pneg %p105
        %p311 = pneg %p129
        %p312 = pneg %p126
        %p313 = pneg %p150
        %p314 = pneg %p147
        %p315 = pneg %p171
        %p316 = pneg %p168
        %p317 = pneg %p192
        %p318 = pneg %p189
        %p319 = pneg %p213
        %p320 = pneg %p210
        %p321 = pneg %p239
        %p322 = pneg %p236
        %s323 = sand.u32 %s226, 1
        %s324 = scalar_lea.sflag [#allocation4], %s323
        %s325 = sand.u32 %s226, 1
        %s326 = smul.addr %s325, 4
        %s327 = scalar_lea.vmem [#allocation3], %s326
        %s328 = smul.u32 64, %s24
        %p329 = scmp.lt.s32.totalorder %s328, 127
        %s330 = scalar_select %p329, %s328, 127
        %s331 = smul.addr %s330, 8
        %s332 = scalar_lea.vmem %s0, %s331
        %s333 = smul.u32 64, %s24
        %v335 = vld [vmem:[%s332] sm:$0xff]
        %v336 = vld [vmem:[%s332 + $0x8] sm:$0xff]
        %v337 = vld [vmem:[%s332 + $0x10] sm:$0xff]
        %v338 = vld [vmem:[%s332 + $0x18] sm:$0xff]
        %v339 = vld [vmem:[%s332 + $0x20] sm:$0xff]
        %v340 = vld [vmem:[%s332 + $0x28] sm:$0xff]
        %v341 = vld [vmem:[%s332 + $0x30] sm:$0xff]
        %v342 = vld [vmem:[%s332 + $0x38] sm:$0xff]
        %v343 = vld [vmem:[%s332 + $0x40] sm:$0xff]
        %v344 = vld [vmem:[%s332 + $0x48] sm:$0xff]
        %v345 = vld [vmem:[%s332 + $0x50] sm:$0xff]
        %v346 = vld [vmem:[%s332 + $0x58] sm:$0xff]
        %v347 = vld [vmem:[%s332 + $0x60] sm:$0xff]
        %v348 = vld [vmem:[%s332 + $0x68] sm:$0xff]
        %v349 = vld [vmem:[%s332 + $0x70] sm:$0xff]
        %v350 = vld [vmem:[%s332 + $0x78] sm:$0xff]
        %v351 = vld [vmem:[%s332 + $0x80] sm:$0xff]
        %v352 = vld [vmem:[%s332 + $0x88] sm:$0xff]
        %v353 = vld [vmem:[%s332 + $0x90] sm:$0xff]
        %v354 = vld [vmem:[%s332 + $0x98] sm:$0xff]
        %v355 = vld [vmem:[%s332 + $0xa0] sm:$0xff]
        %v356 = vld [vmem:[%s332 + $0xa8] sm:$0xff]
        %v357 = vld [vmem:[%s332 + $0xb0] sm:$0xff]
        %v358 = vld [vmem:[%s332 + $0xb8] sm:$0xff]
        %v359 = vld [vmem:[%s332 + $0xc0] sm:$0xff]
        %v360 = vld [vmem:[%s332 + $0xc8] sm:$0xff]
        %v361 = vld [vmem:[%s332 + $0xd0] sm:$0xff]
        %v362 = vld [vmem:[%s332 + $0xd8] sm:$0xff]
        %v363 = vld [vmem:[%s332 + $0xe0] sm:$0xff]
        %v364 = vld [vmem:[%s332 + $0xe8] sm:$0xff]
        %v365 = vld [vmem:[%s332 + $0xf0] sm:$0xff]
        %v366 = vld [vmem:[%s332 + $0xf8] sm:$0xff]
        %v367 = vld [vmem:[%s332 + $0x100] sm:$0xff]
        %v368 = vld [vmem:[%s332 + $0x108] sm:$0xff]
        %v369 = vld [vmem:[%s332 + $0x110] sm:$0xff]
        %v370 = vld [vmem:[%s332 + $0x118] sm:$0xff]
        %v371 = vld [vmem:[%s332 + $0x120] sm:$0xff]
        %v372 = vld [vmem:[%s332 + $0x128] sm:$0xff]
        %v373 = vld [vmem:[%s332 + $0x130] sm:$0xff]
        %v374 = vld [vmem:[%s332 + $0x138] sm:$0xff]
        %v375 = vld [vmem:[%s332 + $0x140] sm:$0xff]
        %v376 = vld [vmem:[%s332 + $0x148] sm:$0xff]
        %v377 = vld [vmem:[%s332 + $0x150] sm:$0xff]
        %v378 = vld [vmem:[%s332 + $0x158] sm:$0xff]
        %v379 = vld [vmem:[%s332 + $0x160] sm:$0xff]
        %v380 = vld [vmem:[%s332 + $0x168] sm:$0xff]
        %v381 = vld [vmem:[%s332 + $0x170] sm:$0xff]
        %v382 = vld [vmem:[%s332 + $0x178] sm:$0xff]
        %v383 = vld [vmem:[%s332 + $0x180] sm:$0xff]
        %v384 = vld [vmem:[%s332 + $0x188] sm:$0xff]
        %v385 = vld [vmem:[%s332 + $0x190] sm:$0xff]
        %v386 = vld [vmem:[%s332 + $0x198] sm:$0xff]
        %v387 = vld [vmem:[%s332 + $0x1a0] sm:$0xff]
        %v388 = vld [vmem:[%s332 + $0x1a8] sm:$0xff]
        %v389 = vld [vmem:[%s332 + $0x1b0] sm:$0xff]
        %v390 = vld [vmem:[%s332 + $0x1b8] sm:$0xff]
        %v391 = vld [vmem:[%s332 + $0x1c0] sm:$0xff]
        %v392 = vld [vmem:[%s332 + $0x1c8] sm:$0xff]
        %v393 = vld [vmem:[%s332 + $0x1d0] sm:$0xff]
        %v394 = vld [vmem:[%s332 + $0x1d8] sm:$0xff]
        %v395 = vld [vmem:[%s332 + $0x1e0] sm:$0xff]
        %v396 = vld [vmem:[%s332 + $0x1e8] sm:$0xff]
        %v397 = vld [vmem:[%s332 + $0x1f0] sm:$0xff]
        %v398 = vld [vmem:[%s332 + $0x1f8] sm:$0xff]
        %v399 = vpack.c.bf16 %v336, %v335
        %v400 = vpack.c.bf16 %v338, %v337
        %v401 = vpack.c.bf16 %v340, %v339
        %v402 = vpack.c.bf16 %v342, %v341
        %v403 = vpack.c.bf16 %v344, %v343
        %v404 = vpack.c.bf16 %v346, %v345
        %v405 = vpack.c.bf16 %v348, %v347
        %v406 = vpack.c.bf16 %v350, %v349
        %v407 = vpack.c.bf16 %v352, %v351
        %v408 = vpack.c.bf16 %v354, %v353
        %v409 = vpack.c.bf16 %v356, %v355
        %v410 = vpack.c.bf16 %v358, %v357
        %v411 = vpack.c.bf16 %v360, %v359
        %v412 = vpack.c.bf16 %v362, %v361
        %v413 = vpack.c.bf16 %v364, %v363
        %v414 = vpack.c.bf16 %v366, %v365
        %v415 = vpack.c.bf16 %v368, %v367
        %v416 = vpack.c.bf16 %v370, %v369
        %v417 = vpack.c.bf16 %v372, %v371
        %v418 = vpack.c.bf16 %v374, %v373
        %v419 = vpack.c.bf16 %v376, %v375
        %v420 = vpack.c.bf16 %v378, %v377
        %v421 = vpack.c.bf16 %v380, %v379
        %v422 = vpack.c.bf16 %v382, %v381
        %v423 = vpack.c.bf16 %v384, %v383
        %v424 = vpack.c.bf16 %v386, %v385
        %v425 = vpack.c.bf16 %v388, %v387
        %v426 = vpack.c.bf16 %v390, %v389
        %v427 = vpack.c.bf16 %v392, %v391
        %v428 = vpack.c.bf16 %v394, %v393
        %v429 = vpack.c.bf16 %v396, %v395
        %v430 = vpack.c.bf16 %v398, %v397
        %v431 = vld [vmem:[%s1] sm:$0xff]
        %v432 = vld [vmem:[%s1 + $0x8] sm:$0xf]
        %v433 = vld [vmem:[%s1 + $0xc] sm:$0xff]
        %v434 = vld [vmem:[%s1 + $0x14] sm:$0xf]
        %v435 = vld [vmem:[%s1 + $0x18] sm:$0xff]
        %v436 = vld [vmem:[%s1 + $0x20] sm:$0xf]
        %v437 = vld [vmem:[%s1 + $0x24] sm:$0xff]
        %v438 = vld [vmem:[%s1 + $0x2c] sm:$0xf]
        %v439 = vld [vmem:[%s2] sm:$0x7]
        %v441 = vlaneseq
        %v442 = vshrl.u32 %v441, 7
        %v443 = vsub.s32 0, %v442
        %v444 = vrot.slane %v439, %v443
        %v445 = vlaneseq
        %v446 = vshrl.u32 %v445, 7
        %v447 = vsub.s32 1, %v446
        %v448 = vrot.slane %v439, %v447
        %v449 = vlaneseq
        %v450 = vshrl.u32 %v449, 7
        %v451 = vsub.s32 2, %v450
        %v452 = vrot.slane %v439, %v451
        %v464 = vunpack.c.l.b16 %v431
        %v465 = vunpack.c.h.b16 %v431
        %v466 = vunpack.c.l.b16 %v432
        %v467 = vunpack.c.l.b16 %v433
        %v468 = vunpack.c.h.b16 %v433
        %v469 = vunpack.c.l.b16 %v434
        %v470 = vunpack.c.l.b16 %v435
        %v471 = vunpack.c.h.b16 %v435
        %v472 = vunpack.c.l.b16 %v436
        %v473 = vunpack.c.l.b16 %v437
        %v474 = vunpack.c.h.b16 %v437
        %v475 = vunpack.c.l.b16 %v438
        %v476 = vpack.c.b16 %v467, %v464
        %v477 = vpack.c.b16 %v468, %v465
        %v478 = vpack.c.b16 %v469, %v466
        %v479 = vpack.c.b16 %v473, %v470
        %v480 = vpack.c.b16 %v474, %v471
        %v481 = vpack.c.b16 %v475, %v472
        %vm488 = vcmask 261120
        %v490 = vsel %vm488, %v399, 0
        %v493 = vsel %vm488, %v400, 0
        %v496 = vsel %vm488, %v401, 0
        %v499 = vsel %vm488, %v402, 0
        %v502 = vsel %vm488, %v403, 0
        %v505 = vsel %vm488, %v404, 0
        %v508 = vsel %vm488, %v405, 0
        %v511 = vsel %vm488, %v406, 0
        %v514 = vsel %vm488, %v407, 0
        %v517 = vsel %vm488, %v408, 0
        %v520 = vsel %vm488, %v409, 0
        %v523 = vsel %vm488, %v410, 0
        %v526 = vsel %vm488, %v411, 0
        %v529 = vsel %vm488, %v412, 0
        %v532 = vsel %vm488, %v413, 0
        %v535 = vsel %vm488, %v414, 0
        %v538 = vsel %vm488, %v415, 0
        %v541 = vsel %vm488, %v416, 0
        %v544 = vsel %vm488, %v417, 0
        %v547 = vsel %vm488, %v418, 0
        %v550 = vsel %vm488, %v419, 0
        %v553 = vsel %vm488, %v420, 0
        %v556 = vsel %vm488, %v421, 0
        %v559 = vsel %vm488, %v422, 0
        %v562 = vsel %vm488, %v423, 0
        %v565 = vsel %vm488, %v424, 0
        %v568 = vsel %vm488, %v425, 0
        %v571 = vsel %vm488, %v426, 0
        %v574 = vsel %vm488, %v427, 0
        %v577 = vsel %vm488, %v428, 0
        %v580 = vsel %vm488, %v429, 0
        %v583 = vsel %vm488, %v430, 0
        %585 = vmatprep.subr.bf16.mxu0 %v477
        %586 = vmatpush1.bf16.msra.mxu0 %v476
        %587 = vmatprep.subr.bf16.mxu0 %v480
        %588 = vmatpush1.bf16.msra.mxu0 %v479
        %589 = vmatprep.subr.bf16.mxu0 0
        %590 = vmatpush1.bf16.msra.mxu0 0
        %591 = vmatprep.subr.bf16.mxu0 0
        %592 = vmatpush1.bf16.msra.mxu0 0
        %593 = vmatprep.subr.bf16.mxu0 0
        %594 = vmatpush1.bf16.msra.mxu0 0
        %595 = vmatprep.subr.bf16.mxu0 0
        %596 = vmatpush1.bf16.msra.mxu0 0
        %597 = vmatprep.subr.bf16.mxu0 0
        %598 = vmatpush1.bf16.msra.mxu0 0
        %599 = vmatprep.subr.bf16.mxu0 0
        %600 = vmatpush1.bf16.msra.mxu0 0
        %601 = vmatprep.subr.bf16.mxu0 0
        %602 = vmatpush1.bf16.msra.mxu0 0
        %603 = vmatprep.subr.bf16.mxu0 0
        %604 = vmatpush1.bf16.msra.mxu0 0
        %605 = vmatprep.subr.bf16.mxu0 0
        %606 = vmatpush1.bf16.msra.mxu0 0
        %607 = vmatprep.subr.bf16.mxu0 0
        %608 = vmatpush1.bf16.msra.mxu0 0
        %609 = vmatprep.subr.bf16.mxu0 0
        %610 = vmatpush1.bf16.msra.mxu0 0
        %611 = vmatprep.subr.bf16.mxu0 0
        %612 = vmatpush1.bf16.msra.mxu0 0
        %613 = vmatprep.subr.bf16.mxu0 0
        %614 = vmatpush1.bf16.msra.mxu0 0
        %615 = vmatprep.subr.bf16.mxu0 0
        %616 = vmatpush1.bf16.msra.mxu0 0
        %617 = vmatprep.mubr.bf16.mxu0 0
        %618 = vmatmul.mubr.bf16.gmra.mrb[0].mxu0 %v490
        %v619 = vpop.f32.mrb[0].mxu0
        %v620 = vadd.f32 %v444, %v619
        %v621 = vpop.f32.mrb[0].mxu0
        %v622 = vadd.f32 %v448, %v621
        %v623 = vpop.f32.mrb[0].mxu0
        %v624 = vadd.f32 %v444, %v623
        %v625 = vpop.f32.mrb[0].mxu0
        %v626 = vadd.f32 %v448, %v625
        %627 = vmatprep.mubr.bf16.mxu0 0
        %628 = vmatmul.mubr.bf16.gmra.mrb[0].mxu0 %v493
        %v629 = vpop.f32.mrb[0].mxu0
        %v630 = vadd.f32 %v444, %v629
        %v631 = vpop.f32.mrb[0].mxu0
        %v632 = vadd.f32 %v448, %v631
        %v633 = vpop.f32.mrb[0].mxu0
        %v634 = vadd.f32 %v444, %v633
        %v635 = vpop.f32.mrb[0].mxu0
        %v636 = vadd.f32 %v448, %v635
        %637 = vmatprep.mubr.bf16.mxu0 0
        %638 = vmatmul.mubr.bf16.gmra.mrb[0].mxu0 %v496
        %v639 = vpop.f32.mrb[0].mxu0
        %v640 = vadd.f32 %v444, %v639
        %v641 = vpop.f32.mrb[0].mxu0
        %v642 = vadd.f32 %v448, %v641
        %v643 = vpop.f32.mrb[0].mxu0
        %v644 = vadd.f32 %v444, %v643
        %v645 = vpop.f32.mrb[0].mxu0
        %v646 = vadd.f32 %v448, %v645
        %647 = vmatprep.mubr.bf16.mxu0 0
        %648 = vmatmul.mubr.bf16.gmra.mrb[0].mxu0 %v499
        %v649 = vpop.f32.mrb[0].mxu0
        %v650 = vadd.f32 %v444, %v649
        %v651 = vpop.f32.mrb[0].mxu0
        %v652 = vadd.f32 %v448, %v651
        %v653 = vpop.f32.mrb[0].mxu0
        %v654 = vadd.f32 %v444, %v653
        %v655 = vpop.f32.mrb[0].mxu0
        %v656 = vadd.f32 %v448, %v655
        %657 = vmatprep.mubr.bf16.mxu0 0
        %658 = vmatmul.mubr.bf16.gmra.mrb[0].mxu0 %v502
        %v659 = vpop.f32.mrb[0].mxu0
        %v660 = vadd.f32 %v444, %v659
        %v661 = vpop.f32.mrb[0].mxu0
        %v662 = vadd.f32 %v448, %v661
        %v663 = vpop.f32.mrb[0].mxu0
        %v664 = vadd.f32 %v444, %v663
        %v665 = vpop.f32.mrb[0].mxu0
        %v666 = vadd.f32 %v448, %v665
        %667 = vmatprep.mubr.bf16.mxu0 0
        %668 = vmatmul.mubr.bf16.gmra.mrb[0].mxu0 %v505
        %v669 = vpop.f32.mrb[0].mxu0
        %v670 = vadd.f32 %v444, %v669
        %v671 = vpop.f32.mrb[0].mxu0
        %v672 = vadd.f32 %v448, %v671
        %v673 = vpop.f32.mrb[0].mxu0
        %v674 = vadd.f32 %v444, %v673
        %v675 = vpop.f32.mrb[0].mxu0
        %v676 = vadd.f32 %v448, %v675
        %677 = vmatprep.mubr.bf16.mxu0 0
        %678 = vmatmul.mubr.bf16.gmra.mrb[0].mxu0 %v508
        %v679 = vpop.f32.mrb[0].mxu0
        %v680 = vadd.f32 %v444, %v679
        %v681 = vpop.f32.mrb[0].mxu0
        %v682 = vadd.f32 %v448, %v681
        %v683 = vpop.f32.mrb[0].mxu0
        %v684 = vadd.f32 %v444, %v683
        %v685 = vpop.f32.mrb[0].mxu0
        %v686 = vadd.f32 %v448, %v685
        %687 = vmatprep.mubr.bf16.mxu0 0
        %688 = vmatmul.mubr.bf16.gmra.mrb[0].mxu0 %v511
        %v689 = vpop.f32.mrb[0].mxu0
        %v690 = vadd.f32 %v444, %v689
        %v691 = vpop.f32.mrb[0].mxu0
        %v692 = vadd.f32 %v448, %v691
        %v693 = vpop.f32.mrb[0].mxu0
        %v694 = vadd.f32 %v444, %v693
        %v695 = vpop.f32.mrb[0].mxu0
        %v696 = vadd.f32 %v448, %v695
        %697 = vmatprep.mubr.bf16.mxu0 0
        %698 = vmatmul.mubr.bf16.gmra.mrb[0].mxu0 %v514
        %v699 = vpop.f32.mrb[0].mxu0
        %v700 = vadd.f32 %v444, %v699
        %v701 = vpop.f32.mrb[0].mxu0
        %v702 = vadd.f32 %v448, %v701
        %v703 = vpop.f32.mrb[0].mxu0
        %v704 = vadd.f32 %v444, %v703
        %v705 = vpop.f32.mrb[0].mxu0
        %v706 = vadd.f32 %v448, %v705
        %707 = vmatprep.mubr.bf16.mxu0 0
        %708 = vmatmul.mubr.bf16.gmra.mrb[0].mxu0 %v517
        %v709 = vpop.f32.mrb[0].mxu0
        %v710 = vadd.f32 %v444, %v709
        %v711 = vpop.f32.mrb[0].mxu0
        %v712 = vadd.f32 %v448, %v711
        %v713 = vpop.f32.mrb[0].mxu0
        %v714 = vadd.f32 %v444, %v713
        %v715 = vpop.f32.mrb[0].mxu0
        %v716 = vadd.f32 %v448, %v715
        %717 = vmatprep.mubr.bf16.mxu0 0
        %718 = vmatmul.mubr.bf16.gmra.mrb[0].mxu0 %v520
        %v719 = vpop.f32.mrb[0].mxu0
        %v720 = vadd.f32 %v444, %v719
        %v721 = vpop.f32.mrb[0].mxu0
        %v722 = vadd.f32 %v448, %v721
        %v723 = vpop.f32.mrb[0].mxu0
        %v724 = vadd.f32 %v444, %v723
        %v725 = vpop.f32.mrb[0].mxu0
        %v726 = vadd.f32 %v448, %v725
        %727 = vmatprep.mubr.bf16.mxu0 0
        %728 = vmatmul.mubr.bf16.gmra.mrb[0].mxu0 %v523
        %v729 = vpop.f32.mrb[0].mxu0
        %v730 = vadd.f32 %v444, %v729
        %v731 = vpop.f32.mrb[0].mxu0
        %v732 = vadd.f32 %v448, %v731
        %v733 = vpop.f32.mrb[0].mxu0
        %v734 = vadd.f32 %v444, %v733
        %v735 = vpop.f32.mrb[0].mxu0
        %v736 = vadd.f32 %v448, %v735
        %737 = vmatprep.mubr.bf16.mxu0 0
        %738 = vmatmul.mubr.bf16.gmra.mrb[0].mxu0 %v526
        %v739 = vpop.f32.mrb[0].mxu0
        %v740 = vadd.f32 %v444, %v739
        %v741 = vpop.f32.mrb[0].mxu0
        %v742 = vadd.f32 %v448, %v741
        %v743 = vpop.f32.mrb[0].mxu0
        %v744 = vadd.f32 %v444, %v743
        %v745 = vpop.f32.mrb[0].mxu0
        %v746 = vadd.f32 %v448, %v745
        %747 = vmatprep.mubr.bf16.mxu0 0
        %748 = vmatmul.mubr.bf16.gmra.mrb[0].mxu0 %v529
        %v749 = vpop.f32.mrb[0].mxu0
        %v750 = vadd.f32 %v444, %v749
        %v751 = vpop.f32.mrb[0].mxu0
        %v752 = vadd.f32 %v448, %v751
        %v753 = vpop.f32.mrb[0].mxu0
        %v754 = vadd.f32 %v444, %v753
        %v755 = vpop.f32.mrb[0].mxu0
        %v756 = vadd.f32 %v448, %v755
        %757 = vmatprep.mubr.bf16.mxu0 0
        %758 = vmatmul.mubr.bf16.gmra.mrb[0].mxu0 %v532
        %v759 = vpop.f32.mrb[0].mxu0
        %v760 = vadd.f32 %v444, %v759
        %v761 = vpop.f32.mrb[0].mxu0
        %v762 = vadd.f32 %v448, %v761
        %v763 = vpop.f32.mrb[0].mxu0
        %v764 = vadd.f32 %v444, %v763
        %v765 = vpop.f32.mrb[0].mxu0
        %v766 = vadd.f32 %v448, %v765
        %767 = vmatprep.mubr.bf16.mxu0 0
        %768 = vmatmul.mubr.bf16.gmra.mrb[0].mxu0 %v535
        %v769 = vpop.f32.mrb[0].mxu0
        %v770 = vadd.f32 %v444, %v769
        %v771 = vpop.f32.mrb[0].mxu0
        %v772 = vadd.f32 %v448, %v771
        %v773 = vpop.f32.mrb[0].mxu0
        %v774 = vadd.f32 %v444, %v773
        %v775 = vpop.f32.mrb[0].mxu0
        %v776 = vadd.f32 %v448, %v775
        %777 = vmatprep.mubr.bf16.mxu0 0
        %778 = vmatmul.mubr.bf16.gmra.mrb[0].mxu0 %v538
        %v779 = vpop.f32.mrb[0].mxu0
        %v780 = vadd.f32 %v444, %v779
        %v781 = vpop.f32.mrb[0].mxu0
        %v782 = vadd.f32 %v448, %v781
        %v783 = vpop.f32.mrb[0].mxu0
        %v784 = vadd.f32 %v444, %v783
        %v785 = vpop.f32.mrb[0].mxu0
        %v786 = vadd.f32 %v448, %v785
        %787 = vmatprep.mubr.bf16.mxu0 0
        %788 = vmatmul.mubr.bf16.gmra.mrb[0].mxu0 %v541
        %v789 = vpop.f32.mrb[0].mxu0
        %v790 = vadd.f32 %v444, %v789
        %v791 = vpop.f32.mrb[0].mxu0
        %v792 = vadd.f32 %v448, %v791
        %v793 = vpop.f32.mrb[0].mxu0
        %v794 = vadd.f32 %v444, %v793
        %v795 = vpop.f32.mrb[0].mxu0
        %v796 = vadd.f32 %v448, %v795
        %797 = vmatprep.mubr.bf16.mxu0 0
        %798 = vmatmul.mubr.bf16.gmra.mrb[0].mxu0 %v544
        %v799 = vpop.f32.mrb[0].mxu0
        %v800 = vadd.f32 %v444, %v799
        %v801 = vpop.f32.mrb[0].mxu0
        %v802 = vadd.f32 %v448, %v801
        %v803 = vpop.f32.mrb[0].mxu0
        %v804 = vadd.f32 %v444, %v803
        %v805 = vpop.f32.mrb[0].mxu0
        %v806 = vadd.f32 %v448, %v805
        %807 = vmatprep.mubr.bf16.mxu0 0
        %808 = vmatmul.mubr.bf16.gmra.mrb[0].mxu0 %v547
        %v809 = vpop.f32.mrb[0].mxu0
        %v810 = vadd.f32 %v444, %v809
        %v811 = vpop.f32.mrb[0].mxu0
        %v812 = vadd.f32 %v448, %v811
        %v813 = vpop.f32.mrb[0].mxu0
        %v814 = vadd.f32 %v444, %v813
        %v815 = vpop.f32.mrb[0].mxu0
        %v816 = vadd.f32 %v448, %v815
        %817 = vmatprep.mubr.bf16.mxu0 0
        %818 = vmatmul.mubr.bf16.gmra.mrb[0].mxu0 %v550
        %v819 = vpop.f32.mrb[0].mxu0
        %v820 = vadd.f32 %v444, %v819
        %v821 = vpop.f32.mrb[0].mxu0
        %v822 = vadd.f32 %v448, %v821
        %v823 = vpop.f32.mrb[0].mxu0
        %v824 = vadd.f32 %v444, %v823
        %v825 = vpop.f32.mrb[0].mxu0
        %v826 = vadd.f32 %v448, %v825
        %827 = vmatprep.mubr.bf16.mxu0 0
        %828 = vmatmul.mubr.bf16.gmra.mrb[0].mxu0 %v553
        %v829 = vpop.f32.mrb[0].mxu0
        %v830 = vadd.f32 %v444, %v829
        %v831 = vpop.f32.mrb[0].mxu0
        %v832 = vadd.f32 %v448, %v831
        %v833 = vpop.f32.mrb[0].mxu0
        %v834 = vadd.f32 %v444, %v833
        %v835 = vpop.f32.mrb[0].mxu0
        %v836 = vadd.f32 %v448, %v835
        %837 = vmatprep.mubr.bf16.mxu0 0
        %838 = vmatmul.mubr.bf16.gmra.mrb[0].mxu0 %v556
        %v839 = vpop.f32.mrb[0].mxu0
        %v840 = vadd.f32 %v444, %v839
        %v841 = vpop.f32.mrb[0].mxu0
        %v842 = vadd.f32 %v448, %v841
        %v843 = vpop.f32.mrb[0].mxu0
        %v844 = vadd.f32 %v444, %v843
        %v845 = vpop.f32.mrb[0].mxu0
        %v846 = vadd.f32 %v448, %v845
        %847 = vmatprep.mubr.bf16.mxu0 0
        %848 = vmatmul.mubr.bf16.gmra.mrb[0].mxu0 %v559
        %v849 = vpop.f32.mrb[0].mxu0
        %v850 = vadd.f32 %v444, %v849
        %v851 = vpop.f32.mrb[0].mxu0
        %v852 = vadd.f32 %v448, %v851
        %v853 = vpop.f32.mrb[0].mxu0
        %v854 = vadd.f32 %v444, %v853
        %v855 = vpop.f32.mrb[0].mxu0
        %v856 = vadd.f32 %v448, %v855
        %857 = vmatprep.mubr.bf16.mxu0 0
        %858 = vmatmul.mubr.bf16.gmra.mrb[0].mxu0 %v562
        %v859 = vpop.f32.mrb[0].mxu0
        %v860 = vadd.f32 %v444, %v859
        %v861 = vpop.f32.mrb[0].mxu0
        %v862 = vadd.f32 %v448, %v861
        %v863 = vpop.f32.mrb[0].mxu0
        %v864 = vadd.f32 %v444, %v863
        %v865 = vpop.f32.mrb[0].mxu0
        %v866 = vadd.f32 %v448, %v865
        %867 = vmatprep.mubr.bf16.mxu0 0
        %868 = vmatmul.mubr.bf16.gmra.mrb[0].mxu0 %v565
        %v869 = vpop.f32.mrb[0].mxu0
        %v870 = vadd.f32 %v444, %v869
        %v871 = vpop.f32.mrb[0].mxu0
        %v872 = vadd.f32 %v448, %v871
        %v873 = vpop.f32.mrb[0].mxu0
        %v874 = vadd.f32 %v444, %v873
        %v875 = vpop.f32.mrb[0].mxu0
        %v876 = vadd.f32 %v448, %v875
        %877 = vmatprep.mubr.bf16.mxu0 0
        %878 = vmatmul.mubr.bf16.gmra.mrb[0].mxu0 %v568
        %v879 = vpop.f32.mrb[0].mxu0
        %v880 = vadd.f32 %v444, %v879
        %v881 = vpop.f32.mrb[0].mxu0
        %v882 = vadd.f32 %v448, %v881
        %v883 = vpop.f32.mrb[0].mxu0
        %v884 = vadd.f32 %v444, %v883
        %v885 = vpop.f32.mrb[0].mxu0
        %v886 = vadd.f32 %v448, %v885
        %887 = vmatprep.mubr.bf16.mxu0 0
        %888 = vmatmul.mubr.bf16.gmra.mrb[0].mxu0 %v571
        %v889 = vpop.f32.mrb[0].mxu0
        %v890 = vadd.f32 %v444, %v889
        %v891 = vpop.f32.mrb[0].mxu0
        %v892 = vadd.f32 %v448, %v891
        %v893 = vpop.f32.mrb[0].mxu0
        %v894 = vadd.f32 %v444, %v893
        %v895 = vpop.f32.mrb[0].mxu0
        %v896 = vadd.f32 %v448, %v895
        %897 = vmatprep.mubr.bf16.mxu0 0
        %898 = vmatmul.mubr.bf16.gmra.mrb[0].mxu0 %v574
        %v899 = vpop.f32.mrb[0].mxu0
        %v900 = vadd.f32 %v444, %v899
        %v901 = vpop.f32.mrb[0].mxu0
        %v902 = vadd.f32 %v448, %v901
        %v903 = vpop.f32.mrb[0].mxu0
        %v904 = vadd.f32 %v444, %v903
        %v905 = vpop.f32.mrb[0].mxu0
        %v906 = vadd.f32 %v448, %v905
        %907 = vmatprep.mubr.bf16.mxu0 0
        %908 = vmatmul.mubr.bf16.gmra.mrb[0].mxu0 %v577
        %v909 = vpop.f32.mrb[0].mxu0
        %v910 = vadd.f32 %v444, %v909
        %v911 = vpop.f32.mrb[0].mxu0
        %v912 = vadd.f32 %v448, %v911
        %v913 = vpop.f32.mrb[0].mxu0
        %v914 = vadd.f32 %v444, %v913
        %v915 = vpop.f32.mrb[0].mxu0
        %v916 = vadd.f32 %v448, %v915
        %917 = vmatprep.mubr.bf16.mxu0 0
        %918 = vmatmul.mubr.bf16.gmra.mrb[0].mxu0 %v580
        %v919 = vpop.f32.mrb[0].mxu0
        %v920 = vadd.f32 %v444, %v919
        %v921 = vpop.f32.mrb[0].mxu0
        %v922 = vadd.f32 %v448, %v921
        %v923 = vpop.f32.mrb[0].mxu0
        %v924 = vadd.f32 %v444, %v923
        %v925 = vpop.f32.mrb[0].mxu0
        %v926 = vadd.f32 %v448, %v925
        %927 = vmatprep.mubr.bf16.mxu0 0
        %928 = vmatmul.mubr.bf16.gmra.mrb[0].mxu0 %v583
        %v929 = vpop.f32.mrb[0].mxu0
        %v930 = vadd.f32 %v444, %v929
        %v931 = vpop.f32.mrb[0].mxu0
        %v932 = vadd.f32 %v448, %v931
        %v933 = vpop.f32.mrb[0].mxu0
        %v934 = vadd.f32 %v444, %v933
        %v935 = vpop.f32.mrb[0].mxu0
        %v936 = vadd.f32 %v448, %v935
        %937 = vdwg.mxu0
        %938 = vmatprep.subr.bf16.mxu0 0
        %939 = vmatpush1.bf16.msra.mxu0 %v478
        %940 = vmatprep.subr.bf16.mxu0 0
        %941 = vmatpush1.bf16.msra.mxu0 %v481
        %942 = vmatprep.subr.bf16.mxu0 0
        %943 = vmatpush1.bf16.msra.mxu0 0
        %944 = vmatprep.subr.bf16.mxu0 0
        %945 = vmatpush1.bf16.msra.mxu0 0
        %946 = vmatprep.subr.bf16.mxu0 0
        %947 = vmatpush1.bf16.msra.mxu0 0
        %948 = vmatprep.subr.bf16.mxu0 0
        %949 = vmatpush1.bf16.msra.mxu0 0
        %950 = vmatprep.subr.bf16.mxu0 0
        %951 = vmatpush1.bf16.msra.mxu0 0
        %952 = vmatprep.subr.bf16.mxu0 0
        %953 = vmatpush1.bf16.msra.mxu0 0
        %954 = vmatprep.subr.bf16.mxu0 0
        %955 = vmatpush1.bf16.msra.mxu0 0
        %956 = vmatprep.subr.bf16.mxu0 0
        %957 = vmatpush1.bf16.msra.mxu0 0
        %958 = vmatprep.subr.bf16.mxu0 0
        %959 = vmatpush1.bf16.msra.mxu0 0
        %960 = vmatprep.subr.bf16.mxu0 0
        %961 = vmatpush1.bf16.msra.mxu0 0
        %962 = vmatprep.subr.bf16.mxu0 0
        %963 = vmatpush1.bf16.msra.mxu0 0
        %964 = vmatprep.subr.bf16.mxu0 0
        %965 = vmatpush1.bf16.msra.mxu0 0
        %966 = vmatprep.subr.bf16.mxu0 0
        %967 = vmatpush1.bf16.msra.mxu0 0
        %968 = vmatprep.subr.bf16.mxu0 0
        %969 = vmatpush1.bf16.msra.mxu0 0
        %970 = vmatprep.mubr.bf16.mxu0 0
        %971 = vmatmul.mubr.bf16.gmra.mrb[0].mxu0 %v490
        %v972 = vpop.f32.mrb[0].mxu0
        %v973 = vadd.f32 %v452, %v972
        %v974 = vpop.f32.mrb[0].mxu0
        %v975 = vpop.f32.mrb[0].mxu0
        %v976 = vadd.f32 %v452, %v975
        %v977 = vpop.f32.mrb[0].mxu0
        %978 = vmatprep.mubr.bf16.mxu0 0
        %979 = vmatmul.mubr.bf16.gmra.mrb[0].mxu0 %v493
        %v980 = vpop.f32.mrb[0].mxu0
        %v981 = vadd.f32 %v452, %v980
        %v982 = vpop.f32.mrb[0].mxu0
        %v983 = vpop.f32.mrb[0].mxu0
        %v984 = vadd.f32 %v452, %v983
        %v985 = vpop.f32.mrb[0].mxu0
        %986 = vmatprep.mubr.bf16.mxu0 0
        %987 = vmatmul.mubr.bf16.gmra.mrb[0].mxu0 %v496
        %v988 = vpop.f32.mrb[0].mxu0
        %v989 = vadd.f32 %v452, %v988
        %v990 = vpop.f32.mrb[0].mxu0
        %v991 = vpop.f32.mrb[0].mxu0
        %v992 = vadd.f32 %v452, %v991
        %v993 = vpop.f32.mrb[0].mxu0
        %994 = vmatprep.mubr.bf16.mxu0 0
        %995 = vmatmul.mubr.bf16.gmra.mrb[0].mxu0 %v499
        %v996 = vpop.f32.mrb[0].mxu0
        %v997 = vadd.f32 %v452, %v996
        %v998 = vpop.f32.mrb[0].mxu0
        %v999 = vpop.f32.mrb[0].mxu0
        %v1000 = vadd.f32 %v452, %v999
        %v1001 = vpop.f32.mrb[0].mxu0
        %1002 = vmatprep.mubr.bf16.mxu0 0
        %1003 = vmatmul.mubr.bf16.gmra.mrb[0].mxu0 %v502
        %v1004 = vpop.f32.mrb[0].mxu0
        %v1005 = vadd.f32 %v452, %v1004
        %v1006 = vpop.f32.mrb[0].mxu0
        %v1007 = vpop.f32.mrb[0].mxu0
        %v1008 = vadd.f32 %v452, %v1007
        %v1009 = vpop.f32.mrb[0].mxu0
        %1010 = vmatprep.mubr.bf16.mxu0 0
        %1011 = vmatmul.mubr.bf16.gmra.mrb[0].mxu0 %v505
        %v1012 = vpop.f32.mrb[0].mxu0
        %v1013 = vadd.f32 %v452, %v1012
        %v1014 = vpop.f32.mrb[0].mxu0
        %v1015 = vpop.f32.mrb[0].mxu0
        %v1016 = vadd.f32 %v452, %v1015
        %v1017 = vpop.f32.mrb[0].mxu0
        %1018 = vmatprep.mubr.bf16.mxu0 0
        %1019 = vmatmul.mubr.bf16.gmra.mrb[0].mxu0 %v508
        %v1020 = vpop.f32.mrb[0].mxu0
        %v1021 = vadd.f32 %v452, %v1020
        %v1022 = vpop.f32.mrb[0].mxu0
        %v1023 = vpop.f32.mrb[0].mxu0
        %v1024 = vadd.f32 %v452, %v1023
        %v1025 = vpop.f32.mrb[0].mxu0
        %1026 = vmatprep.mubr.bf16.mxu0 0
        %1027 = vmatmul.mubr.bf16.gmra.mrb[0].mxu0 %v511
        %v1028 = vpop.f32.mrb[0].mxu0
        %v1029 = vadd.f32 %v452, %v1028
        %v1030 = vpop.f32.mrb[0].mxu0
        %v1031 = vpop.f32.mrb[0].mxu0
        %v1032 = vadd.f32 %v452, %v1031
        %v1033 = vpop.f32.mrb[0].mxu0
        %1034 = vmatprep.mubr.bf16.mxu0 0
        %1035 = vmatmul.mubr.bf16.gmra.mrb[0].mxu0 %v514
        %v1036 = vpop.f32.mrb[0].mxu0
        %v1037 = vadd.f32 %v452, %v1036
        %v1038 = vpop.f32.mrb[0].mxu0
        %v1039 = vpop.f32.mrb[0].mxu0
        %v1040 = vadd.f32 %v452, %v1039
        %v1041 = vpop.f32.mrb[0].mxu0
        %1042 = vmatprep.mubr.bf16.mxu0 0
        %1043 = vmatmul.mubr.bf16.gmra.mrb[0].mxu0 %v517
        %v1044 = vpop.f32.mrb[0].mxu0
        %v1045 = vadd.f32 %v452, %v1044
        %v1046 = vpop.f32.mrb[0].mxu0
        %v1047 = vpop.f32.mrb[0].mxu0
        %v1048 = vadd.f32 %v452, %v1047
        %v1049 = vpop.f32.mrb[0].mxu0
        %1050 = vmatprep.mubr.bf16.mxu0 0
        %1051 = vmatmul.mubr.bf16.gmra.mrb[0].mxu0 %v520
        %v1052 = vpop.f32.mrb[0].mxu0
        %v1053 = vadd.f32 %v452, %v1052
        %v1054 = vpop.f32.mrb[0].mxu0
        %v1055 = vpop.f32.mrb[0].mxu0
        %v1056 = vadd.f32 %v452, %v1055
        %v1057 = vpop.f32.mrb[0].mxu0
        %1058 = vmatprep.mubr.bf16.mxu0 0
        %1059 = vmatmul.mubr.bf16.gmra.mrb[0].mxu0 %v523
        %v1060 = vpop.f32.mrb[0].mxu0
        %v1061 = vadd.f32 %v452, %v1060
        %v1062 = vpop.f32.mrb[0].mxu0
        %v1063 = vpop.f32.mrb[0].mxu0
        %v1064 = vadd.f32 %v452, %v1063
        %v1065 = vpop.f32.mrb[0].mxu0
        %1066 = vmatprep.mubr.bf16.mxu0 0
        %1067 = vmatmul.mubr.bf16.gmra.mrb[0].mxu0 %v526
        %v1068 = vpop.f32.mrb[0].mxu0
        %v1069 = vadd.f32 %v452, %v1068
        %v1070 = vpop.f32.mrb[0].mxu0
        %v1071 = vpop.f32.mrb[0].mxu0
        %v1072 = vadd.f32 %v452, %v1071
        %v1073 = vpop.f32.mrb[0].mxu0
        %1074 = vmatprep.mubr.bf16.mxu0 0
        %1075 = vmatmul.mubr.bf16.gmra.mrb[0].mxu0 %v529
        %v1076 = vpop.f32.mrb[0].mxu0
        %v1077 = vadd.f32 %v452, %v1076
        %v1078 = vpop.f32.mrb[0].mxu0
        %v1079 = vpop.f32.mrb[0].mxu0
        %v1080 = vadd.f32 %v452, %v1079
        %v1081 = vpop.f32.mrb[0].mxu0
        %1082 = vmatprep.mubr.bf16.mxu0 0
        %1083 = vmatmul.mubr.bf16.gmra.mrb[0].mxu0 %v532
        %v1084 = vpop.f32.mrb[0].mxu0
        %v1085 = vadd.f32 %v452, %v1084
        %v1086 = vpop.f32.mrb[0].mxu0
        %v1087 = vpop.f32.mrb[0].mxu0
        %v1088 = vadd.f32 %v452, %v1087
        %v1089 = vpop.f32.mrb[0].mxu0
        %1090 = vmatprep.mubr.bf16.mxu0 0
        %1091 = vmatmul.mubr.bf16.gmra.mrb[0].mxu0 %v535
        %v1092 = vpop.f32.mrb[0].mxu0
        %v1093 = vadd.f32 %v452, %v1092
        %v1094 = vpop.f32.mrb[0].mxu0
        %v1095 = vpop.f32.mrb[0].mxu0
        %v1096 = vadd.f32 %v452, %v1095
        %v1097 = vpop.f32.mrb[0].mxu0
        %1098 = vmatprep.mubr.bf16.mxu0 0
        %1099 = vmatmul.mubr.bf16.gmra.mrb[0].mxu0 %v538
        %v1100 = vpop.f32.mrb[0].mxu0
        %v1101 = vadd.f32 %v452, %v1100
        %v1102 = vpop.f32.mrb[0].mxu0
        %v1103 = vpop.f32.mrb[0].mxu0
        %v1104 = vadd.f32 %v452, %v1103
        %v1105 = vpop.f32.mrb[0].mxu0
        %1106 = vmatprep.mubr.bf16.mxu0 0
        %1107 = vmatmul.mubr.bf16.gmra.mrb[0].mxu0 %v541
        %v1108 = vpop.f32.mrb[0].mxu0
        %v1109 = vadd.f32 %v452, %v1108
        %v1110 = vpop.f32.mrb[0].mxu0
        %v1111 = vpop.f32.mrb[0].mxu0
        %v1112 = vadd.f32 %v452, %v1111
        %v1113 = vpop.f32.mrb[0].mxu0
        %1114 = vmatprep.mubr.bf16.mxu0 0
        %1115 = vmatmul.mubr.bf16.gmra.mrb[0].mxu0 %v544
        %v1116 = vpop.f32.mrb[0].mxu0
        %v1117 = vadd.f32 %v452, %v1116
        %v1118 = vpop.f32.mrb[0].mxu0
        %v1119 = vpop.f32.mrb[0].mxu0
        %v1120 = vadd.f32 %v452, %v1119
        %v1121 = vpop.f32.mrb[0].mxu0
        %1122 = vmatprep.mubr.bf16.mxu0 0
        %1123 = vmatmul.mubr.bf16.gmra.mrb[0].mxu0 %v547
        %v1124 = vpop.f32.mrb[0].mxu0
        %v1125 = vadd.f32 %v452, %v1124
        %v1126 = vpop.f32.mrb[0].mxu0
        %v1127 = vpop.f32.mrb[0].mxu0
        %v1128 = vadd.f32 %v452, %v1127
        %v1129 = vpop.f32.mrb[0].mxu0
        %1130 = vmatprep.mubr.bf16.mxu0 0
        %1131 = vmatmul.mubr.bf16.gmra.mrb[0].mxu0 %v550
        %v1132 = vpop.f32.mrb[0].mxu0
        %v1133 = vadd.f32 %v452, %v1132
        %v1134 = vpop.f32.mrb[0].mxu0
        %v1135 = vpop.f32.mrb[0].mxu0
        %v1136 = vadd.f32 %v452, %v1135
        %v1137 = vpop.f32.mrb[0].mxu0
        %1138 = vmatprep.mubr.bf16.mxu0 0
        %1139 = vmatmul.mubr.bf16.gmra.mrb[0].mxu0 %v553
        %v1140 = vpop.f32.mrb[0].mxu0
        %v1141 = vadd.f32 %v452, %v1140
        %v1142 = vpop.f32.mrb[0].mxu0
        %v1143 = vpop.f32.mrb[0].mxu0
        %v1144 = vadd.f32 %v452, %v1143
        %v1145 = vpop.f32.mrb[0].mxu0
        %1146 = vmatprep.mubr.bf16.mxu0 0
        %1147 = vmatmul.mubr.bf16.gmra.mrb[0].mxu0 %v556
        %v1148 = vpop.f32.mrb[0].mxu0
        %v1149 = vadd.f32 %v452, %v1148
        %v1150 = vpop.f32.mrb[0].mxu0
        %v1151 = vpop.f32.mrb[0].mxu0
        %v1152 = vadd.f32 %v452, %v1151
        %v1153 = vpop.f32.mrb[0].mxu0
        %1154 = vmatprep.mubr.bf16.mxu0 0
        %1155 = vmatmul.mubr.bf16.gmra.mrb[0].mxu0 %v559
        %v1156 = vpop.f32.mrb[0].mxu0
        %v1157 = vadd.f32 %v452, %v1156
        %v1158 = vpop.f32.mrb[0].mxu0
        %v1159 = vpop.f32.mrb[0].mxu0
        %v1160 = vadd.f32 %v452, %v1159
        %v1161 = vpop.f32.mrb[0].mxu0
        %1162 = vmatprep.mubr.bf16.mxu0 0
        %1163 = vmatmul.mubr.bf16.gmra.mrb[0].mxu0 %v562
        %v1164 = vpop.f32.mrb[0].mxu0
        %v1165 = vadd.f32 %v452, %v1164
        %v1166 = vpop.f32.mrb[0].mxu0
        %v1167 = vpop.f32.mrb[0].mxu0
        %v1168 = vadd.f32 %v452, %v1167
        %v1169 = vpop.f32.mrb[0].mxu0
        %1170 = vmatprep.mubr.bf16.mxu0 0
        %1171 = vmatmul.mubr.bf16.gmra.mrb[0].mxu0 %v565
        %v1172 = vpop.f32.mrb[0].mxu0
        %v1173 = vadd.f32 %v452, %v1172
        %v1174 = vpop.f32.mrb[0].mxu0
        %v1175 = vpop.f32.mrb[0].mxu0
        %v1176 = vadd.f32 %v452, %v1175
        %v1177 = vpop.f32.mrb[0].mxu0
        %1178 = vmatprep.mubr.bf16.mxu0 0
        %1179 = vmatmul.mubr.bf16.gmra.mrb[0].mxu0 %v568
        %v1180 = vpop.f32.mrb[0].mxu0
        %v1181 = vadd.f32 %v452, %v1180
        %v1182 = vpop.f32.mrb[0].mxu0
        %v1183 = vpop.f32.mrb[0].mxu0
        %v1184 = vadd.f32 %v452, %v1183
        %v1185 = vpop.f32.mrb[0].mxu0
        %1186 = vmatprep.mubr.bf16.mxu0 0
        %1187 = vmatmul.mubr.bf16.gmra.mrb[0].mxu0 %v571
        %v1188 = vpop.f32.mrb[0].mxu0
        %v1189 = vadd.f32 %v452, %v1188
        %v1190 = vpop.f32.mrb[0].mxu0
        %v1191 = vpop.f32.mrb[0].mxu0
        %v1192 = vadd.f32 %v452, %v1191
        %v1193 = vpop.f32.mrb[0].mxu0
        %1194 = vmatprep.mubr.bf16.mxu0 0
        %1195 = vmatmul.mubr.bf16.gmra.mrb[0].mxu0 %v574
        %v1196 = vpop.f32.mrb[0].mxu0
        %v1197 = vadd.f32 %v452, %v1196
        %v1198 = vpop.f32.mrb[0].mxu0
        %v1199 = vpop.f32.mrb[0].mxu0
        %v1200 = vadd.f32 %v452, %v1199
        %v1201 = vpop.f32.mrb[0].mxu0
        %1202 = vmatprep.mubr.bf16.mxu0 0
        %1203 = vmatmul.mubr.bf16.gmra.mrb[0].mxu0 %v577
        %v1204 = vpop.f32.mrb[0].mxu0
        %v1205 = vadd.f32 %v452, %v1204
        %v1206 = vpop.f32.mrb[0].mxu0
        %v1207 = vpop.f32.mrb[0].mxu0
        %v1208 = vadd.f32 %v452, %v1207
        %v1209 = vpop.f32.mrb[0].mxu0
        %1210 = vmatprep.mubr.bf16.mxu0 0
        %1211 = vmatmul.mubr.bf16.gmra.mrb[0].mxu0 %v580
        %v1212 = vpop.f32.mrb[0].mxu0
        %v1213 = vadd.f32 %v452, %v1212
        %v1214 = vpop.f32.mrb[0].mxu0
        %v1215 = vpop.f32.mrb[0].mxu0
        %v1216 = vadd.f32 %v452, %v1215
        %v1217 = vpop.f32.mrb[0].mxu0
        %1218 = vmatprep.mubr.bf16.mxu0 0
        %1219 = vmatmul.mubr.bf16.gmra.mrb[0].mxu0 %v583
        %v1220 = vpop.f32.mrb[0].mxu0
        %v1221 = vadd.f32 %v452, %v1220
        %v1222 = vpop.f32.mrb[0].mxu0
        %v1223 = vpop.f32.mrb[0].mxu0
        %v1224 = vadd.f32 %v452, %v1223
        %v1225 = vpop.f32.mrb[0].mxu0
        %1226 = vdwg.mxu0
        %v1227 = vadd.f32 %v620, %v622
        %v1228 = vadd.f32 %v624, %v626
        %v1229 = vadd.f32 %v630, %v632
        %v1230 = vadd.f32 %v634, %v636
        %v1231 = vadd.f32 %v640, %v642
        %v1232 = vadd.f32 %v644, %v646
        %v1233 = vadd.f32 %v650, %v652
        %v1234 = vadd.f32 %v654, %v656
        %v1235 = vadd.f32 %v660, %v662
        %v1236 = vadd.f32 %v664, %v666
        %v1237 = vadd.f32 %v670, %v672
        %v1238 = vadd.f32 %v674, %v676
        %v1239 = vadd.f32 %v680, %v682
        %v1240 = vadd.f32 %v684, %v686
        %v1241 = vadd.f32 %v690, %v692
        %v1242 = vadd.f32 %v694, %v696
        %v1243 = vadd.f32 %v700, %v702
        %v1244 = vadd.f32 %v704, %v706
        %v1245 = vadd.f32 %v710, %v712
        %v1246 = vadd.f32 %v714, %v716
        %v1247 = vadd.f32 %v720, %v722
        %v1248 = vadd.f32 %v724, %v726
        %v1249 = vadd.f32 %v730, %v732
        %v1250 = vadd.f32 %v734, %v736
        %v1251 = vadd.f32 %v740, %v742
        %v1252 = vadd.f32 %v744, %v746
        %v1253 = vadd.f32 %v750, %v752
        %v1254 = vadd.f32 %v754, %v756
        %v1255 = vadd.f32 %v760, %v762
        %v1256 = vadd.f32 %v764, %v766
        %v1257 = vadd.f32 %v770, %v772
        %v1258 = vadd.f32 %v774, %v776
        %v1259 = vadd.f32 %v780, %v782
        %v1260 = vadd.f32 %v784, %v786
        %v1261 = vadd.f32 %v790, %v792
        %v1262 = vadd.f32 %v794, %v796
        %v1263 = vadd.f32 %v800, %v802
        %v1264 = vadd.f32 %v804, %v806
        %v1265 = vadd.f32 %v810, %v812
        %v1266 = vadd.f32 %v814, %v816
        %v1267 = vadd.f32 %v820, %v822
        %v1268 = vadd.f32 %v824, %v826
        %v1269 = vadd.f32 %v830, %v832
        %v1270 = vadd.f32 %v834, %v836
        %v1271 = vadd.f32 %v840, %v842
        %v1272 = vadd.f32 %v844, %v846
        %v1273 = vadd.f32 %v850, %v852
        %v1274 = vadd.f32 %v854, %v856
        %v1275 = vadd.f32 %v860, %v862
        %v1276 = vadd.f32 %v864, %v866
        %v1277 = vadd.f32 %v870, %v872
        %v1278 = vadd.f32 %v874, %v876
        %v1279 = vadd.f32 %v880, %v882
        %v1280 = vadd.f32 %v884, %v886
        %v1281 = vadd.f32 %v890, %v892
        %v1282 = vadd.f32 %v894, %v896
        %v1283 = vadd.f32 %v900, %v902
        %v1284 = vadd.f32 %v904, %v906
        %v1285 = vadd.f32 %v910, %v912
        %v1286 = vadd.f32 %v914, %v916
        %v1287 = vadd.f32 %v920, %v922
        %v1288 = vadd.f32 %v924, %v926
        %v1289 = vadd.f32 %v930, %v932
        %v1290 = vadd.f32 %v934, %v936
        %v1291 = vmax.f32 %v1227, 0.0
        %v1292 = vmax.f32 %v1228, 0.0
        %v1293 = vmax.f32 %v1229, 0.0
        %v1294 = vmax.f32 %v1230, 0.0
        %v1295 = vmax.f32 %v1231, 0.0
        %v1296 = vmax.f32 %v1232, 0.0
        %v1297 = vmax.f32 %v1233, 0.0
        %v1298 = vmax.f32 %v1234, 0.0
        %v1299 = vmax.f32 %v1235, 0.0
        %v1300 = vmax.f32 %v1236, 0.0
        %v1301 = vmax.f32 %v1237, 0.0
        %v1302 = vmax.f32 %v1238, 0.0
        %v1303 = vmax.f32 %v1239, 0.0
        %v1304 = vmax.f32 %v1240, 0.0
        %v1305 = vmax.f32 %v1241, 0.0
        %v1306 = vmax.f32 %v1242, 0.0
        %v1307 = vmax.f32 %v1243, 0.0
        %v1308 = vmax.f32 %v1244, 0.0
        %v1309 = vmax.f32 %v1245, 0.0
        %v1310 = vmax.f32 %v1246, 0.0
        %v1311 = vmax.f32 %v1247, 0.0
        %v1312 = vmax.f32 %v1248, 0.0
        %v1313 = vmax.f32 %v1249, 0.0
        %v1314 = vmax.f32 %v1250, 0.0
        %v1315 = vmax.f32 %v1251, 0.0
        %v1316 = vmax.f32 %v1252, 0.0
        %v1317 = vmax.f32 %v1253, 0.0
        %v1318 = vmax.f32 %v1254, 0.0
        %v1319 = vmax.f32 %v1255, 0.0
        %v1320 = vmax.f32 %v1256, 0.0
        %v1321 = vmax.f32 %v1257, 0.0
        %v1322 = vmax.f32 %v1258, 0.0
        %v1323 = vmax.f32 %v1259, 0.0
        %v1324 = vmax.f32 %v1260, 0.0
        %v1325 = vmax.f32 %v1261, 0.0
        %v1326 = vmax.f32 %v1262, 0.0
        %v1327 = vmax.f32 %v1263, 0.0
        %v1328 = vmax.f32 %v1264, 0.0
        %v1329 = vmax.f32 %v1265, 0.0
        %v1330 = vmax.f32 %v1266, 0.0
        %v1331 = vmax.f32 %v1267, 0.0
        %v1332 = vmax.f32 %v1268, 0.0
        %v1333 = vmax.f32 %v1269, 0.0
        %v1334 = vmax.f32 %v1270, 0.0
        %v1335 = vmax.f32 %v1271, 0.0
        %v1336 = vmax.f32 %v1272, 0.0
        %v1337 = vmax.f32 %v1273, 0.0
        %v1338 = vmax.f32 %v1274, 0.0
        %v1339 = vmax.f32 %v1275, 0.0
        %v1340 = vmax.f32 %v1276, 0.0
        %v1341 = vmax.f32 %v1277, 0.0
        %v1342 = vmax.f32 %v1278, 0.0
        %v1343 = vmax.f32 %v1279, 0.0
        %v1344 = vmax.f32 %v1280, 0.0
        %v1345 = vmax.f32 %v1281, 0.0
        %v1346 = vmax.f32 %v1282, 0.0
        %v1347 = vmax.f32 %v1283, 0.0
        %v1348 = vmax.f32 %v1284, 0.0
        %v1349 = vmax.f32 %v1285, 0.0
        %v1350 = vmax.f32 %v1286, 0.0
        %v1351 = vmax.f32 %v1287, 0.0
        %v1352 = vmax.f32 %v1288, 0.0
        %v1353 = vmax.f32 %v1289, 0.0
        %v1354 = vmax.f32 %v1290, 0.0
        %v1355 = vpack.c.bf16 %v1292, %v1291
        %v1356 = vpack.c.bf16 %v1294, %v1293
        %v1357 = vpack.c.bf16 %v1296, %v1295
        %v1358 = vpack.c.bf16 %v1298, %v1297
        %v1359 = vpack.c.bf16 %v1300, %v1299
        %v1360 = vpack.c.bf16 %v1302, %v1301
        %v1361 = vpack.c.bf16 %v1304, %v1303
        %v1362 = vpack.c.bf16 %v1306, %v1305
        %v1363 = vpack.c.bf16 %v1308, %v1307
        %v1364 = vpack.c.bf16 %v1310, %v1309
        %v1365 = vpack.c.bf16 %v1312, %v1311
        %v1366 = vpack.c.bf16 %v1314, %v1313
        %v1367 = vpack.c.bf16 %v1316, %v1315
        %v1368 = vpack.c.bf16 %v1318, %v1317
        %v1369 = vpack.c.bf16 %v1320, %v1319
        %v1370 = vpack.c.bf16 %v1322, %v1321
        %v1371 = vpack.c.bf16 %v1324, %v1323
        %v1372 = vpack.c.bf16 %v1326, %v1325
        %v1373 = vpack.c.bf16 %v1328, %v1327
        %v1374 = vpack.c.bf16 %v1330, %v1329
        %v1375 = vpack.c.bf16 %v1332, %v1331
        %v1376 = vpack.c.bf16 %v1334, %v1333
        %v1377 = vpack.c.bf16 %v1336, %v1335
        %v1378 = vpack.c.bf16 %v1338, %v1337
        %v1379 = vpack.c.bf16 %v1340, %v1339
        %v1380 = vpack.c.bf16 %v1342, %v1341
        %v1381 = vpack.c.bf16 %v1344, %v1343
        %v1382 = vpack.c.bf16 %v1346, %v1345
        %v1383 = vpack.c.bf16 %v1348, %v1347
        %v1384 = vpack.c.bf16 %v1350, %v1349
        %v1385 = vpack.c.bf16 %v1352, %v1351
        %v1386 = vpack.c.bf16 %v1354, %v1353
        %v1387 = vld [vmem:[%s3] sm:$0xf]
        %v1388 = vld [vmem:[%s3 + $0x4] sm:$0xf]
        %v1389 = vld [vmem:[%s3 + $0x8] sm:$0xf]
        %v1390 = vld [vmem:[%s3 + $0xc] sm:$0xf]
        %v1391 = vld [vmem:[%s3 + $0x10] sm:$0xf]
        %v1392 = vld [vmem:[%s3 + $0x14] sm:$0xf]
        %v1393 = vld [vmem:[%s3 + $0x18] sm:$0xf]
        %v1394 = vld [vmem:[%s3 + $0x1c] sm:$0xf]
        %v1395 = vld [vmem:[%s3 + $0x20] sm:$0xf]
        %v1396 = vld [vmem:[%s3 + $0x24] sm:$0xf]
        %v1397 = vld [vmem:[%s3 + $0x28] sm:$0xf]
        %v1398 = vld [vmem:[%s3 + $0x2c] sm:$0xf]
        %v1399 = vld [vmem:[%s3 + $0x30] sm:$0xf]
        %v1400 = vld [vmem:[%s3 + $0x34] sm:$0xf]
        %v1401 = vld [vmem:[%s3 + $0x38] sm:$0xf]
        %v1402 = vld [vmem:[%s3 + $0x3c] sm:$0xf]
        %v1403 = vld [vmem:[%s4] sm:$0x1]
        %v1405 = vlaneseq
        %v1406 = vshrl.u32 %v1405, 7
        %v1407 = vsub.s32 0, %v1406
        %v1408 = vrot.slane %v1403, %v1407
        %v1426 = vunpack.c.l.b16 %v1387
        %v1427 = vunpack.c.l.b16 %v1388
        %v1428 = vunpack.c.l.b16 %v1389
        %v1429 = vunpack.c.l.b16 %v1390
        %v1430 = vunpack.c.l.b16 %v1391
        %v1431 = vunpack.c.l.b16 %v1392
        %v1432 = vunpack.c.l.b16 %v1393
        %v1433 = vunpack.c.l.b16 %v1394
        %v1434 = vunpack.c.l.b16 %v1395
        %v1435 = vunpack.c.l.b16 %v1396
        %v1436 = vunpack.c.l.b16 %v1397
        %v1437 = vunpack.c.l.b16 %v1398
        %v1438 = vunpack.c.l.b16 %v1399
        %v1439 = vunpack.c.l.b16 %v1400
        %v1440 = vunpack.c.l.b16 %v1401
        %v1441 = vunpack.c.l.b16 %v1402
        %v1442 = vpack.c.b16 %v1427, %v1426
        %v1443 = vpack.c.b16 %v1429, %v1428
        %v1444 = vpack.c.b16 %v1431, %v1430
        %v1445 = vpack.c.b16 %v1433, %v1432
        %v1446 = vpack.c.b16 %v1435, %v1434
        %v1447 = vpack.c.b16 %v1437, %v1436
        %v1448 = vpack.c.b16 %v1439, %v1438
        %v1449 = vpack.c.b16 %v1441, %v1440
        %1458 = vmatprep.subr.bf16.mxu0 0
        %1459 = vmatpush1.bf16.msra.mxu0 %v1442
        %1460 = vmatprep.subr.bf16.mxu0 0
        %1461 = vmatpush1.bf16.msra.mxu0 %v1443
        %1462 = vmatprep.subr.bf16.mxu0 0
        %1463 = vmatpush1.bf16.msra.mxu0 %v1444
        %1464 = vmatprep.subr.bf16.mxu0 0
        %1465 = vmatpush1.bf16.msra.mxu0 %v1445
        %1466 = vmatprep.subr.bf16.mxu0 0
        %1467 = vmatpush1.bf16.msra.mxu0 %v1446
        %1468 = vmatprep.subr.bf16.mxu0 0
        %1469 = vmatpush1.bf16.msra.mxu0 %v1447
        %1470 = vmatprep.subr.bf16.mxu0 0
        %1471 = vmatpush1.bf16.msra.mxu0 %v1448
        %1472 = vmatprep.subr.bf16.mxu0 0
        %1473 = vmatpush1.bf16.msra.mxu0 %v1449
        %1474 = vmatprep.subr.bf16.mxu0 0
        %1475 = vmatpush1.bf16.msra.mxu0 0
        %1476 = vmatprep.subr.bf16.mxu0 0
        %1477 = vmatpush1.bf16.msra.mxu0 0
        %1478 = vmatprep.subr.bf16.mxu0 0
        %1479 = vmatpush1.bf16.msra.mxu0 0
        %1480 = vmatprep.subr.bf16.mxu0 0
        %1481 = vmatpush1.bf16.msra.mxu0 0
        %1482 = vmatprep.subr.bf16.mxu0 0
        %1483 = vmatpush1.bf16.msra.mxu0 0
        %1484 = vmatprep.subr.bf16.mxu0 0
        %1485 = vmatpush1.bf16.msra.mxu0 0
        %1486 = vmatprep.subr.bf16.mxu0 0
        %1487 = vmatpush1.bf16.msra.mxu0 0
        %1488 = vmatprep.subr.bf16.mxu0 0
        %1489 = vmatpush1.bf16.msra.mxu0 0
        %1490 = vmatprep.mubr.bf16.mxu0 0
        %1491 = vmatmul.mubr.bf16.gmra.mrb[0].mxu0 %v1355
        %v1492 = vpop.f32.mrb[0].mxu0
        %v1493 = vadd.f32 %v1408, %v1492
        %v1494 = vpop.f32.mrb[0].mxu0
        %v1495 = vpop.f32.mrb[0].mxu0
        %v1496 = vadd.f32 %v1408, %v1495
        %v1497 = vpop.f32.mrb[0].mxu0
        %1498 = vmatprep.mubr.bf16.mxu0 0
        %1499 = vmatmul.mubr.bf16.gmra.mrb[0].mxu0 %v1356
        %v1500 = vpop.f32.mrb[0].mxu0
        %v1501 = vadd.f32 %v1408, %v1500
        %v1502 = vpop.f32.mrb[0].mxu0
        %v1503 = vpop.f32.mrb[0].mxu0
        %v1504 = vadd.f32 %v1408, %v1503
        %v1505 = vpop.f32.mrb[0].mxu0
        %1506 = vmatprep.mubr.bf16.mxu0 0
        %1507 = vmatmul.mubr.bf16.gmra.mrb[0].mxu0 %v1357
        %v1508 = vpop.f32.mrb[0].mxu0
        %v1509 = vadd.f32 %v1408, %v1508
        %v1510 = vpop.f32.mrb[0].mxu0
        %v1511 = vpop.f32.mrb[0].mxu0
        %v1512 = vadd.f32 %v1408, %v1511
        %v1513 = vpop.f32.mrb[0].mxu0
        %1514 = vmatprep.mubr.bf16.mxu0 0
        %1515 = vmatmul.mubr.bf16.gmra.mrb[0].mxu0 %v1358
        %v1516 = vpop.f32.mrb[0].mxu0
        %v1517 = vadd.f32 %v1408, %v1516
        %v1518 = vpop.f32.mrb[0].mxu0
        %v1519 = vpop.f32.mrb[0].mxu0
        %v1520 = vadd.f32 %v1408, %v1519
        %v1521 = vpop.f32.mrb[0].mxu0
        %1522 = vmatprep.mubr.bf16.mxu0 0
        %1523 = vmatmul.mubr.bf16.gmra.mrb[0].mxu0 %v1359
        %v1524 = vpop.f32.mrb[0].mxu0
        %v1525 = vadd.f32 %v1408, %v1524
        %v1526 = vpop.f32.mrb[0].mxu0
        %v1527 = vpop.f32.mrb[0].mxu0
        %v1528 = vadd.f32 %v1408, %v1527
        %v1529 = vpop.f32.mrb[0].mxu0
        %1530 = vmatprep.mubr.bf16.mxu0 0
        %1531 = vmatmul.mubr.bf16.gmra.mrb[0].mxu0 %v1360
        %v1532 = vpop.f32.mrb[0].mxu0
        %v1533 = vadd.f32 %v1408, %v1532
        %v1534 = vpop.f32.mrb[0].mxu0
        %v1535 = vpop.f32.mrb[0].mxu0
        %v1536 = vadd.f32 %v1408, %v1535
        %v1537 = vpop.f32.mrb[0].mxu0
        %1538 = vmatprep.mubr.bf16.mxu0 0
        %1539 = vmatmul.mubr.bf16.gmra.mrb[0].mxu0 %v1361
        %v1540 = vpop.f32.mrb[0].mxu0
        %v1541 = vadd.f32 %v1408, %v1540
        %v1542 = vpop.f32.mrb[0].mxu0
        %v1543 = vpop.f32.mrb[0].mxu0
        %v1544 = vadd.f32 %v1408, %v1543
        %v1545 = vpop.f32.mrb[0].mxu0
        %1546 = vmatprep.mubr.bf16.mxu0 0
        %1547 = vmatmul.mubr.bf16.gmra.mrb[0].mxu0 %v1362
        %v1548 = vpop.f32.mrb[0].mxu0
        %v1549 = vadd.f32 %v1408, %v1548
        %v1550 = vpop.f32.mrb[0].mxu0
        %v1551 = vpop.f32.mrb[0].mxu0
        %v1552 = vadd.f32 %v1408, %v1551
        %v1553 = vpop.f32.mrb[0].mxu0
        %1554 = vmatprep.mubr.bf16.mxu0 0
        %1555 = vmatmul.mubr.bf16.gmra.mrb[0].mxu0 %v1363
        %v1556 = vpop.f32.mrb[0].mxu0
        %v1557 = vadd.f32 %v1408, %v1556
        %v1558 = vpop.f32.mrb[0].mxu0
        %v1559 = vpop.f32.mrb[0].mxu0
        %v1560 = vadd.f32 %v1408, %v1559
        %v1561 = vpop.f32.mrb[0].mxu0
        %1562 = vmatprep.mubr.bf16.mxu0 0
        %1563 = vmatmul.mubr.bf16.gmra.mrb[0].mxu0 %v1364
        %v1564 = vpop.f32.mrb[0].mxu0
        %v1565 = vadd.f32 %v1408, %v1564
        %v1566 = vpop.f32.mrb[0].mxu0
        %v1567 = vpop.f32.mrb[0].mxu0
        %v1568 = vadd.f32 %v1408, %v1567
        %v1569 = vpop.f32.mrb[0].mxu0
        %1570 = vmatprep.mubr.bf16.mxu0 0
        %1571 = vmatmul.mubr.bf16.gmra.mrb[0].mxu0 %v1365
        %v1572 = vpop.f32.mrb[0].mxu0
        %v1573 = vadd.f32 %v1408, %v1572
        %v1574 = vpop.f32.mrb[0].mxu0
        %v1575 = vpop.f32.mrb[0].mxu0
        %v1576 = vadd.f32 %v1408, %v1575
        %v1577 = vpop.f32.mrb[0].mxu0
        %1578 = vmatprep.mubr.bf16.mxu0 0
        %1579 = vmatmul.mubr.bf16.gmra.mrb[0].mxu0 %v1366
        %v1580 = vpop.f32.mrb[0].mxu0
        %v1581 = vadd.f32 %v1408, %v1580
        %v1582 = vpop.f32.mrb[0].mxu0
        %v1583 = vpop.f32.mrb[0].mxu0
        %v1584 = vadd.f32 %v1408, %v1583
        %v1585 = vpop.f32.mrb[0].mxu0
        %1586 = vmatprep.mubr.bf16.mxu0 0
        %1587 = vmatmul.mubr.bf16.gmra.mrb[0].mxu0 %v1367
        %v1588 = vpop.f32.mrb[0].mxu0
        %v1589 = vadd.f32 %v1408, %v1588
        %v1590 = vpop.f32.mrb[0].mxu0
        %v1591 = vpop.f32.mrb[0].mxu0
        %v1592 = vadd.f32 %v1408, %v1591
        %v1593 = vpop.f32.mrb[0].mxu0
        %1594 = vmatprep.mubr.bf16.mxu0 0
        %1595 = vmatmul.mubr.bf16.gmra.mrb[0].mxu0 %v1368
        %v1596 = vpop.f32.mrb[0].mxu0
        %v1597 = vadd.f32 %v1408, %v1596
        %v1598 = vpop.f32.mrb[0].mxu0
        %v1599 = vpop.f32.mrb[0].mxu0
        %v1600 = vadd.f32 %v1408, %v1599
        %v1601 = vpop.f32.mrb[0].mxu0
        %1602 = vmatprep.mubr.bf16.mxu0 0
        %1603 = vmatmul.mubr.bf16.gmra.mrb[0].mxu0 %v1369
        %v1604 = vpop.f32.mrb[0].mxu0
        %v1605 = vadd.f32 %v1408, %v1604
        %v1606 = vpop.f32.mrb[0].mxu0
        %v1607 = vpop.f32.mrb[0].mxu0
        %v1608 = vadd.f32 %v1408, %v1607
        %v1609 = vpop.f32.mrb[0].mxu0
        %1610 = vmatprep.mubr.bf16.mxu0 0
        %1611 = vmatmul.mubr.bf16.gmra.mrb[0].mxu0 %v1370
        %v1612 = vpop.f32.mrb[0].mxu0
        %v1613 = vadd.f32 %v1408, %v1612
        %v1614 = vpop.f32.mrb[0].mxu0
        %v1615 = vpop.f32.mrb[0].mxu0
        %v1616 = vadd.f32 %v1408, %v1615
        %v1617 = vpop.f32.mrb[0].mxu0
        %1618 = vmatprep.mubr.bf16.mxu0 0
        %1619 = vmatmul.mubr.bf16.gmra.mrb[0].mxu0 %v1371
        %v1620 = vpop.f32.mrb[0].mxu0
        %v1621 = vadd.f32 %v1408, %v1620
        %v1622 = vpop.f32.mrb[0].mxu0
        %v1623 = vpop.f32.mrb[0].mxu0
        %v1624 = vadd.f32 %v1408, %v1623
        %v1625 = vpop.f32.mrb[0].mxu0
        %1626 = vmatprep.mubr.bf16.mxu0 0
        %1627 = vmatmul.mubr.bf16.gmra.mrb[0].mxu0 %v1372
        %v1628 = vpop.f32.mrb[0].mxu0
        %v1629 = vadd.f32 %v1408, %v1628
        %v1630 = vpop.f32.mrb[0].mxu0
        %v1631 = vpop.f32.mrb[0].mxu0
        %v1632 = vadd.f32 %v1408, %v1631
        %v1633 = vpop.f32.mrb[0].mxu0
        %1634 = vmatprep.mubr.bf16.mxu0 0
        %1635 = vmatmul.mubr.bf16.gmra.mrb[0].mxu0 %v1373
        %v1636 = vpop.f32.mrb[0].mxu0
        %v1637 = vadd.f32 %v1408, %v1636
        %v1638 = vpop.f32.mrb[0].mxu0
        %v1639 = vpop.f32.mrb[0].mxu0
        %v1640 = vadd.f32 %v1408, %v1639
        %v1641 = vpop.f32.mrb[0].mxu0
        %1642 = vmatprep.mubr.bf16.mxu0 0
        %1643 = vmatmul.mubr.bf16.gmra.mrb[0].mxu0 %v1374
        %v1644 = vpop.f32.mrb[0].mxu0
        %v1645 = vadd.f32 %v1408, %v1644
        %v1646 = vpop.f32.mrb[0].mxu0
        %v1647 = vpop.f32.mrb[0].mxu0
        %v1648 = vadd.f32 %v1408, %v1647
        %v1649 = vpop.f32.mrb[0].mxu0
        %1650 = vmatprep.mubr.bf16.mxu0 0
        %1651 = vmatmul.mubr.bf16.gmra.mrb[0].mxu0 %v1375
        %v1652 = vpop.f32.mrb[0].mxu0
        %v1653 = vadd.f32 %v1408, %v1652
        %v1654 = vpop.f32.mrb[0].mxu0
        %v1655 = vpop.f32.mrb[0].mxu0
        %v1656 = vadd.f32 %v1408, %v1655
        %v1657 = vpop.f32.mrb[0].mxu0
        %1658 = vmatprep.mubr.bf16.mxu0 0
        %1659 = vmatmul.mubr.bf16.gmra.mrb[0].mxu0 %v1376
        %v1660 = vpop.f32.mrb[0].mxu0
        %v1661 = vadd.f32 %v1408, %v1660
        %v1662 = vpop.f32.mrb[0].mxu0
        %v1663 = vpop.f32.mrb[0].mxu0
        %v1664 = vadd.f32 %v1408, %v1663
        %v1665 = vpop.f32.mrb[0].mxu0
        %1666 = vmatprep.mubr.bf16.mxu0 0
        %1667 = vmatmul.mubr.bf16.gmra.mrb[0].mxu0 %v1377
        %v1668 = vpop.f32.mrb[0].mxu0
        %v1669 = vadd.f32 %v1408, %v1668
        %v1670 = vpop.f32.mrb[0].mxu0
        %v1671 = vpop.f32.mrb[0].mxu0
        %v1672 = vadd.f32 %v1408, %v1671
        %v1673 = vpop.f32.mrb[0].mxu0
        %1674 = vmatprep.mubr.bf16.mxu0 0
        %1675 = vmatmul.mubr.bf16.gmra.mrb[0].mxu0 %v1378
        %v1676 = vpop.f32.mrb[0].mxu0
        %v1677 = vadd.f32 %v1408, %v1676
        %v1678 = vpop.f32.mrb[0].mxu0
        %v1679 = vpop.f32.mrb[0].mxu0
        %v1680 = vadd.f32 %v1408, %v1679
        %v1681 = vpop.f32.mrb[0].mxu0
        %1682 = vmatprep.mubr.bf16.mxu0 0
        %1683 = vmatmul.mubr.bf16.gmra.mrb[0].mxu0 %v1379
        %v1684 = vpop.f32.mrb[0].mxu0
        %v1685 = vadd.f32 %v1408, %v1684
        %v1686 = vpop.f32.mrb[0].mxu0
        %v1687 = vpop.f32.mrb[0].mxu0
        %v1688 = vadd.f32 %v1408, %v1687
        %v1689 = vpop.f32.mrb[0].mxu0
        %1690 = vmatprep.mubr.bf16.mxu0 0
        %1691 = vmatmul.mubr.bf16.gmra.mrb[0].mxu0 %v1380
        %v1692 = vpop.f32.mrb[0].mxu0
        %v1693 = vadd.f32 %v1408, %v1692
        %v1694 = vpop.f32.mrb[0].mxu0
        %v1695 = vpop.f32.mrb[0].mxu0
        %v1696 = vadd.f32 %v1408, %v1695
        %v1697 = vpop.f32.mrb[0].mxu0
        %1698 = vmatprep.mubr.bf16.mxu0 0
        %1699 = vmatmul.mubr.bf16.gmra.mrb[0].mxu0 %v1381
        %v1700 = vpop.f32.mrb[0].mxu0
        %v1701 = vadd.f32 %v1408, %v1700
        %v1702 = vpop.f32.mrb[0].mxu0
        %v1703 = vpop.f32.mrb[0].mxu0
        %v1704 = vadd.f32 %v1408, %v1703
        %v1705 = vpop.f32.mrb[0].mxu0
        %1706 = vmatprep.mubr.bf16.mxu0 0
        %1707 = vmatmul.mubr.bf16.gmra.mrb[0].mxu0 %v1382
        %v1708 = vpop.f32.mrb[0].mxu0
        %v1709 = vadd.f32 %v1408, %v1708
        %v1710 = vpop.f32.mrb[0].mxu0
        %v1711 = vpop.f32.mrb[0].mxu0
        %v1712 = vadd.f32 %v1408, %v1711
        %v1713 = vpop.f32.mrb[0].mxu0
        %1714 = vmatprep.mubr.bf16.mxu0 0
        %1715 = vmatmul.mubr.bf16.gmra.mrb[0].mxu0 %v1383
        %v1716 = vpop.f32.mrb[0].mxu0
        %v1717 = vadd.f32 %v1408, %v1716
        %v1718 = vpop.f32.mrb[0].mxu0
        %v1719 = vpop.f32.mrb[0].mxu0
        %v1720 = vadd.f32 %v1408, %v1719
        %v1721 = vpop.f32.mrb[0].mxu0
        %1722 = vmatprep.mubr.bf16.mxu0 0
        %1723 = vmatmul.mubr.bf16.gmra.mrb[0].mxu0 %v1384
        %v1724 = vpop.f32.mrb[0].mxu0
        %v1725 = vadd.f32 %v1408, %v1724
        %v1726 = vpop.f32.mrb[0].mxu0
        %v1727 = vpop.f32.mrb[0].mxu0
        %v1728 = vadd.f32 %v1408, %v1727
        %v1729 = vpop.f32.mrb[0].mxu0
        %1730 = vmatprep.mubr.bf16.mxu0 0
        %1731 = vmatmul.mubr.bf16.gmra.mrb[0].mxu0 %v1385
        %v1732 = vpop.f32.mrb[0].mxu0
        %v1733 = vadd.f32 %v1408, %v1732
        %v1734 = vpop.f32.mrb[0].mxu0
        %v1735 = vpop.f32.mrb[0].mxu0
        %v1736 = vadd.f32 %v1408, %v1735
        %v1737 = vpop.f32.mrb[0].mxu0
        %1738 = vmatprep.mubr.bf16.mxu0 0
        %1739 = vmatmul.mubr.bf16.gmra.mrb[0].mxu0 %v1386
        %v1740 = vpop.f32.mrb[0].mxu0
        %v1741 = vadd.f32 %v1408, %v1740
        %v1742 = vpop.f32.mrb[0].mxu0
        %v1743 = vpop.f32.mrb[0].mxu0
        %v1744 = vadd.f32 %v1408, %v1743
        %v1745 = vpop.f32.mrb[0].mxu0
        %1746 = vdwg.mxu0
        %v1747 = vmax.f32 %v1493, 0.0
        %v1748 = vmax.f32 %v1496, 0.0
        %v1749 = vmax.f32 %v1501, 0.0
        %v1750 = vmax.f32 %v1504, 0.0
        %v1751 = vmax.f32 %v1509, 0.0
        %v1752 = vmax.f32 %v1512, 0.0
        %v1753 = vmax.f32 %v1517, 0.0
        %v1754 = vmax.f32 %v1520, 0.0
        %v1755 = vmax.f32 %v1525, 0.0
        %v1756 = vmax.f32 %v1528, 0.0
        %v1757 = vmax.f32 %v1533, 0.0
        %v1758 = vmax.f32 %v1536, 0.0
        %v1759 = vmax.f32 %v1541, 0.0
        %v1760 = vmax.f32 %v1544, 0.0
        %v1761 = vmax.f32 %v1549, 0.0
        %v1762 = vmax.f32 %v1552, 0.0
        %v1763 = vmax.f32 %v1557, 0.0
        %v1764 = vmax.f32 %v1560, 0.0
        %v1765 = vmax.f32 %v1565, 0.0
        %v1766 = vmax.f32 %v1568, 0.0
        %v1767 = vmax.f32 %v1573, 0.0
        %v1768 = vmax.f32 %v1576, 0.0
        %v1769 = vmax.f32 %v1581, 0.0
        %v1770 = vmax.f32 %v1584, 0.0
        %v1771 = vmax.f32 %v1589, 0.0
        %v1772 = vmax.f32 %v1592, 0.0
        %v1773 = vmax.f32 %v1597, 0.0
        %v1774 = vmax.f32 %v1600, 0.0
        %v1775 = vmax.f32 %v1605, 0.0
        %v1776 = vmax.f32 %v1608, 0.0
        %v1777 = vmax.f32 %v1613, 0.0
        %v1778 = vmax.f32 %v1616, 0.0
        %v1779 = vmax.f32 %v1621, 0.0
        %v1780 = vmax.f32 %v1624, 0.0
        %v1781 = vmax.f32 %v1629, 0.0
        %v1782 = vmax.f32 %v1632, 0.0
        %v1783 = vmax.f32 %v1637, 0.0
        %v1784 = vmax.f32 %v1640, 0.0
        %v1785 = vmax.f32 %v1645, 0.0
        %v1786 = vmax.f32 %v1648, 0.0
        %v1787 = vmax.f32 %v1653, 0.0
        %v1788 = vmax.f32 %v1656, 0.0
        %v1789 = vmax.f32 %v1661, 0.0
        %v1790 = vmax.f32 %v1664, 0.0
        %v1791 = vmax.f32 %v1669, 0.0
        %v1792 = vmax.f32 %v1672, 0.0
        %v1793 = vmax.f32 %v1677, 0.0
        %v1794 = vmax.f32 %v1680, 0.0
        %v1795 = vmax.f32 %v1685, 0.0
        %v1796 = vmax.f32 %v1688, 0.0
        %v1797 = vmax.f32 %v1693, 0.0
        %v1798 = vmax.f32 %v1696, 0.0
        %v1799 = vmax.f32 %v1701, 0.0
        %v1800 = vmax.f32 %v1704, 0.0
        %v1801 = vmax.f32 %v1709, 0.0
        %v1802 = vmax.f32 %v1712, 0.0
        %v1803 = vmax.f32 %v1717, 0.0
        %v1804 = vmax.f32 %v1720, 0.0
        %v1805 = vmax.f32 %v1725, 0.0
        %v1806 = vmax.f32 %v1728, 0.0
        %v1807 = vmax.f32 %v1733, 0.0
        %v1808 = vmax.f32 %v1736, 0.0
        %v1809 = vmax.f32 %v1741, 0.0
        %v1810 = vmax.f32 %v1744, 0.0
        %v1811 = vpack.c.bf16 %v1748, %v1747
        %v1812 = vpack.c.bf16 %v1750, %v1749
        %v1813 = vpack.c.bf16 %v1752, %v1751
        %v1814 = vpack.c.bf16 %v1754, %v1753
        %v1815 = vpack.c.bf16 %v1756, %v1755
        %v1816 = vpack.c.bf16 %v1758, %v1757
        %v1817 = vpack.c.bf16 %v1760, %v1759
        %v1818 = vpack.c.bf16 %v1762, %v1761
        %v1819 = vpack.c.bf16 %v1764, %v1763
        %v1820 = vpack.c.bf16 %v1766, %v1765
        %v1821 = vpack.c.bf16 %v1768, %v1767
        %v1822 = vpack.c.bf16 %v1770, %v1769
        %v1823 = vpack.c.bf16 %v1772, %v1771
        %v1824 = vpack.c.bf16 %v1774, %v1773
        %v1825 = vpack.c.bf16 %v1776, %v1775
        %v1826 = vpack.c.bf16 %v1778, %v1777
        %v1827 = vpack.c.bf16 %v1780, %v1779
        %v1828 = vpack.c.bf16 %v1782, %v1781
        %v1829 = vpack.c.bf16 %v1784, %v1783
        %v1830 = vpack.c.bf16 %v1786, %v1785
        %v1831 = vpack.c.bf16 %v1788, %v1787
        %v1832 = vpack.c.bf16 %v1790, %v1789
        %v1833 = vpack.c.bf16 %v1792, %v1791
        %v1834 = vpack.c.bf16 %v1794, %v1793
        %v1835 = vpack.c.bf16 %v1796, %v1795
        %v1836 = vpack.c.bf16 %v1798, %v1797
        %v1837 = vpack.c.bf16 %v1800, %v1799
        %v1838 = vpack.c.bf16 %v1802, %v1801
        %v1839 = vpack.c.bf16 %v1804, %v1803
        %v1840 = vpack.c.bf16 %v1806, %v1805
        %v1841 = vpack.c.bf16 %v1808, %v1807
        %v1842 = vpack.c.bf16 %v1810, %v1809
        %v1843 = vld [vmem:[%s5] sm:$0xf]
        %v1844 = vld [vmem:[%s5 + $0x4] sm:$0xf]
        %v1845 = vld [vmem:[%s5 + $0x8] sm:$0xf]
        %v1846 = vld [vmem:[%s5 + $0xc] sm:$0xf]
        %v1847 = vld [vmem:[%s5 + $0x10] sm:$0xf]
        %v1848 = vld [vmem:[%s5 + $0x14] sm:$0xf]
        %v1849 = vld [vmem:[%s5 + $0x18] sm:$0xf]
        %v1850 = vld [vmem:[%s5 + $0x1c] sm:$0xf]
        %v1851 = vld [vmem:[%s5 + $0x20] sm:$0xf]
        %v1852 = vld [vmem:[%s5 + $0x24] sm:$0xf]
        %v1853 = vld [vmem:[%s5 + $0x28] sm:$0xf]
        %v1854 = vld [vmem:[%s5 + $0x2c] sm:$0xf]
        %v1855 = vld [vmem:[%s5 + $0x30] sm:$0xf]
        %v1856 = vld [vmem:[%s5 + $0x34] sm:$0xf]
        %v1857 = vld [vmem:[%s5 + $0x38] sm:$0xf]
        %v1858 = vld [vmem:[%s5 + $0x3c] sm:$0xf]
        %v1859 = vld [vmem:[%s6] sm:$0x1]
        %v1861 = vlaneseq
        %v1862 = vshrl.u32 %v1861, 7
        %v1863 = vsub.s32 0, %v1862
        %v1864 = vrot.slane %v1859, %v1863
        %v1882 = vunpack.c.l.b16 %v1843
        %v1883 = vunpack.c.l.b16 %v1844
        %v1884 = vunpack.c.l.b16 %v1845
        %v1885 = vunpack.c.l.b16 %v1846
        %v1886 = vunpack.c.l.b16 %v1847
        %v1887 = vunpack.c.l.b16 %v1848
        %v1888 = vunpack.c.l.b16 %v1849
        %v1889 = vunpack.c.l.b16 %v1850
        %v1890 = vunpack.c.l.b16 %v1851
        %v1891 = vunpack.c.l.b16 %v1852
        %v1892 = vunpack.c.l.b16 %v1853
        %v1893 = vunpack.c.l.b16 %v1854
        %v1894 = vunpack.c.l.b16 %v1855
        %v1895 = vunpack.c.l.b16 %v1856
        %v1896 = vunpack.c.l.b16 %v1857
        %v1897 = vunpack.c.l.b16 %v1858
        %v1898 = vpack.c.b16 %v1883, %v1882
        %v1899 = vpack.c.b16 %v1885, %v1884
        %v1900 = vpack.c.b16 %v1887, %v1886
        %v1901 = vpack.c.b16 %v1889, %v1888
        %v1902 = vpack.c.b16 %v1891, %v1890
        %v1903 = vpack.c.b16 %v1893, %v1892
        %v1904 = vpack.c.b16 %v1895, %v1894
        %v1905 = vpack.c.b16 %v1897, %v1896
        %1914 = vmatprep.subr.bf16.mxu0 0
        %1915 = vmatpush1.bf16.msra.mxu0 %v1898
        %1916 = vmatprep.subr.bf16.mxu0 0
        %1917 = vmatpush1.bf16.msra.mxu0 %v1899
        %1918 = vmatprep.subr.bf16.mxu0 0
        %1919 = vmatpush1.bf16.msra.mxu0 %v1900
        %1920 = vmatprep.subr.bf16.mxu0 0
        %1921 = vmatpush1.bf16.msra.mxu0 %v1901
        %1922 = vmatprep.subr.bf16.mxu0 0
        %1923 = vmatpush1.bf16.msra.mxu0 %v1902
        %1924 = vmatprep.subr.bf16.mxu0 0
        %1925 = vmatpush1.bf16.msra.mxu0 %v1903
        %1926 = vmatprep.subr.bf16.mxu0 0
        %1927 = vmatpush1.bf16.msra.mxu0 %v1904
        %1928 = vmatprep.subr.bf16.mxu0 0
        %1929 = vmatpush1.bf16.msra.mxu0 %v1905
        %1930 = vmatprep.subr.bf16.mxu0 0
        %1931 = vmatpush1.bf16.msra.mxu0 0
        %1932 = vmatprep.subr.bf16.mxu0 0
        %1933 = vmatpush1.bf16.msra.mxu0 0
        %1934 = vmatprep.subr.bf16.mxu0 0
        %1935 = vmatpush1.bf16.msra.mxu0 0
        %1936 = vmatprep.subr.bf16.mxu0 0
        %1937 = vmatpush1.bf16.msra.mxu0 0
        %1938 = vmatprep.subr.bf16.mxu0 0
        %1939 = vmatpush1.bf16.msra.mxu0 0
        %1940 = vmatprep.subr.bf16.mxu0 0
        %1941 = vmatpush1.bf16.msra.mxu0 0
        %1942 = vmatprep.subr.bf16.mxu0 0
        %1943 = vmatpush1.bf16.msra.mxu0 0
        %1944 = vmatprep.subr.bf16.mxu0 0
        %1945 = vmatpush1.bf16.msra.mxu0 0
        %1946 = vmatprep.mubr.bf16.mxu0 0
        %1947 = vmatmul.mubr.bf16.gmra.mrb[0].mxu0 %v1811
        %v1948 = vpop.f32.mrb[0].mxu0
        %v1949 = vadd.f32 %v1864, %v1948
        %v1950 = vpop.f32.mrb[0].mxu0
        %v1951 = vpop.f32.mrb[0].mxu0
        %v1952 = vadd.f32 %v1864, %v1951
        %v1953 = vpop.f32.mrb[0].mxu0
        %1954 = vmatprep.mubr.bf16.mxu0 0
        %1955 = vmatmul.mubr.bf16.gmra.mrb[0].mxu0 %v1812
        %v1956 = vpop.f32.mrb[0].mxu0
        %v1957 = vadd.f32 %v1864, %v1956
        %v1958 = vpop.f32.mrb[0].mxu0
        %v1959 = vpop.f32.mrb[0].mxu0
        %v1960 = vadd.f32 %v1864, %v1959
        %v1961 = vpop.f32.mrb[0].mxu0
        %1962 = vmatprep.mubr.bf16.mxu0 0
        %1963 = vmatmul.mubr.bf16.gmra.mrb[0].mxu0 %v1813
        %v1964 = vpop.f32.mrb[0].mxu0
        %v1965 = vadd.f32 %v1864, %v1964
        %v1966 = vpop.f32.mrb[0].mxu0
        %v1967 = vpop.f32.mrb[0].mxu0
        %v1968 = vadd.f32 %v1864, %v1967
        %v1969 = vpop.f32.mrb[0].mxu0
        %1970 = vmatprep.mubr.bf16.mxu0 0
        %1971 = vmatmul.mubr.bf16.gmra.mrb[0].mxu0 %v1814
        %v1972 = vpop.f32.mrb[0].mxu0
        %v1973 = vadd.f32 %v1864, %v1972
        %v1974 = vpop.f32.mrb[0].mxu0
        %v1975 = vpop.f32.mrb[0].mxu0
        %v1976 = vadd.f32 %v1864, %v1975
        %v1977 = vpop.f32.mrb[0].mxu0
        %1978 = vmatprep.mubr.bf16.mxu0 0
        %1979 = vmatmul.mubr.bf16.gmra.mrb[0].mxu0 %v1815
        %v1980 = vpop.f32.mrb[0].mxu0
        %v1981 = vadd.f32 %v1864, %v1980
        %v1982 = vpop.f32.mrb[0].mxu0
        %v1983 = vpop.f32.mrb[0].mxu0
        %v1984 = vadd.f32 %v1864, %v1983
        %v1985 = vpop.f32.mrb[0].mxu0
        %1986 = vmatprep.mubr.bf16.mxu0 0
        %1987 = vmatmul.mubr.bf16.gmra.mrb[0].mxu0 %v1816
        %v1988 = vpop.f32.mrb[0].mxu0
        %v1989 = vadd.f32 %v1864, %v1988
        %v1990 = vpop.f32.mrb[0].mxu0
        %v1991 = vpop.f32.mrb[0].mxu0
        %v1992 = vadd.f32 %v1864, %v1991
        %v1993 = vpop.f32.mrb[0].mxu0
        %1994 = vmatprep.mubr.bf16.mxu0 0
        %1995 = vmatmul.mubr.bf16.gmra.mrb[0].mxu0 %v1817
        %v1996 = vpop.f32.mrb[0].mxu0
        %v1997 = vadd.f32 %v1864, %v1996
        %v1998 = vpop.f32.mrb[0].mxu0
        %v1999 = vpop.f32.mrb[0].mxu0
        %v2000 = vadd.f32 %v1864, %v1999
        %v2001 = vpop.f32.mrb[0].mxu0
        %2002 = vmatprep.mubr.bf16.mxu0 0
        %2003 = vmatmul.mubr.bf16.gmra.mrb[0].mxu0 %v1818
        %v2004 = vpop.f32.mrb[0].mxu0
        %v2005 = vadd.f32 %v1864, %v2004
        %v2006 = vpop.f32.mrb[0].mxu0
        %v2007 = vpop.f32.mrb[0].mxu0
        %v2008 = vadd.f32 %v1864, %v2007
        %v2009 = vpop.f32.mrb[0].mxu0
        %2010 = vmatprep.mubr.bf16.mxu0 0
        %2011 = vmatmul.mubr.bf16.gmra.mrb[0].mxu0 %v1819
        %v2012 = vpop.f32.mrb[0].mxu0
        %v2013 = vadd.f32 %v1864, %v2012
        %v2014 = vpop.f32.mrb[0].mxu0
        %v2015 = vpop.f32.mrb[0].mxu0
        %v2016 = vadd.f32 %v1864, %v2015
        %v2017 = vpop.f32.mrb[0].mxu0
        %2018 = vmatprep.mubr.bf16.mxu0 0
        %2019 = vmatmul.mubr.bf16.gmra.mrb[0].mxu0 %v1820
        %v2020 = vpop.f32.mrb[0].mxu0
        %v2021 = vadd.f32 %v1864, %v2020
        %v2022 = vpop.f32.mrb[0].mxu0
        %v2023 = vpop.f32.mrb[0].mxu0
        %v2024 = vadd.f32 %v1864, %v2023
        %v2025 = vpop.f32.mrb[0].mxu0
        %2026 = vmatprep.mubr.bf16.mxu0 0
        %2027 = vmatmul.mubr.bf16.gmra.mrb[0].mxu0 %v1821
        %v2028 = vpop.f32.mrb[0].mxu0
        %v2029 = vadd.f32 %v1864, %v2028
        %v2030 = vpop.f32.mrb[0].mxu0
        %v2031 = vpop.f32.mrb[0].mxu0
        %v2032 = vadd.f32 %v1864, %v2031
        %v2033 = vpop.f32.mrb[0].mxu0
        %2034 = vmatprep.mubr.bf16.mxu0 0
        %2035 = vmatmul.mubr.bf16.gmra.mrb[0].mxu0 %v1822
        %v2036 = vpop.f32.mrb[0].mxu0
        %v2037 = vadd.f32 %v1864, %v2036
        %v2038 = vpop.f32.mrb[0].mxu0
        %v2039 = vpop.f32.mrb[0].mxu0
        %v2040 = vadd.f32 %v1864, %v2039
        %v2041 = vpop.f32.mrb[0].mxu0
        %2042 = vmatprep.mubr.bf16.mxu0 0
        %2043 = vmatmul.mubr.bf16.gmra.mrb[0].mxu0 %v1823
        %v2044 = vpop.f32.mrb[0].mxu0
        %v2045 = vadd.f32 %v1864, %v2044
        %v2046 = vpop.f32.mrb[0].mxu0
        %v2047 = vpop.f32.mrb[0].mxu0
        %v2048 = vadd.f32 %v1864, %v2047
        %v2049 = vpop.f32.mrb[0].mxu0
        %2050 = vmatprep.mubr.bf16.mxu0 0
        %2051 = vmatmul.mubr.bf16.gmra.mrb[0].mxu0 %v1824
        %v2052 = vpop.f32.mrb[0].mxu0
        %v2053 = vadd.f32 %v1864, %v2052
        %v2054 = vpop.f32.mrb[0].mxu0
        %v2055 = vpop.f32.mrb[0].mxu0
        %v2056 = vadd.f32 %v1864, %v2055
        %v2057 = vpop.f32.mrb[0].mxu0
        %2058 = vmatprep.mubr.bf16.mxu0 0
        %2059 = vmatmul.mubr.bf16.gmra.mrb[0].mxu0 %v1825
        %v2060 = vpop.f32.mrb[0].mxu0
        %v2061 = vadd.f32 %v1864, %v2060
        %v2062 = vpop.f32.mrb[0].mxu0
        %v2063 = vpop.f32.mrb[0].mxu0
        %v2064 = vadd.f32 %v1864, %v2063
        %v2065 = vpop.f32.mrb[0].mxu0
        %2066 = vmatprep.mubr.bf16.mxu0 0
        %2067 = vmatmul.mubr.bf16.gmra.mrb[0].mxu0 %v1826
        %v2068 = vpop.f32.mrb[0].mxu0
        %v2069 = vadd.f32 %v1864, %v2068
        %v2070 = vpop.f32.mrb[0].mxu0
        %v2071 = vpop.f32.mrb[0].mxu0
        %v2072 = vadd.f32 %v1864, %v2071
        %v2073 = vpop.f32.mrb[0].mxu0
        %2074 = vmatprep.mubr.bf16.mxu0 0
        %2075 = vmatmul.mubr.bf16.gmra.mrb[0].mxu0 %v1827
        %v2076 = vpop.f32.mrb[0].mxu0
        %v2077 = vadd.f32 %v1864, %v2076
        %v2078 = vpop.f32.mrb[0].mxu0
        %v2079 = vpop.f32.mrb[0].mxu0
        %v2080 = vadd.f32 %v1864, %v2079
        %v2081 = vpop.f32.mrb[0].mxu0
        %2082 = vmatprep.mubr.bf16.mxu0 0
        %2083 = vmatmul.mubr.bf16.gmra.mrb[0].mxu0 %v1828
        %v2084 = vpop.f32.mrb[0].mxu0
        %v2085 = vadd.f32 %v1864, %v2084
        %v2086 = vpop.f32.mrb[0].mxu0
        %v2087 = vpop.f32.mrb[0].mxu0
        %v2088 = vadd.f32 %v1864, %v2087
        %v2089 = vpop.f32.mrb[0].mxu0
        %2090 = vmatprep.mubr.bf16.mxu0 0
        %2091 = vmatmul.mubr.bf16.gmra.mrb[0].mxu0 %v1829
        %v2092 = vpop.f32.mrb[0].mxu0
        %v2093 = vadd.f32 %v1864, %v2092
        %v2094 = vpop.f32.mrb[0].mxu0
        %v2095 = vpop.f32.mrb[0].mxu0
        %v2096 = vadd.f32 %v1864, %v2095
        %v2097 = vpop.f32.mrb[0].mxu0
        %2098 = vmatprep.mubr.bf16.mxu0 0
        %2099 = vmatmul.mubr.bf16.gmra.mrb[0].mxu0 %v1830
        %v2100 = vpop.f32.mrb[0].mxu0
        %v2101 = vadd.f32 %v1864, %v2100
        %v2102 = vpop.f32.mrb[0].mxu0
        %v2103 = vpop.f32.mrb[0].mxu0
        %v2104 = vadd.f32 %v1864, %v2103
        %v2105 = vpop.f32.mrb[0].mxu0
        %2106 = vmatprep.mubr.bf16.mxu0 0
        %2107 = vmatmul.mubr.bf16.gmra.mrb[0].mxu0 %v1831
        %v2108 = vpop.f32.mrb[0].mxu0
        %v2109 = vadd.f32 %v1864, %v2108
        %v2110 = vpop.f32.mrb[0].mxu0
        %v2111 = vpop.f32.mrb[0].mxu0
        %v2112 = vadd.f32 %v1864, %v2111
        %v2113 = vpop.f32.mrb[0].mxu0
        %2114 = vmatprep.mubr.bf16.mxu0 0
        %2115 = vmatmul.mubr.bf16.gmra.mrb[0].mxu0 %v1832
        %v2116 = vpop.f32.mrb[0].mxu0
        %v2117 = vadd.f32 %v1864, %v2116
        %v2118 = vpop.f32.mrb[0].mxu0
        %v2119 = vpop.f32.mrb[0].mxu0
        %v2120 = vadd.f32 %v1864, %v2119
        %v2121 = vpop.f32.mrb[0].mxu0
        %2122 = vmatprep.mubr.bf16.mxu0 0
        %2123 = vmatmul.mubr.bf16.gmra.mrb[0].mxu0 %v1833
        %v2124 = vpop.f32.mrb[0].mxu0
        %v2125 = vadd.f32 %v1864, %v2124
        %v2126 = vpop.f32.mrb[0].mxu0
        %v2127 = vpop.f32.mrb[0].mxu0
        %v2128 = vadd.f32 %v1864, %v2127
        %v2129 = vpop.f32.mrb[0].mxu0
        %2130 = vmatprep.mubr.bf16.mxu0 0
        %2131 = vmatmul.mubr.bf16.gmra.mrb[0].mxu0 %v1834
        %v2132 = vpop.f32.mrb[0].mxu0
        %v2133 = vadd.f32 %v1864, %v2132
        %v2134 = vpop.f32.mrb[0].mxu0
        %v2135 = vpop.f32.mrb[0].mxu0
        %v2136 = vadd.f32 %v1864, %v2135
        %v2137 = vpop.f32.mrb[0].mxu0
        %2138 = vmatprep.mubr.bf16.mxu0 0
        %2139 = vmatmul.mubr.bf16.gmra.mrb[0].mxu0 %v1835
        %v2140 = vpop.f32.mrb[0].mxu0
        %v2141 = vadd.f32 %v1864, %v2140
        %v2142 = vpop.f32.mrb[0].mxu0
        %v2143 = vpop.f32.mrb[0].mxu0
        %v2144 = vadd.f32 %v1864, %v2143
        %v2145 = vpop.f32.mrb[0].mxu0
        %2146 = vmatprep.mubr.bf16.mxu0 0
        %2147 = vmatmul.mubr.bf16.gmra.mrb[0].mxu0 %v1836
        %v2148 = vpop.f32.mrb[0].mxu0
        %v2149 = vadd.f32 %v1864, %v2148
        %v2150 = vpop.f32.mrb[0].mxu0
        %v2151 = vpop.f32.mrb[0].mxu0
        %v2152 = vadd.f32 %v1864, %v2151
        %v2153 = vpop.f32.mrb[0].mxu0
        %2154 = vmatprep.mubr.bf16.mxu0 0
        %2155 = vmatmul.mubr.bf16.gmra.mrb[0].mxu0 %v1837
        %v2156 = vpop.f32.mrb[0].mxu0
        %v2157 = vadd.f32 %v1864, %v2156
        %v2158 = vpop.f32.mrb[0].mxu0
        %v2159 = vpop.f32.mrb[0].mxu0
        %v2160 = vadd.f32 %v1864, %v2159
        %v2161 = vpop.f32.mrb[0].mxu0
        %2162 = vmatprep.mubr.bf16.mxu0 0
        %2163 = vmatmul.mubr.bf16.gmra.mrb[0].mxu0 %v1838
        %v2164 = vpop.f32.mrb[0].mxu0
        %v2165 = vadd.f32 %v1864, %v2164
        %v2166 = vpop.f32.mrb[0].mxu0
        %v2167 = vpop.f32.mrb[0].mxu0
        %v2168 = vadd.f32 %v1864, %v2167
        %v2169 = vpop.f32.mrb[0].mxu0
        %2170 = vmatprep.mubr.bf16.mxu0 0
        %2171 = vmatmul.mubr.bf16.gmra.mrb[0].mxu0 %v1839
        %v2172 = vpop.f32.mrb[0].mxu0
        %v2173 = vadd.f32 %v1864, %v2172
        %v2174 = vpop.f32.mrb[0].mxu0
        %v2175 = vpop.f32.mrb[0].mxu0
        %v2176 = vadd.f32 %v1864, %v2175
        %v2177 = vpop.f32.mrb[0].mxu0
        %2178 = vmatprep.mubr.bf16.mxu0 0
        %2179 = vmatmul.mubr.bf16.gmra.mrb[0].mxu0 %v1840
        %v2180 = vpop.f32.mrb[0].mxu0
        %v2181 = vadd.f32 %v1864, %v2180
        %v2182 = vpop.f32.mrb[0].mxu0
        %v2183 = vpop.f32.mrb[0].mxu0
        %v2184 = vadd.f32 %v1864, %v2183
        %v2185 = vpop.f32.mrb[0].mxu0
        %2186 = vmatprep.mubr.bf16.mxu0 0
        %2187 = vmatmul.mubr.bf16.gmra.mrb[0].mxu0 %v1841
        %v2188 = vpop.f32.mrb[0].mxu0
        %v2189 = vadd.f32 %v1864, %v2188
        %v2190 = vpop.f32.mrb[0].mxu0
        %v2191 = vpop.f32.mrb[0].mxu0
        %v2192 = vadd.f32 %v1864, %v2191
        %v2193 = vpop.f32.mrb[0].mxu0
        %2194 = vmatprep.mubr.bf16.mxu0 0
        %2195 = vmatmul.mubr.bf16.gmra.mrb[0].mxu0 %v1842
        %v2196 = vpop.f32.mrb[0].mxu0
        %v2197 = vadd.f32 %v1864, %v2196
        %v2198 = vpop.f32.mrb[0].mxu0
        %v2199 = vpop.f32.mrb[0].mxu0
        %v2200 = vadd.f32 %v1864, %v2199
        %v2201 = vpop.f32.mrb[0].mxu0
        %2202 = vdwg.mxu0
        %v2203 = vadd.f32 %v1227, %v1949
        %v2204 = vadd.f32 %v1228, %v1952
        %v2205 = vadd.f32 %v1229, %v1957
        %v2206 = vadd.f32 %v1230, %v1960
        %v2207 = vadd.f32 %v1231, %v1965
        %v2208 = vadd.f32 %v1232, %v1968
        %v2209 = vadd.f32 %v1233, %v1973
        %v2210 = vadd.f32 %v1234, %v1976
        %v2211 = vadd.f32 %v1235, %v1981
        %v2212 = vadd.f32 %v1236, %v1984
        %v2213 = vadd.f32 %v1237, %v1989
        %v2214 = vadd.f32 %v1238, %v1992
        %v2215 = vadd.f32 %v1239, %v1997
        %v2216 = vadd.f32 %v1240, %v2000
        %v2217 = vadd.f32 %v1241, %v2005
        %v2218 = vadd.f32 %v1242, %v2008
        %v2219 = vadd.f32 %v1243, %v2013
        %v2220 = vadd.f32 %v1244, %v2016
        %v2221 = vadd.f32 %v1245, %v2021
        %v2222 = vadd.f32 %v1246, %v2024
        %v2223 = vadd.f32 %v1247, %v2029
        %v2224 = vadd.f32 %v1248, %v2032
        %v2225 = vadd.f32 %v1249, %v2037
        %v2226 = vadd.f32 %v1250, %v2040
        %v2227 = vadd.f32 %v1251, %v2045
        %v2228 = vadd.f32 %v1252, %v2048
        %v2229 = vadd.f32 %v1253, %v2053
        %v2230 = vadd.f32 %v1254, %v2056
        %v2231 = vadd.f32 %v1255, %v2061
        %v2232 = vadd.f32 %v1256, %v2064
        %v2233 = vadd.f32 %v1257, %v2069
        %v2234 = vadd.f32 %v1258, %v2072
        %v2235 = vadd.f32 %v1259, %v2077
        %v2236 = vadd.f32 %v1260, %v2080
        %v2237 = vadd.f32 %v1261, %v2085
        %v2238 = vadd.f32 %v1262, %v2088
        %v2239 = vadd.f32 %v1263, %v2093
        %v2240 = vadd.f32 %v1264, %v2096
        %v2241 = vadd.f32 %v1265, %v2101
        %v2242 = vadd.f32 %v1266, %v2104
        %v2243 = vadd.f32 %v1267, %v2109
        %v2244 = vadd.f32 %v1268, %v2112
        %v2245 = vadd.f32 %v1269, %v2117
        %v2246 = vadd.f32 %v1270, %v2120
        %v2247 = vadd.f32 %v1271, %v2125
        %v2248 = vadd.f32 %v1272, %v2128
        %v2249 = vadd.f32 %v1273, %v2133
        %v2250 = vadd.f32 %v1274, %v2136
        %v2251 = vadd.f32 %v1275, %v2141
        %v2252 = vadd.f32 %v1276, %v2144
        %v2253 = vadd.f32 %v1277, %v2149
        %v2254 = vadd.f32 %v1278, %v2152
        %v2255 = vadd.f32 %v1279, %v2157
        %v2256 = vadd.f32 %v1280, %v2160
        %v2257 = vadd.f32 %v1281, %v2165
        %v2258 = vadd.f32 %v1282, %v2168
        %v2259 = vadd.f32 %v1283, %v2173
        %v2260 = vadd.f32 %v1284, %v2176
        %v2261 = vadd.f32 %v1285, %v2181
        %v2262 = vadd.f32 %v1286, %v2184
        %v2263 = vadd.f32 %v1287, %v2189
        %v2264 = vadd.f32 %v1288, %v2192
        %v2265 = vadd.f32 %v1289, %v2197
        %v2266 = vadd.f32 %v1290, %v2200
        %v2267 = vadd.f32 %v2203, %v973
        %v2268 = vadd.f32 %v2204, %v976
        %v2269 = vadd.f32 %v2205, %v981
        %v2270 = vadd.f32 %v2206, %v984
        %v2271 = vadd.f32 %v2207, %v989
        %v2272 = vadd.f32 %v2208, %v992
        %v2273 = vadd.f32 %v2209, %v997
        %v2274 = vadd.f32 %v2210, %v1000
        %v2275 = vadd.f32 %v2211, %v1005
        %v2276 = vadd.f32 %v2212, %v1008
        %v2277 = vadd.f32 %v2213, %v1013
        %v2278 = vadd.f32 %v2214, %v1016
        %v2279 = vadd.f32 %v2215, %v1021
        %v2280 = vadd.f32 %v2216, %v1024
        %v2281 = vadd.f32 %v2217, %v1029
        %v2282 = vadd.f32 %v2218, %v1032
        %v2283 = vadd.f32 %v2219, %v1037
        %v2284 = vadd.f32 %v2220, %v1040
        %v2285 = vadd.f32 %v2221, %v1045
        %v2286 = vadd.f32 %v2222, %v1048
        %v2287 = vadd.f32 %v2223, %v1053
        %v2288 = vadd.f32 %v2224, %v1056
        %v2289 = vadd.f32 %v2225, %v1061
        %v2290 = vadd.f32 %v2226, %v1064
        %v2291 = vadd.f32 %v2227, %v1069
        %v2292 = vadd.f32 %v2228, %v1072
        %v2293 = vadd.f32 %v2229, %v1077
        %v2294 = vadd.f32 %v2230, %v1080
        %v2295 = vadd.f32 %v2231, %v1085
        %v2296 = vadd.f32 %v2232, %v1088
        %v2297 = vadd.f32 %v2233, %v1093
        %v2298 = vadd.f32 %v2234, %v1096
        %v2299 = vadd.f32 %v2235, %v1101
        %v2300 = vadd.f32 %v2236, %v1104
        %v2301 = vadd.f32 %v2237, %v1109
        %v2302 = vadd.f32 %v2238, %v1112
        %v2303 = vadd.f32 %v2239, %v1117
        %v2304 = vadd.f32 %v2240, %v1120
        %v2305 = vadd.f32 %v2241, %v1125
        %v2306 = vadd.f32 %v2242, %v1128
        %v2307 = vadd.f32 %v2243, %v1133
        %v2308 = vadd.f32 %v2244, %v1136
        %v2309 = vadd.f32 %v2245, %v1141
        %v2310 = vadd.f32 %v2246, %v1144
        %v2311 = vadd.f32 %v2247, %v1149
        %v2312 = vadd.f32 %v2248, %v1152
        %v2313 = vadd.f32 %v2249, %v1157
        %v2314 = vadd.f32 %v2250, %v1160
        %v2315 = vadd.f32 %v2251, %v1165
        %v2316 = vadd.f32 %v2252, %v1168
        %v2317 = vadd.f32 %v2253, %v1173
        %v2318 = vadd.f32 %v2254, %v1176
        %v2319 = vadd.f32 %v2255, %v1181
        %v2320 = vadd.f32 %v2256, %v1184
        %v2321 = vadd.f32 %v2257, %v1189
        %v2322 = vadd.f32 %v2258, %v1192
        %v2323 = vadd.f32 %v2259, %v1197
        %v2324 = vadd.f32 %v2260, %v1200
        %v2325 = vadd.f32 %v2261, %v1205
        %v2326 = vadd.f32 %v2262, %v1208
        %v2327 = vadd.f32 %v2263, %v1213
        %v2328 = vadd.f32 %v2264, %v1216
        %v2329 = vadd.f32 %v2265, %v1221
        %v2330 = vadd.f32 %v2266, %v1224
        %v2331 = vmax.f32 %v2267, 0.0
        %v2332 = vmax.f32 %v2268, 0.0
        %v2333 = vmax.f32 %v2269, 0.0
        %v2334 = vmax.f32 %v2270, 0.0
        %v2335 = vmax.f32 %v2271, 0.0
        %v2336 = vmax.f32 %v2272, 0.0
        %v2337 = vmax.f32 %v2273, 0.0
        %v2338 = vmax.f32 %v2274, 0.0
        %v2339 = vmax.f32 %v2275, 0.0
        %v2340 = vmax.f32 %v2276, 0.0
        %v2341 = vmax.f32 %v2277, 0.0
        %v2342 = vmax.f32 %v2278, 0.0
        %v2343 = vmax.f32 %v2279, 0.0
        %v2344 = vmax.f32 %v2280, 0.0
        %v2345 = vmax.f32 %v2281, 0.0
        %v2346 = vmax.f32 %v2282, 0.0
        %v2347 = vmax.f32 %v2283, 0.0
        %v2348 = vmax.f32 %v2284, 0.0
        %v2349 = vmax.f32 %v2285, 0.0
        %v2350 = vmax.f32 %v2286, 0.0
        %v2351 = vmax.f32 %v2287, 0.0
        %v2352 = vmax.f32 %v2288, 0.0
        %v2353 = vmax.f32 %v2289, 0.0
        %v2354 = vmax.f32 %v2290, 0.0
        %v2355 = vmax.f32 %v2291, 0.0
        %v2356 = vmax.f32 %v2292, 0.0
        %v2357 = vmax.f32 %v2293, 0.0
        %v2358 = vmax.f32 %v2294, 0.0
        %v2359 = vmax.f32 %v2295, 0.0
        %v2360 = vmax.f32 %v2296, 0.0
        %v2361 = vmax.f32 %v2297, 0.0
        %v2362 = vmax.f32 %v2298, 0.0
        %v2363 = vmax.f32 %v2299, 0.0
        %v2364 = vmax.f32 %v2300, 0.0
        %v2365 = vmax.f32 %v2301, 0.0
        %v2366 = vmax.f32 %v2302, 0.0
        %v2367 = vmax.f32 %v2303, 0.0
        %v2368 = vmax.f32 %v2304, 0.0
        %v2369 = vmax.f32 %v2305, 0.0
        %v2370 = vmax.f32 %v2306, 0.0
        %v2371 = vmax.f32 %v2307, 0.0
        %v2372 = vmax.f32 %v2308, 0.0
        %v2373 = vmax.f32 %v2309, 0.0
        %v2374 = vmax.f32 %v2310, 0.0
        %v2375 = vmax.f32 %v2311, 0.0
        %v2376 = vmax.f32 %v2312, 0.0
        %v2377 = vmax.f32 %v2313, 0.0
        %v2378 = vmax.f32 %v2314, 0.0
        %v2379 = vmax.f32 %v2315, 0.0
        %v2380 = vmax.f32 %v2316, 0.0
        %v2381 = vmax.f32 %v2317, 0.0
        %v2382 = vmax.f32 %v2318, 0.0
        %v2383 = vmax.f32 %v2319, 0.0
        %v2384 = vmax.f32 %v2320, 0.0
        %v2385 = vmax.f32 %v2321, 0.0
        %v2386 = vmax.f32 %v2322, 0.0
        %v2387 = vmax.f32 %v2323, 0.0
        %v2388 = vmax.f32 %v2324, 0.0
        %v2389 = vmax.f32 %v2325, 0.0
        %v2390 = vmax.f32 %v2326, 0.0
        %v2391 = vmax.f32 %v2327, 0.0
        %v2392 = vmax.f32 %v2328, 0.0
        %v2393 = vmax.f32 %v2329, 0.0
        %v2394 = vmax.f32 %v2330, 0.0
        %v2395 = vpack.c.bf16 %v2332, %v2331
        %v2396 = vpack.c.bf16 %v2334, %v2333
        %v2397 = vpack.c.bf16 %v2336, %v2335
        %v2398 = vpack.c.bf16 %v2338, %v2337
        %v2399 = vpack.c.bf16 %v2340, %v2339
        %v2400 = vpack.c.bf16 %v2342, %v2341
        %v2401 = vpack.c.bf16 %v2344, %v2343
        %v2402 = vpack.c.bf16 %v2346, %v2345
        %v2403 = vpack.c.bf16 %v2348, %v2347
        %v2404 = vpack.c.bf16 %v2350, %v2349
        %v2405 = vpack.c.bf16 %v2352, %v2351
        %v2406 = vpack.c.bf16 %v2354, %v2353
        %v2407 = vpack.c.bf16 %v2356, %v2355
        %v2408 = vpack.c.bf16 %v2358, %v2357
        %v2409 = vpack.c.bf16 %v2360, %v2359
        %v2410 = vpack.c.bf16 %v2362, %v2361
        %v2411 = vpack.c.bf16 %v2364, %v2363
        %v2412 = vpack.c.bf16 %v2366, %v2365
        %v2413 = vpack.c.bf16 %v2368, %v2367
        %v2414 = vpack.c.bf16 %v2370, %v2369
        %v2415 = vpack.c.bf16 %v2372, %v2371
        %v2416 = vpack.c.bf16 %v2374, %v2373
        %v2417 = vpack.c.bf16 %v2376, %v2375
        %v2418 = vpack.c.bf16 %v2378, %v2377
        %v2419 = vpack.c.bf16 %v2380, %v2379
        %v2420 = vpack.c.bf16 %v2382, %v2381
        %v2421 = vpack.c.bf16 %v2384, %v2383
        %v2422 = vpack.c.bf16 %v2386, %v2385
        %v2423 = vpack.c.bf16 %v2388, %v2387
        %v2424 = vpack.c.bf16 %v2390, %v2389
        %v2425 = vpack.c.bf16 %v2392, %v2391
        %v2426 = vpack.c.bf16 %v2394, %v2393
        %s2427 = scalar_lea.vmem %s3, 64
        %v2428 = vld [vmem:[%s2427] sm:$0xf]
        %v2429 = vld [vmem:[%s2427 + $0x4] sm:$0xf]
        %v2430 = vld [vmem:[%s2427 + $0x8] sm:$0xf]
        %v2431 = vld [vmem:[%s2427 + $0xc] sm:$0xf]
        %v2432 = vld [vmem:[%s2427 + $0x10] sm:$0xf]
        %v2433 = vld [vmem:[%s2427 + $0x14] sm:$0xf]
        %v2434 = vld [vmem:[%s2427 + $0x18] sm:$0xf]
        %v2435 = vld [vmem:[%s2427 + $0x1c] sm:$0xf]
        %v2436 = vld [vmem:[%s2427 + $0x20] sm:$0xf]
        %v2437 = vld [vmem:[%s2427 + $0x24] sm:$0xf]
        %v2438 = vld [vmem:[%s2427 + $0x28] sm:$0xf]
        %v2439 = vld [vmem:[%s2427 + $0x2c] sm:$0xf]
        %v2440 = vld [vmem:[%s2427 + $0x30] sm:$0xf]
        %v2441 = vld [vmem:[%s2427 + $0x34] sm:$0xf]
        %v2442 = vld [vmem:[%s2427 + $0x38] sm:$0xf]
        %v2443 = vld [vmem:[%s2427 + $0x3c] sm:$0xf]
        %s2444 = scalar_lea.vmem %s4, 1
        %v2445 = vld [vmem:[%s2444] sm:$0x1]
        %v2447 = vlaneseq
        %v2448 = vshrl.u32 %v2447, 7
        %v2449 = vsub.s32 0, %v2448
        %v2450 = vrot.slane %v2445, %v2449
        %v2468 = vunpack.c.l.b16 %v2428
        %v2469 = vunpack.c.l.b16 %v2429
        %v2470 = vunpack.c.l.b16 %v2430
        %v2471 = vunpack.c.l.b16 %v2431
        %v2472 = vunpack.c.l.b16 %v2432
        %v2473 = vunpack.c.l.b16 %v2433
        %v2474 = vunpack.c.l.b16 %v2434
        %v2475 = vunpack.c.l.b16 %v2435
        %v2476 = vunpack.c.l.b16 %v2436
        %v2477 = vunpack.c.l.b16 %v2437
        %v2478 = vunpack.c.l.b16 %v2438
        %v2479 = vunpack.c.l.b16 %v2439
        %v2480 = vunpack.c.l.b16 %v2440
        %v2481 = vunpack.c.l.b16 %v2441
        %v2482 = vunpack.c.l.b16 %v2442
        %v2483 = vunpack.c.l.b16 %v2443
        %v2484 = vpack.c.b16 %v2469, %v2468
        %v2485 = vpack.c.b16 %v2471, %v2470
        %v2486 = vpack.c.b16 %v2473, %v2472
        %v2487 = vpack.c.b16 %v2475, %v2474
        %v2488 = vpack.c.b16 %v2477, %v2476
        %v2489 = vpack.c.b16 %v2479, %v2478
        %v2490 = vpack.c.b16 %v2481, %v2480
        %v2491 = vpack.c.b16 %v2483, %v2482
        %2500 = vmatprep.subr.bf16.mxu0 0
        %2501 = vmatpush1.bf16.msra.mxu0 %v2484
        %2502 = vmatprep.subr.bf16.mxu0 0
        %2503 = vmatpush1.bf16.msra.mxu0 %v2485
        %2504 = vmatprep.subr.bf16.mxu0 0
        %2505 = vmatpush1.bf16.msra.mxu0 %v2486
        %2506 = vmatprep.subr.bf16.mxu0 0
        %2507 = vmatpush1.bf16.msra.mxu0 %v2487
        %2508 = vmatprep.subr.bf16.mxu0 0
        %2509 = vmatpush1.bf16.msra.mxu0 %v2488
        %2510 = vmatprep.subr.bf16.mxu0 0
        %2511 = vmatpush1.bf16.msra.mxu0 %v2489
        %2512 = vmatprep.subr.bf16.mxu0 0
        %2513 = vmatpush1.bf16.msra.mxu0 %v2490
        %2514 = vmatprep.subr.bf16.mxu0 0
        %2515 = vmatpush1.bf16.msra.mxu0 %v2491
        %2516 = vmatprep.subr.bf16.mxu0 0
        %2517 = vmatpush1.bf16.msra.mxu0 0
        %2518 = vmatprep.subr.bf16.mxu0 0
        %2519 = vmatpush1.bf16.msra.mxu0 0
        %2520 = vmatprep.subr.bf16.mxu0 0
        %2521 = vmatpush1.bf16.msra.mxu0 0
        %2522 = vmatprep.subr.bf16.mxu0 0
        %2523 = vmatpush1.bf16.msra.mxu0 0
        %2524 = vmatprep.subr.bf16.mxu0 0
        %2525 = vmatpush1.bf16.msra.mxu0 0
        %2526 = vmatprep.subr.bf16.mxu0 0
        %2527 = vmatpush1.bf16.msra.mxu0 0
        %2528 = vmatprep.subr.bf16.mxu0 0
        %2529 = vmatpush1.bf16.msra.mxu0 0
        %2530 = vmatprep.subr.bf16.mxu0 0
        %2531 = vmatpush1.bf16.msra.mxu0 0
        %2532 = vmatprep.mubr.bf16.mxu0 0
        %2533 = vmatmul.mubr.bf16.gmra.mrb[0].mxu0 %v2395
        %v2534 = vpop.f32.mrb[0].mxu0
        %v2535 = vadd.f32 %v2450, %v2534
        %v2536 = vpop.f32.mrb[0].mxu0
        %v2537 = vpop.f32.mrb[0].mxu0
        %v2538 = vadd.f32 %v2450, %v2537
        %v2539 = vpop.f32.mrb[0].mxu0
        %2540 = vmatprep.mubr.bf16.mxu0 0
        %2541 = vmatmul.mubr.bf16.gmra.mrb[0].mxu0 %v2396
        %v2542 = vpop.f32.mrb[0].mxu0
        %v2543 = vadd.f32 %v2450, %v2542
        %v2544 = vpop.f32.mrb[0].mxu0
        %v2545 = vpop.f32.mrb[0].mxu0
        %v2546 = vadd.f32 %v2450, %v2545
        %v2547 = vpop.f32.mrb[0].mxu0
        %2548 = vmatprep.mubr.bf16.mxu0 0
        %2549 = vmatmul.mubr.bf16.gmra.mrb[0].mxu0 %v2397
        %v2550 = vpop.f32.mrb[0].mxu0
        %v2551 = vadd.f32 %v2450, %v2550
        %v2552 = vpop.f32.mrb[0].mxu0
        %v2553 = vpop.f32.mrb[0].mxu0
        %v2554 = vadd.f32 %v2450, %v2553
        %v2555 = vpop.f32.mrb[0].mxu0
        %2556 = vmatprep.mubr.bf16.mxu0 0
        %2557 = vmatmul.mubr.bf16.gmra.mrb[0].mxu0 %v2398
        %v2558 = vpop.f32.mrb[0].mxu0
        %v2559 = vadd.f32 %v2450, %v2558
        %v2560 = vpop.f32.mrb[0].mxu0
        %v2561 = vpop.f32.mrb[0].mxu0
        %v2562 = vadd.f32 %v2450, %v2561
        %v2563 = vpop.f32.mrb[0].mxu0
        %2564 = vmatprep.mubr.bf16.mxu0 0
        %2565 = vmatmul.mubr.bf16.gmra.mrb[0].mxu0 %v2399
        %v2566 = vpop.f32.mrb[0].mxu0
        %v2567 = vadd.f32 %v2450, %v2566
        %v2568 = vpop.f32.mrb[0].mxu0
        %v2569 = vpop.f32.mrb[0].mxu0
        %v2570 = vadd.f32 %v2450, %v2569
        %v2571 = vpop.f32.mrb[0].mxu0
        %2572 = vmatprep.mubr.bf16.mxu0 0
        %2573 = vmatmul.mubr.bf16.gmra.mrb[0].mxu0 %v2400
        %v2574 = vpop.f32.mrb[0].mxu0
        %v2575 = vadd.f32 %v2450, %v2574
        %v2576 = vpop.f32.mrb[0].mxu0
        %v2577 = vpop.f32.mrb[0].mxu0
        %v2578 = vadd.f32 %v2450, %v2577
        %v2579 = vpop.f32.mrb[0].mxu0
        %2580 = vmatprep.mubr.bf16.mxu0 0
        %2581 = vmatmul.mubr.bf16.gmra.mrb[0].mxu0 %v2401
        %v2582 = vpop.f32.mrb[0].mxu0
        %v2583 = vadd.f32 %v2450, %v2582
        %v2584 = vpop.f32.mrb[0].mxu0
        %v2585 = vpop.f32.mrb[0].mxu0
        %v2586 = vadd.f32 %v2450, %v2585
        %v2587 = vpop.f32.mrb[0].mxu0
        %2588 = vmatprep.mubr.bf16.mxu0 0
        %2589 = vmatmul.mubr.bf16.gmra.mrb[0].mxu0 %v2402
        %v2590 = vpop.f32.mrb[0].mxu0
        %v2591 = vadd.f32 %v2450, %v2590
        %v2592 = vpop.f32.mrb[0].mxu0
        %v2593 = vpop.f32.mrb[0].mxu0
        %v2594 = vadd.f32 %v2450, %v2593
        %v2595 = vpop.f32.mrb[0].mxu0
        %2596 = vmatprep.mubr.bf16.mxu0 0
        %2597 = vmatmul.mubr.bf16.gmra.mrb[0].mxu0 %v2403
        %v2598 = vpop.f32.mrb[0].mxu0
        %v2599 = vadd.f32 %v2450, %v2598
        %v2600 = vpop.f32.mrb[0].mxu0
        %v2601 = vpop.f32.mrb[0].mxu0
        %v2602 = vadd.f32 %v2450, %v2601
        %v2603 = vpop.f32.mrb[0].mxu0
        %2604 = vmatprep.mubr.bf16.mxu0 0
        %2605 = vmatmul.mubr.bf16.gmra.mrb[0].mxu0 %v2404
        %v2606 = vpop.f32.mrb[0].mxu0
        %v2607 = vadd.f32 %v2450, %v2606
        %v2608 = vpop.f32.mrb[0].mxu0
        %v2609 = vpop.f32.mrb[0].mxu0
        %v2610 = vadd.f32 %v2450, %v2609
        %v2611 = vpop.f32.mrb[0].mxu0
        %2612 = vmatprep.mubr.bf16.mxu0 0
        %2613 = vmatmul.mubr.bf16.gmra.mrb[0].mxu0 %v2405
        %v2614 = vpop.f32.mrb[0].mxu0
        %v2615 = vadd.f32 %v2450, %v2614
        %v2616 = vpop.f32.mrb[0].mxu0
        %v2617 = vpop.f32.mrb[0].mxu0
        %v2618 = vadd.f32 %v2450, %v2617
        %v2619 = vpop.f32.mrb[0].mxu0
        %2620 = vmatprep.mubr.bf16.mxu0 0
        %2621 = vmatmul.mubr.bf16.gmra.mrb[0].mxu0 %v2406
        %v2622 = vpop.f32.mrb[0].mxu0
        %v2623 = vadd.f32 %v2450, %v2622
        %v2624 = vpop.f32.mrb[0].mxu0
        %v2625 = vpop.f32.mrb[0].mxu0
        %v2626 = vadd.f32 %v2450, %v2625
        %v2627 = vpop.f32.mrb[0].mxu0
        %2628 = vmatprep.mubr.bf16.mxu0 0
        %2629 = vmatmul.mubr.bf16.gmra.mrb[0].mxu0 %v2407
        %v2630 = vpop.f32.mrb[0].mxu0
        %v2631 = vadd.f32 %v2450, %v2630
        %v2632 = vpop.f32.mrb[0].mxu0
        %v2633 = vpop.f32.mrb[0].mxu0
        %v2634 = vadd.f32 %v2450, %v2633
        %v2635 = vpop.f32.mrb[0].mxu0
        %2636 = vmatprep.mubr.bf16.mxu0 0
        %2637 = vmatmul.mubr.bf16.gmra.mrb[0].mxu0 %v2408
        %v2638 = vpop.f32.mrb[0].mxu0
        %v2639 = vadd.f32 %v2450, %v2638
        %v2640 = vpop.f32.mrb[0].mxu0
        %v2641 = vpop.f32.mrb[0].mxu0
        %v2642 = vadd.f32 %v2450, %v2641
        %v2643 = vpop.f32.mrb[0].mxu0
        %2644 = vmatprep.mubr.bf16.mxu0 0
        %2645 = vmatmul.mubr.bf16.gmra.mrb[0].mxu0 %v2409
        %v2646 = vpop.f32.mrb[0].mxu0
        %v2647 = vadd.f32 %v2450, %v2646
        %v2648 = vpop.f32.mrb[0].mxu0
        %v2649 = vpop.f32.mrb[0].mxu0
        %v2650 = vadd.f32 %v2450, %v2649
        %v2651 = vpop.f32.mrb[0].mxu0
        %2652 = vmatprep.mubr.bf16.mxu0 0
        %2653 = vmatmul.mubr.bf16.gmra.mrb[0].mxu0 %v2410
        %v2654 = vpop.f32.mrb[0].mxu0
        %v2655 = vadd.f32 %v2450, %v2654
        %v2656 = vpop.f32.mrb[0].mxu0
        %v2657 = vpop.f32.mrb[0].mxu0
        %v2658 = vadd.f32 %v2450, %v2657
        %v2659 = vpop.f32.mrb[0].mxu0
        %2660 = vmatprep.mubr.bf16.mxu0 0
        %2661 = vmatmul.mubr.bf16.gmra.mrb[0].mxu0 %v2411
        %v2662 = vpop.f32.mrb[0].mxu0
        %v2663 = vadd.f32 %v2450, %v2662
        %v2664 = vpop.f32.mrb[0].mxu0
        %v2665 = vpop.f32.mrb[0].mxu0
        %v2666 = vadd.f32 %v2450, %v2665
        %v2667 = vpop.f32.mrb[0].mxu0
        %2668 = vmatprep.mubr.bf16.mxu0 0
        %2669 = vmatmul.mubr.bf16.gmra.mrb[0].mxu0 %v2412
        %v2670 = vpop.f32.mrb[0].mxu0
        %v2671 = vadd.f32 %v2450, %v2670
        %v2672 = vpop.f32.mrb[0].mxu0
        %v2673 = vpop.f32.mrb[0].mxu0
        %v2674 = vadd.f32 %v2450, %v2673
        %v2675 = vpop.f32.mrb[0].mxu0
        %2676 = vmatprep.mubr.bf16.mxu0 0
        %2677 = vmatmul.mubr.bf16.gmra.mrb[0].mxu0 %v2413
        %v2678 = vpop.f32.mrb[0].mxu0
        %v2679 = vadd.f32 %v2450, %v2678
        %v2680 = vpop.f32.mrb[0].mxu0
        %v2681 = vpop.f32.mrb[0].mxu0
        %v2682 = vadd.f32 %v2450, %v2681
        %v2683 = vpop.f32.mrb[0].mxu0
        %2684 = vmatprep.mubr.bf16.mxu0 0
        %2685 = vmatmul.mubr.bf16.gmra.mrb[0].mxu0 %v2414
        %v2686 = vpop.f32.mrb[0].mxu0
        %v2687 = vadd.f32 %v2450, %v2686
        %v2688 = vpop.f32.mrb[0].mxu0
        %v2689 = vpop.f32.mrb[0].mxu0
        %v2690 = vadd.f32 %v2450, %v2689
        %v2691 = vpop.f32.mrb[0].mxu0
        %2692 = vmatprep.mubr.bf16.mxu0 0
        %2693 = vmatmul.mubr.bf16.gmra.mrb[0].mxu0 %v2415
        %v2694 = vpop.f32.mrb[0].mxu0
        %v2695 = vadd.f32 %v2450, %v2694
        %v2696 = vpop.f32.mrb[0].mxu0
        %v2697 = vpop.f32.mrb[0].mxu0
        %v2698 = vadd.f32 %v2450, %v2697
        %v2699 = vpop.f32.mrb[0].mxu0
        %2700 = vmatprep.mubr.bf16.mxu0 0
        %2701 = vmatmul.mubr.bf16.gmra.mrb[0].mxu0 %v2416
        %v2702 = vpop.f32.mrb[0].mxu0
        %v2703 = vadd.f32 %v2450, %v2702
        %v2704 = vpop.f32.mrb[0].mxu0
        %v2705 = vpop.f32.mrb[0].mxu0
        %v2706 = vadd.f32 %v2450, %v2705
        %v2707 = vpop.f32.mrb[0].mxu0
        %2708 = vmatprep.mubr.bf16.mxu0 0
        %2709 = vmatmul.mubr.bf16.gmra.mrb[0].mxu0 %v2417
        %v2710 = vpop.f32.mrb[0].mxu0
        %v2711 = vadd.f32 %v2450, %v2710
        %v2712 = vpop.f32.mrb[0].mxu0
        %v2713 = vpop.f32.mrb[0].mxu0
        %v2714 = vadd.f32 %v2450, %v2713
        %v2715 = vpop.f32.mrb[0].mxu0
        %2716 = vmatprep.mubr.bf16.mxu0 0
        %2717 = vmatmul.mubr.bf16.gmra.mrb[0].mxu0 %v2418
        %v2718 = vpop.f32.mrb[0].mxu0
        %v2719 = vadd.f32 %v2450, %v2718
        %v2720 = vpop.f32.mrb[0].mxu0
        %v2721 = vpop.f32.mrb[0].mxu0
        %v2722 = vadd.f32 %v2450, %v2721
        %v2723 = vpop.f32.mrb[0].mxu0
        %2724 = vmatprep.mubr.bf16.mxu0 0
        %2725 = vmatmul.mubr.bf16.gmra.mrb[0].mxu0 %v2419
        %v2726 = vpop.f32.mrb[0].mxu0
        %v2727 = vadd.f32 %v2450, %v2726
        %v2728 = vpop.f32.mrb[0].mxu0
        %v2729 = vpop.f32.mrb[0].mxu0
        %v2730 = vadd.f32 %v2450, %v2729
        %v2731 = vpop.f32.mrb[0].mxu0
        %2732 = vmatprep.mubr.bf16.mxu0 0
        %2733 = vmatmul.mubr.bf16.gmra.mrb[0].mxu0 %v2420
        %v2734 = vpop.f32.mrb[0].mxu0
        %v2735 = vadd.f32 %v2450, %v2734
        %v2736 = vpop.f32.mrb[0].mxu0
        %v2737 = vpop.f32.mrb[0].mxu0
        %v2738 = vadd.f32 %v2450, %v2737
        %v2739 = vpop.f32.mrb[0].mxu0
        %2740 = vmatprep.mubr.bf16.mxu0 0
        %2741 = vmatmul.mubr.bf16.gmra.mrb[0].mxu0 %v2421
        %v2742 = vpop.f32.mrb[0].mxu0
        %v2743 = vadd.f32 %v2450, %v2742
        %v2744 = vpop.f32.mrb[0].mxu0
        %v2745 = vpop.f32.mrb[0].mxu0
        %v2746 = vadd.f32 %v2450, %v2745
        %v2747 = vpop.f32.mrb[0].mxu0
        %2748 = vmatprep.mubr.bf16.mxu0 0
        %2749 = vmatmul.mubr.bf16.gmra.mrb[0].mxu0 %v2422
        %v2750 = vpop.f32.mrb[0].mxu0
        %v2751 = vadd.f32 %v2450, %v2750
        %v2752 = vpop.f32.mrb[0].mxu0
        %v2753 = vpop.f32.mrb[0].mxu0
        %v2754 = vadd.f32 %v2450, %v2753
        %v2755 = vpop.f32.mrb[0].mxu0
        %2756 = vmatprep.mubr.bf16.mxu0 0
        %2757 = vmatmul.mubr.bf16.gmra.mrb[0].mxu0 %v2423
        %v2758 = vpop.f32.mrb[0].mxu0
        %v2759 = vadd.f32 %v2450, %v2758
        %v2760 = vpop.f32.mrb[0].mxu0
        %v2761 = vpop.f32.mrb[0].mxu0
        %v2762 = vadd.f32 %v2450, %v2761
        %v2763 = vpop.f32.mrb[0].mxu0
        %2764 = vmatprep.mubr.bf16.mxu0 0
        %2765 = vmatmul.mubr.bf16.gmra.mrb[0].mxu0 %v2424
        %v2766 = vpop.f32.mrb[0].mxu0
        %v2767 = vadd.f32 %v2450, %v2766
        %v2768 = vpop.f32.mrb[0].mxu0
        %v2769 = vpop.f32.mrb[0].mxu0
        %v2770 = vadd.f32 %v2450, %v2769
        %v2771 = vpop.f32.mrb[0].mxu0
        %2772 = vmatprep.mubr.bf16.mxu0 0
        %2773 = vmatmul.mubr.bf16.gmra.mrb[0].mxu0 %v2425
        %v2774 = vpop.f32.mrb[0].mxu0
        %v2775 = vadd.f32 %v2450, %v2774
        %v2776 = vpop.f32.mrb[0].mxu0
        %v2777 = vpop.f32.mrb[0].mxu0
        %v2778 = vadd.f32 %v2450, %v2777
        %v2779 = vpop.f32.mrb[0].mxu0
        %2780 = vmatprep.mubr.bf16.mxu0 0
        %2781 = vmatmul.mubr.bf16.gmra.mrb[0].mxu0 %v2426
        %v2782 = vpop.f32.mrb[0].mxu0
        %v2783 = vadd.f32 %v2450, %v2782
        %v2784 = vpop.f32.mrb[0].mxu0
        %v2785 = vpop.f32.mrb[0].mxu0
        %v2786 = vadd.f32 %v2450, %v2785
        %v2787 = vpop.f32.mrb[0].mxu0
        %2788 = vdwg.mxu0
        %v2789 = vmax.f32 %v2535, 0.0
        %v2790 = vmax.f32 %v2538, 0.0
        %v2791 = vmax.f32 %v2543, 0.0
        %v2792 = vmax.f32 %v2546, 0.0
        %v2793 = vmax.f32 %v2551, 0.0
        %v2794 = vmax.f32 %v2554, 0.0
        %v2795 = vmax.f32 %v2559, 0.0
        %v2796 = vmax.f32 %v2562, 0.0
        %v2797 = vmax.f32 %v2567, 0.0
        %v2798 = vmax.f32 %v2570, 0.0
        %v2799 = vmax.f32 %v2575, 0.0
        %v2800 = vmax.f32 %v2578, 0.0
        %v2801 = vmax.f32 %v2583, 0.0
        %v2802 = vmax.f32 %v2586, 0.0
        %v2803 = vmax.f32 %v2591, 0.0
        %v2804 = vmax.f32 %v2594, 0.0
        %v2805 = vmax.f32 %v2599, 0.0
        %v2806 = vmax.f32 %v2602, 0.0
        %v2807 = vmax.f32 %v2607, 0.0
        %v2808 = vmax.f32 %v2610, 0.0
        %v2809 = vmax.f32 %v2615, 0.0
        %v2810 = vmax.f32 %v2618, 0.0
        %v2811 = vmax.f32 %v2623, 0.0
        %v2812 = vmax.f32 %v2626, 0.0
        %v2813 = vmax.f32 %v2631, 0.0
        %v2814 = vmax.f32 %v2634, 0.0
        %v2815 = vmax.f32 %v2639, 0.0
        %v2816 = vmax.f32 %v2642, 0.0
        %v2817 = vmax.f32 %v2647, 0.0
        %v2818 = vmax.f32 %v2650, 0.0
        %v2819 = vmax.f32 %v2655, 0.0
        %v2820 = vmax.f32 %v2658, 0.0
        %v2821 = vmax.f32 %v2663, 0.0
        %v2822 = vmax.f32 %v2666, 0.0
        %v2823 = vmax.f32 %v2671, 0.0
        %v2824 = vmax.f32 %v2674, 0.0
        %v2825 = vmax.f32 %v2679, 0.0
        %v2826 = vmax.f32 %v2682, 0.0
        %v2827 = vmax.f32 %v2687, 0.0
        %v2828 = vmax.f32 %v2690, 0.0
        %v2829 = vmax.f32 %v2695, 0.0
        %v2830 = vmax.f32 %v2698, 0.0
        %v2831 = vmax.f32 %v2703, 0.0
        %v2832 = vmax.f32 %v2706, 0.0
        %v2833 = vmax.f32 %v2711, 0.0
        %v2834 = vmax.f32 %v2714, 0.0
        %v2835 = vmax.f32 %v2719, 0.0
        %v2836 = vmax.f32 %v2722, 0.0
        %v2837 = vmax.f32 %v2727, 0.0
        %v2838 = vmax.f32 %v2730, 0.0
        %v2839 = vmax.f32 %v2735, 0.0
        %v2840 = vmax.f32 %v2738, 0.0
        %v2841 = vmax.f32 %v2743, 0.0
        %v2842 = vmax.f32 %v2746, 0.0
        %v2843 = vmax.f32 %v2751, 0.0
        %v2844 = vmax.f32 %v2754, 0.0
        %v2845 = vmax.f32 %v2759, 0.0
        %v2846 = vmax.f32 %v2762, 0.0
        %v2847 = vmax.f32 %v2767, 0.0
        %v2848 = vmax.f32 %v2770, 0.0
        %v2849 = vmax.f32 %v2775, 0.0
        %v2850 = vmax.f32 %v2778, 0.0
        %v2851 = vmax.f32 %v2783, 0.0
        %v2852 = vmax.f32 %v2786, 0.0
        %v2853 = vpack.c.bf16 %v2790, %v2789
        %v2854 = vpack.c.bf16 %v2792, %v2791
        %v2855 = vpack.c.bf16 %v2794, %v2793
        %v2856 = vpack.c.bf16 %v2796, %v2795
        %v2857 = vpack.c.bf16 %v2798, %v2797
        %v2858 = vpack.c.bf16 %v2800, %v2799
        %v2859 = vpack.c.bf16 %v2802, %v2801
        %v2860 = vpack.c.bf16 %v2804, %v2803
        %v2861 = vpack.c.bf16 %v2806, %v2805
        %v2862 = vpack.c.bf16 %v2808, %v2807
        %v2863 = vpack.c.bf16 %v2810, %v2809
        %v2864 = vpack.c.bf16 %v2812, %v2811
        %v2865 = vpack.c.bf16 %v2814, %v2813
        %v2866 = vpack.c.bf16 %v2816, %v2815
        %v2867 = vpack.c.bf16 %v2818, %v2817
        %v2868 = vpack.c.bf16 %v2820, %v2819
        %v2869 = vpack.c.bf16 %v2822, %v2821
        %v2870 = vpack.c.bf16 %v2824, %v2823
        %v2871 = vpack.c.bf16 %v2826, %v2825
        %v2872 = vpack.c.bf16 %v2828, %v2827
        %v2873 = vpack.c.bf16 %v2830, %v2829
        %v2874 = vpack.c.bf16 %v2832, %v2831
        %v2875 = vpack.c.bf16 %v2834, %v2833
        %v2876 = vpack.c.bf16 %v2836, %v2835
        %v2877 = vpack.c.bf16 %v2838, %v2837
        %v2878 = vpack.c.bf16 %v2840, %v2839
        %v2879 = vpack.c.bf16 %v2842, %v2841
        %v2880 = vpack.c.bf16 %v2844, %v2843
        %v2881 = vpack.c.bf16 %v2846, %v2845
        %v2882 = vpack.c.bf16 %v2848, %v2847
        %v2883 = vpack.c.bf16 %v2850, %v2849
        %v2884 = vpack.c.bf16 %v2852, %v2851
        %s2885 = scalar_lea.vmem %s5, 64
        %v2886 = vld [vmem:[%s2885] sm:$0xf]
        %v2887 = vld [vmem:[%s2885 + $0x4] sm:$0xf]
        %v2888 = vld [vmem:[%s2885 + $0x8] sm:$0xf]
        %v2889 = vld [vmem:[%s2885 + $0xc] sm:$0xf]
        %v2890 = vld [vmem:[%s2885 + $0x10] sm:$0xf]
        %v2891 = vld [vmem:[%s2885 + $0x14] sm:$0xf]
        %v2892 = vld [vmem:[%s2885 + $0x18] sm:$0xf]
        %v2893 = vld [vmem:[%s2885 + $0x1c] sm:$0xf]
        %v2894 = vld [vmem:[%s2885 + $0x20] sm:$0xf]
        %v2895 = vld [vmem:[%s2885 + $0x24] sm:$0xf]
        %v2896 = vld [vmem:[%s2885 + $0x28] sm:$0xf]
        %v2897 = vld [vmem:[%s2885 + $0x2c] sm:$0xf]
        %v2898 = vld [vmem:[%s2885 + $0x30] sm:$0xf]
        %v2899 = vld [vmem:[%s2885 + $0x34] sm:$0xf]
        %v2900 = vld [vmem:[%s2885 + $0x38] sm:$0xf]
        %v2901 = vld [vmem:[%s2885 + $0x3c] sm:$0xf]
        %s2902 = scalar_lea.vmem %s6, 1
        %v2903 = vld [vmem:[%s2902] sm:$0x1]
        %v2905 = vlaneseq
        %v2906 = vshrl.u32 %v2905, 7
        %v2907 = vsub.s32 0, %v2906
        %v2908 = vrot.slane %v2903, %v2907
        %v2926 = vunpack.c.l.b16 %v2886
        %v2927 = vunpack.c.l.b16 %v2887
        %v2928 = vunpack.c.l.b16 %v2888
        %v2929 = vunpack.c.l.b16 %v2889
        %v2930 = vunpack.c.l.b16 %v2890
        %v2931 = vunpack.c.l.b16 %v2891
        %v2932 = vunpack.c.l.b16 %v2892
        %v2933 = vunpack.c.l.b16 %v2893
        %v2934 = vunpack.c.l.b16 %v2894
        %v2935 = vunpack.c.l.b16 %v2895
        %v2936 = vunpack.c.l.b16 %v2896
        %v2937 = vunpack.c.l.b16 %v2897
        %v2938 = vunpack.c.l.b16 %v2898
        %v2939 = vunpack.c.l.b16 %v2899
        %v2940 = vunpack.c.l.b16 %v2900
        %v2941 = vunpack.c.l.b16 %v2901
        %v2942 = vpack.c.b16 %v2927, %v2926
        %v2943 = vpack.c.b16 %v2929, %v2928
        %v2944 = vpack.c.b16 %v2931, %v2930
        %v2945 = vpack.c.b16 %v2933, %v2932
        %v2946 = vpack.c.b16 %v2935, %v2934
        %v2947 = vpack.c.b16 %v2937, %v2936
        %v2948 = vpack.c.b16 %v2939, %v2938
        %v2949 = vpack.c.b16 %v2941, %v2940
        %2958 = vmatprep.subr.bf16.mxu0 0
        %2959 = vmatpush1.bf16.msra.mxu0 %v2942
        %2960 = vmatprep.subr.bf16.mxu0 0
        %2961 = vmatpush1.bf16.msra.mxu0 %v2943
        %2962 = vmatprep.subr.bf16.mxu0 0
        %2963 = vmatpush1.bf16.msra.mxu0 %v2944
        %2964 = vmatprep.subr.bf16.mxu0 0
        %2965 = vmatpush1.bf16.msra.mxu0 %v2945
        %2966 = vmatprep.subr.bf16.mxu0 0
        %2967 = vmatpush1.bf16.msra.mxu0 %v2946
        %2968 = vmatprep.subr.bf16.mxu0 0
        %2969 = vmatpush1.bf16.msra.mxu0 %v2947
        %2970 = vmatprep.subr.bf16.mxu0 0
        %2971 = vmatpush1.bf16.msra.mxu0 %v2948
        %2972 = vmatprep.subr.bf16.mxu0 0
        %2973 = vmatpush1.bf16.msra.mxu0 %v2949
        %2974 = vmatprep.subr.bf16.mxu0 0
        %2975 = vmatpush1.bf16.msra.mxu0 0
        %2976 = vmatprep.subr.bf16.mxu0 0
        %2977 = vmatpush1.bf16.msra.mxu0 0
        %2978 = vmatprep.subr.bf16.mxu0 0
        %2979 = vmatpush1.bf16.msra.mxu0 0
        %2980 = vmatprep.subr.bf16.mxu0 0
        %2981 = vmatpush1.bf16.msra.mxu0 0
        %2982 = vmatprep.subr.bf16.mxu0 0
        %2983 = vmatpush1.bf16.msra.mxu0 0
        %2984 = vmatprep.subr.bf16.mxu0 0
        %2985 = vmatpush1.bf16.msra.mxu0 0
        %2986 = vmatprep.subr.bf16.mxu0 0
        %2987 = vmatpush1.bf16.msra.mxu0 0
        %2988 = vmatprep.subr.bf16.mxu0 0
        %2989 = vmatpush1.bf16.msra.mxu0 0
        %2990 = vmatprep.mubr.bf16.mxu0 0
        %2991 = vmatmul.mubr.bf16.gmra.mrb[0].mxu0 %v2853
        %v2992 = vpop.f32.mrb[0].mxu0
        %v2993 = vadd.f32 %v2908, %v2992
        %v2994 = vpop.f32.mrb[0].mxu0
        %v2995 = vpop.f32.mrb[0].mxu0
        %v2996 = vadd.f32 %v2908, %v2995
        %v2997 = vpop.f32.mrb[0].mxu0
        %2998 = vmatprep.mubr.bf16.mxu0 0
        %2999 = vmatmul.mubr.bf16.gmra.mrb[0].mxu0 %v2854
        %v3000 = vpop.f32.mrb[0].mxu0
        %v3001 = vadd.f32 %v2908, %v3000
        %v3002 = vpop.f32.mrb[0].mxu0
        %v3003 = vpop.f32.mrb[0].mxu0
        %v3004 = vadd.f32 %v2908, %v3003
        %v3005 = vpop.f32.mrb[0].mxu0
        %3006 = vmatprep.mubr.bf16.mxu0 0
        %3007 = vmatmul.mubr.bf16.gmra.mrb[0].mxu0 %v2855
        %v3008 = vpop.f32.mrb[0].mxu0
        %v3009 = vadd.f32 %v2908, %v3008
        %v3010 = vpop.f32.mrb[0].mxu0
        %v3011 = vpop.f32.mrb[0].mxu0
        %v3012 = vadd.f32 %v2908, %v3011
        %v3013 = vpop.f32.mrb[0].mxu0
        %3014 = vmatprep.mubr.bf16.mxu0 0
        %3015 = vmatmul.mubr.bf16.gmra.mrb[0].mxu0 %v2856
        %v3016 = vpop.f32.mrb[0].mxu0
        %v3017 = vadd.f32 %v2908, %v3016
        %v3018 = vpop.f32.mrb[0].mxu0
        %v3019 = vpop.f32.mrb[0].mxu0
        %v3020 = vadd.f32 %v2908, %v3019
        %v3021 = vpop.f32.mrb[0].mxu0
        %3022 = vmatprep.mubr.bf16.mxu0 0
        %3023 = vmatmul.mubr.bf16.gmra.mrb[0].mxu0 %v2857
        %v3024 = vpop.f32.mrb[0].mxu0
        %v3025 = vadd.f32 %v2908, %v3024
        %v3026 = vpop.f32.mrb[0].mxu0
        %v3027 = vpop.f32.mrb[0].mxu0
        %v3028 = vadd.f32 %v2908, %v3027
        %v3029 = vpop.f32.mrb[0].mxu0
        %3030 = vmatprep.mubr.bf16.mxu0 0
        %3031 = vmatmul.mubr.bf16.gmra.mrb[0].mxu0 %v2858
        %v3032 = vpop.f32.mrb[0].mxu0
        %v3033 = vadd.f32 %v2908, %v3032
        %v3034 = vpop.f32.mrb[0].mxu0
        %v3035 = vpop.f32.mrb[0].mxu0
        %v3036 = vadd.f32 %v2908, %v3035
        %v3037 = vpop.f32.mrb[0].mxu0
        %3038 = vmatprep.mubr.bf16.mxu0 0
        %3039 = vmatmul.mubr.bf16.gmra.mrb[0].mxu0 %v2859
        %v3040 = vpop.f32.mrb[0].mxu0
        %v3041 = vadd.f32 %v2908, %v3040
        %v3042 = vpop.f32.mrb[0].mxu0
        %v3043 = vpop.f32.mrb[0].mxu0
        %v3044 = vadd.f32 %v2908, %v3043
        %v3045 = vpop.f32.mrb[0].mxu0
        %3046 = vmatprep.mubr.bf16.mxu0 0
        %3047 = vmatmul.mubr.bf16.gmra.mrb[0].mxu0 %v2860
        %v3048 = vpop.f32.mrb[0].mxu0
        %v3049 = vadd.f32 %v2908, %v3048
        %v3050 = vpop.f32.mrb[0].mxu0
        %v3051 = vpop.f32.mrb[0].mxu0
        %v3052 = vadd.f32 %v2908, %v3051
        %v3053 = vpop.f32.mrb[0].mxu0
        %3054 = vmatprep.mubr.bf16.mxu0 0
        %3055 = vmatmul.mubr.bf16.gmra.mrb[0].mxu0 %v2861
        %v3056 = vpop.f32.mrb[0].mxu0
        %v3057 = vadd.f32 %v2908, %v3056
        %v3058 = vpop.f32.mrb[0].mxu0
        %v3059 = vpop.f32.mrb[0].mxu0
        %v3060 = vadd.f32 %v2908, %v3059
        %v3061 = vpop.f32.mrb[0].mxu0
        %3062 = vmatprep.mubr.bf16.mxu0 0
        %3063 = vmatmul.mubr.bf16.gmra.mrb[0].mxu0 %v2862
        %v3064 = vpop.f32.mrb[0].mxu0
        %v3065 = vadd.f32 %v2908, %v3064
        %v3066 = vpop.f32.mrb[0].mxu0
        %v3067 = vpop.f32.mrb[0].mxu0
        %v3068 = vadd.f32 %v2908, %v3067
        %v3069 = vpop.f32.mrb[0].mxu0
        %3070 = vmatprep.mubr.bf16.mxu0 0
        %3071 = vmatmul.mubr.bf16.gmra.mrb[0].mxu0 %v2863
        %v3072 = vpop.f32.mrb[0].mxu0
        %v3073 = vadd.f32 %v2908, %v3072
        %v3074 = vpop.f32.mrb[0].mxu0
        %v3075 = vpop.f32.mrb[0].mxu0
        %v3076 = vadd.f32 %v2908, %v3075
        %v3077 = vpop.f32.mrb[0].mxu0
        %3078 = vmatprep.mubr.bf16.mxu0 0
        %3079 = vmatmul.mubr.bf16.gmra.mrb[0].mxu0 %v2864
        %v3080 = vpop.f32.mrb[0].mxu0
        %v3081 = vadd.f32 %v2908, %v3080
        %v3082 = vpop.f32.mrb[0].mxu0
        %v3083 = vpop.f32.mrb[0].mxu0
        %v3084 = vadd.f32 %v2908, %v3083
        %v3085 = vpop.f32.mrb[0].mxu0
        %3086 = vmatprep.mubr.bf16.mxu0 0
        %3087 = vmatmul.mubr.bf16.gmra.mrb[0].mxu0 %v2865
        %v3088 = vpop.f32.mrb[0].mxu0
        %v3089 = vadd.f32 %v2908, %v3088
        %v3090 = vpop.f32.mrb[0].mxu0
        %v3091 = vpop.f32.mrb[0].mxu0
        %v3092 = vadd.f32 %v2908, %v3091
        %v3093 = vpop.f32.mrb[0].mxu0
        %3094 = vmatprep.mubr.bf16.mxu0 0
        %3095 = vmatmul.mubr.bf16.gmra.mrb[0].mxu0 %v2866
        %v3096 = vpop.f32.mrb[0].mxu0
        %v3097 = vadd.f32 %v2908, %v3096
        %v3098 = vpop.f32.mrb[0].mxu0
        %v3099 = vpop.f32.mrb[0].mxu0
        %v3100 = vadd.f32 %v2908, %v3099
        %v3101 = vpop.f32.mrb[0].mxu0
        %3102 = vmatprep.mubr.bf16.mxu0 0
        %3103 = vmatmul.mubr.bf16.gmra.mrb[0].mxu0 %v2867
        %v3104 = vpop.f32.mrb[0].mxu0
        %v3105 = vadd.f32 %v2908, %v3104
        %v3106 = vpop.f32.mrb[0].mxu0
        %v3107 = vpop.f32.mrb[0].mxu0
        %v3108 = vadd.f32 %v2908, %v3107
        %v3109 = vpop.f32.mrb[0].mxu0
        %3110 = vmatprep.mubr.bf16.mxu0 0
        %3111 = vmatmul.mubr.bf16.gmra.mrb[0].mxu0 %v2868
        %v3112 = vpop.f32.mrb[0].mxu0
        %v3113 = vadd.f32 %v2908, %v3112
        %v3114 = vpop.f32.mrb[0].mxu0
        %v3115 = vpop.f32.mrb[0].mxu0
        %v3116 = vadd.f32 %v2908, %v3115
        %v3117 = vpop.f32.mrb[0].mxu0
        %3118 = vmatprep.mubr.bf16.mxu0 0
        %3119 = vmatmul.mubr.bf16.gmra.mrb[0].mxu0 %v2869
        %v3120 = vpop.f32.mrb[0].mxu0
        %v3121 = vadd.f32 %v2908, %v3120
        %v3122 = vpop.f32.mrb[0].mxu0
        %v3123 = vpop.f32.mrb[0].mxu0
        %v3124 = vadd.f32 %v2908, %v3123
        %v3125 = vpop.f32.mrb[0].mxu0
        %3126 = vmatprep.mubr.bf16.mxu0 0
        %3127 = vmatmul.mubr.bf16.gmra.mrb[0].mxu0 %v2870
        %v3128 = vpop.f32.mrb[0].mxu0
        %v3129 = vadd.f32 %v2908, %v3128
        %v3130 = vpop.f32.mrb[0].mxu0
        %v3131 = vpop.f32.mrb[0].mxu0
        %v3132 = vadd.f32 %v2908, %v3131
        %v3133 = vpop.f32.mrb[0].mxu0
        %3134 = vmatprep.mubr.bf16.mxu0 0
        %3135 = vmatmul.mubr.bf16.gmra.mrb[0].mxu0 %v2871
        %v3136 = vpop.f32.mrb[0].mxu0
        %v3137 = vadd.f32 %v2908, %v3136
        %v3138 = vpop.f32.mrb[0].mxu0
        %v3139 = vpop.f32.mrb[0].mxu0
        %v3140 = vadd.f32 %v2908, %v3139
        %v3141 = vpop.f32.mrb[0].mxu0
        %3142 = vmatprep.mubr.bf16.mxu0 0
        %3143 = vmatmul.mubr.bf16.gmra.mrb[0].mxu0 %v2872
        %v3144 = vpop.f32.mrb[0].mxu0
        %v3145 = vadd.f32 %v2908, %v3144
        %v3146 = vpop.f32.mrb[0].mxu0
        %v3147 = vpop.f32.mrb[0].mxu0
        %v3148 = vadd.f32 %v2908, %v3147
        %v3149 = vpop.f32.mrb[0].mxu0
        %3150 = vmatprep.mubr.bf16.mxu0 0
        %3151 = vmatmul.mubr.bf16.gmra.mrb[0].mxu0 %v2873
        %v3152 = vpop.f32.mrb[0].mxu0
        %v3153 = vadd.f32 %v2908, %v3152
        %v3154 = vpop.f32.mrb[0].mxu0
        %v3155 = vpop.f32.mrb[0].mxu0
        %v3156 = vadd.f32 %v2908, %v3155
        %v3157 = vpop.f32.mrb[0].mxu0
        %3158 = vmatprep.mubr.bf16.mxu0 0
        %3159 = vmatmul.mubr.bf16.gmra.mrb[0].mxu0 %v2874
        %v3160 = vpop.f32.mrb[0].mxu0
        %v3161 = vadd.f32 %v2908, %v3160
        %v3162 = vpop.f32.mrb[0].mxu0
        %v3163 = vpop.f32.mrb[0].mxu0
        %v3164 = vadd.f32 %v2908, %v3163
        %v3165 = vpop.f32.mrb[0].mxu0
        %3166 = vmatprep.mubr.bf16.mxu0 0
        %3167 = vmatmul.mubr.bf16.gmra.mrb[0].mxu0 %v2875
        %v3168 = vpop.f32.mrb[0].mxu0
        %v3169 = vadd.f32 %v2908, %v3168
        %v3170 = vpop.f32.mrb[0].mxu0
        %v3171 = vpop.f32.mrb[0].mxu0
        %v3172 = vadd.f32 %v2908, %v3171
        %v3173 = vpop.f32.mrb[0].mxu0
        %3174 = vmatprep.mubr.bf16.mxu0 0
        %3175 = vmatmul.mubr.bf16.gmra.mrb[0].mxu0 %v2876
        %v3176 = vpop.f32.mrb[0].mxu0
        %v3177 = vadd.f32 %v2908, %v3176
        %v3178 = vpop.f32.mrb[0].mxu0
        %v3179 = vpop.f32.mrb[0].mxu0
        %v3180 = vadd.f32 %v2908, %v3179
        %v3181 = vpop.f32.mrb[0].mxu0
        %3182 = vmatprep.mubr.bf16.mxu0 0
        %3183 = vmatmul.mubr.bf16.gmra.mrb[0].mxu0 %v2877
        %v3184 = vpop.f32.mrb[0].mxu0
        %v3185 = vadd.f32 %v2908, %v3184
        %v3186 = vpop.f32.mrb[0].mxu0
        %v3187 = vpop.f32.mrb[0].mxu0
        %v3188 = vadd.f32 %v2908, %v3187
        %v3189 = vpop.f32.mrb[0].mxu0
        %3190 = vmatprep.mubr.bf16.mxu0 0
        %3191 = vmatmul.mubr.bf16.gmra.mrb[0].mxu0 %v2878
        %v3192 = vpop.f32.mrb[0].mxu0
        %v3193 = vadd.f32 %v2908, %v3192
        %v3194 = vpop.f32.mrb[0].mxu0
        %v3195 = vpop.f32.mrb[0].mxu0
        %v3196 = vadd.f32 %v2908, %v3195
        %v3197 = vpop.f32.mrb[0].mxu0
        %3198 = vmatprep.mubr.bf16.mxu0 0
        %3199 = vmatmul.mubr.bf16.gmra.mrb[0].mxu0 %v2879
        %v3200 = vpop.f32.mrb[0].mxu0
        %v3201 = vadd.f32 %v2908, %v3200
        %v3202 = vpop.f32.mrb[0].mxu0
        %v3203 = vpop.f32.mrb[0].mxu0
        %v3204 = vadd.f32 %v2908, %v3203
        %v3205 = vpop.f32.mrb[0].mxu0
        %3206 = vmatprep.mubr.bf16.mxu0 0
        %3207 = vmatmul.mubr.bf16.gmra.mrb[0].mxu0 %v2880
        %v3208 = vpop.f32.mrb[0].mxu0
        %v3209 = vadd.f32 %v2908, %v3208
        %v3210 = vpop.f32.mrb[0].mxu0
        %v3211 = vpop.f32.mrb[0].mxu0
        %v3212 = vadd.f32 %v2908, %v3211
        %v3213 = vpop.f32.mrb[0].mxu0
        %3214 = vmatprep.mubr.bf16.mxu0 0
        %3215 = vmatmul.mubr.bf16.gmra.mrb[0].mxu0 %v2881
        %v3216 = vpop.f32.mrb[0].mxu0
        %v3217 = vadd.f32 %v2908, %v3216
        %v3218 = vpop.f32.mrb[0].mxu0
        %v3219 = vpop.f32.mrb[0].mxu0
        %v3220 = vadd.f32 %v2908, %v3219
        %v3221 = vpop.f32.mrb[0].mxu0
        %3222 = vmatprep.mubr.bf16.mxu0 0
        %3223 = vmatmul.mubr.bf16.gmra.mrb[0].mxu0 %v2882
        %v3224 = vpop.f32.mrb[0].mxu0
        %v3225 = vadd.f32 %v2908, %v3224
        %v3226 = vpop.f32.mrb[0].mxu0
        %v3227 = vpop.f32.mrb[0].mxu0
        %v3228 = vadd.f32 %v2908, %v3227
        %v3229 = vpop.f32.mrb[0].mxu0
        %3230 = vmatprep.mubr.bf16.mxu0 0
        %3231 = vmatmul.mubr.bf16.gmra.mrb[0].mxu0 %v2883
        %v3232 = vpop.f32.mrb[0].mxu0
        %v3233 = vadd.f32 %v2908, %v3232
        %v3234 = vpop.f32.mrb[0].mxu0
        %v3235 = vpop.f32.mrb[0].mxu0
        %v3236 = vadd.f32 %v2908, %v3235
        %v3237 = vpop.f32.mrb[0].mxu0
        %3238 = vmatprep.mubr.bf16.mxu0 0
        %3239 = vmatmul.mubr.bf16.gmra.mrb[0].mxu0 %v2884
        %v3240 = vpop.f32.mrb[0].mxu0
        %v3241 = vadd.f32 %v2908, %v3240
        %v3242 = vpop.f32.mrb[0].mxu0
        %v3243 = vpop.f32.mrb[0].mxu0
        %v3244 = vadd.f32 %v2908, %v3243
        %v3245 = vpop.f32.mrb[0].mxu0
        %3246 = vdwg.mxu0
        %v3247 = vadd.f32 %v2267, %v2993
        %v3248 = vadd.f32 %v2268, %v2996
        %v3249 = vadd.f32 %v2269, %v3001
        %v3250 = vadd.f32 %v2270, %v3004
        %v3251 = vadd.f32 %v2271, %v3009
        %v3252 = vadd.f32 %v2272, %v3012
        %v3253 = vadd.f32 %v2273, %v3017
        %v3254 = vadd.f32 %v2274, %v3020
        %v3255 = vadd.f32 %v2275, %v3025
        %v3256 = vadd.f32 %v2276, %v3028
        %v3257 = vadd.f32 %v2277, %v3033
        %v3258 = vadd.f32 %v2278, %v3036
        %v3259 = vadd.f32 %v2279, %v3041
        %v3260 = vadd.f32 %v2280, %v3044
        %v3261 = vadd.f32 %v2281, %v3049
        %v3262 = vadd.f32 %v2282, %v3052
        %v3263 = vadd.f32 %v2283, %v3057
        %v3264 = vadd.f32 %v2284, %v3060
        %v3265 = vadd.f32 %v2285, %v3065
        %v3266 = vadd.f32 %v2286, %v3068
        %v3267 = vadd.f32 %v2287, %v3073
        %v3268 = vadd.f32 %v2288, %v3076
        %v3269 = vadd.f32 %v2289, %v3081
        %v3270 = vadd.f32 %v2290, %v3084
        %v3271 = vadd.f32 %v2291, %v3089
        %v3272 = vadd.f32 %v2292, %v3092
        %v3273 = vadd.f32 %v2293, %v3097
        %v3274 = vadd.f32 %v2294, %v3100
        %v3275 = vadd.f32 %v2295, %v3105
        %v3276 = vadd.f32 %v2296, %v3108
        %v3277 = vadd.f32 %v2297, %v3113
        %v3278 = vadd.f32 %v2298, %v3116
        %v3279 = vadd.f32 %v2299, %v3121
        %v3280 = vadd.f32 %v2300, %v3124
        %v3281 = vadd.f32 %v2301, %v3129
        %v3282 = vadd.f32 %v2302, %v3132
        %v3283 = vadd.f32 %v2303, %v3137
        %v3284 = vadd.f32 %v2304, %v3140
        %v3285 = vadd.f32 %v2305, %v3145
        %v3286 = vadd.f32 %v2306, %v3148
        %v3287 = vadd.f32 %v2307, %v3153
        %v3288 = vadd.f32 %v2308, %v3156
        %v3289 = vadd.f32 %v2309, %v3161
        %v3290 = vadd.f32 %v2310, %v3164
        %v3291 = vadd.f32 %v2311, %v3169
        %v3292 = vadd.f32 %v2312, %v3172
        %v3293 = vadd.f32 %v2313, %v3177
        %v3294 = vadd.f32 %v2314, %v3180
        %v3295 = vadd.f32 %v2315, %v3185
        %v3296 = vadd.f32 %v2316, %v3188
        %v3297 = vadd.f32 %v2317, %v3193
        %v3298 = vadd.f32 %v2318, %v3196
        %v3299 = vadd.f32 %v2319, %v3201
        %v3300 = vadd.f32 %v2320, %v3204
        %v3301 = vadd.f32 %v2321, %v3209
        %v3302 = vadd.f32 %v2322, %v3212
        %v3303 = vadd.f32 %v2323, %v3217
        %v3304 = vadd.f32 %v2324, %v3220
        %v3305 = vadd.f32 %v2325, %v3225
        %v3306 = vadd.f32 %v2326, %v3228
        %v3307 = vadd.f32 %v2327, %v3233
        %v3308 = vadd.f32 %v2328, %v3236
        %v3309 = vadd.f32 %v2329, %v3241
        %v3310 = vadd.f32 %v2330, %v3244
        %v3311 = vmul.f32 %v3247, 0.2
        %v3312 = vmul.f32 %v3248, 0.2
        %v3313 = vmul.f32 %v3249, 0.2
        %v3314 = vmul.f32 %v3250, 0.2
        %v3315 = vmul.f32 %v3251, 0.2
        %v3316 = vmul.f32 %v3252, 0.2
        %v3317 = vmul.f32 %v3253, 0.2
        %v3318 = vmul.f32 %v3254, 0.2
        %v3319 = vmul.f32 %v3255, 0.2
        %v3320 = vmul.f32 %v3256, 0.2
        %v3321 = vmul.f32 %v3257, 0.2
        %v3322 = vmul.f32 %v3258, 0.2
        %v3323 = vmul.f32 %v3259, 0.2
        %v3324 = vmul.f32 %v3260, 0.2
        %v3325 = vmul.f32 %v3261, 0.2
        %v3326 = vmul.f32 %v3262, 0.2
        %v3327 = vmul.f32 %v3263, 0.2
        %v3328 = vmul.f32 %v3264, 0.2
        %v3329 = vmul.f32 %v3265, 0.2
        %v3330 = vmul.f32 %v3266, 0.2
        %v3331 = vmul.f32 %v3267, 0.2
        %v3332 = vmul.f32 %v3268, 0.2
        %v3333 = vmul.f32 %v3269, 0.2
        %v3334 = vmul.f32 %v3270, 0.2
        %v3335 = vmul.f32 %v3271, 0.2
        %v3336 = vmul.f32 %v3272, 0.2
        %v3337 = vmul.f32 %v3273, 0.2
        %v3338 = vmul.f32 %v3274, 0.2
        %v3339 = vmul.f32 %v3275, 0.2
        %v3340 = vmul.f32 %v3276, 0.2
        %v3341 = vmul.f32 %v3277, 0.2
        %v3342 = vmul.f32 %v3278, 0.2
        %v3343 = vmul.f32 %v3279, 0.2
        %v3344 = vmul.f32 %v3280, 0.2
        %v3345 = vmul.f32 %v3281, 0.2
        %v3346 = vmul.f32 %v3282, 0.2
        %v3347 = vmul.f32 %v3283, 0.2
        %v3348 = vmul.f32 %v3284, 0.2
        %v3349 = vmul.f32 %v3285, 0.2
        %v3350 = vmul.f32 %v3286, 0.2
        %v3351 = vmul.f32 %v3287, 0.2
        %v3352 = vmul.f32 %v3288, 0.2
        %v3353 = vmul.f32 %v3289, 0.2
        %v3354 = vmul.f32 %v3290, 0.2
        %v3355 = vmul.f32 %v3291, 0.2
        %v3356 = vmul.f32 %v3292, 0.2
        %v3357 = vmul.f32 %v3293, 0.2
        %v3358 = vmul.f32 %v3294, 0.2
        %v3359 = vmul.f32 %v3295, 0.2
        %v3360 = vmul.f32 %v3296, 0.2
        %v3361 = vmul.f32 %v3297, 0.2
        %v3362 = vmul.f32 %v3298, 0.2
        %v3363 = vmul.f32 %v3299, 0.2
        %v3364 = vmul.f32 %v3300, 0.2
        %v3365 = vmul.f32 %v3301, 0.2
        %v3366 = vmul.f32 %v3302, 0.2
        %v3367 = vmul.f32 %v3303, 0.2
        %v3368 = vmul.f32 %v3304, 0.2
        %v3369 = vmul.f32 %v3305, 0.2
        %v3370 = vmul.f32 %v3306, 0.2
        %v3371 = vmul.f32 %v3307, 0.2
        %v3372 = vmul.f32 %v3308, 0.2
        %v3373 = vmul.f32 %v3309, 0.2
        %v3374 = vmul.f32 %v3310, 0.2
        %v3375 = vmax.f32 %v3247, %v3311
        %v3376 = vmax.f32 %v3248, %v3312
        %v3377 = vmax.f32 %v3249, %v3313
        %v3378 = vmax.f32 %v3250, %v3314
        %v3379 = vmax.f32 %v3251, %v3315
        %v3380 = vmax.f32 %v3252, %v3316
        %v3381 = vmax.f32 %v3253, %v3317
        %v3382 = vmax.f32 %v3254, %v3318
        %v3383 = vmax.f32 %v3255, %v3319
        %v3384 = vmax.f32 %v3256, %v3320
        %v3385 = vmax.f32 %v3257, %v3321
        %v3386 = vmax.f32 %v3258, %v3322
        %v3387 = vmax.f32 %v3259, %v3323
        %v3388 = vmax.f32 %v3260, %v3324
        %v3389 = vmax.f32 %v3261, %v3325
        %v3390 = vmax.f32 %v3262, %v3326
        %v3391 = vmax.f32 %v3263, %v3327
        %v3392 = vmax.f32 %v3264, %v3328
        %v3393 = vmax.f32 %v3265, %v3329
        %v3394 = vmax.f32 %v3266, %v3330
        %v3395 = vmax.f32 %v3267, %v3331
        %v3396 = vmax.f32 %v3268, %v3332
        %v3397 = vmax.f32 %v3269, %v3333
        %v3398 = vmax.f32 %v3270, %v3334
        %v3399 = vmax.f32 %v3271, %v3335
        %v3400 = vmax.f32 %v3272, %v3336
        %v3401 = vmax.f32 %v3273, %v3337
        %v3402 = vmax.f32 %v3274, %v3338
        %v3403 = vmax.f32 %v3275, %v3339
        %v3404 = vmax.f32 %v3276, %v3340
        %v3405 = vmax.f32 %v3277, %v3341
        %v3406 = vmax.f32 %v3278, %v3342
        %v3407 = vmax.f32 %v3279, %v3343
        %v3408 = vmax.f32 %v3280, %v3344
        %v3409 = vmax.f32 %v3281, %v3345
        %v3410 = vmax.f32 %v3282, %v3346
        %v3411 = vmax.f32 %v3283, %v3347
        %v3412 = vmax.f32 %v3284, %v3348
        %v3413 = vmax.f32 %v3285, %v3349
        %v3414 = vmax.f32 %v3286, %v3350
        %v3415 = vmax.f32 %v3287, %v3351
        %v3416 = vmax.f32 %v3288, %v3352
        %v3417 = vmax.f32 %v3289, %v3353
        %v3418 = vmax.f32 %v3290, %v3354
        %v3419 = vmax.f32 %v3291, %v3355
        %v3420 = vmax.f32 %v3292, %v3356
        %v3421 = vmax.f32 %v3293, %v3357
        %v3422 = vmax.f32 %v3294, %v3358
        %v3423 = vmax.f32 %v3295, %v3359
        %v3424 = vmax.f32 %v3296, %v3360
        %v3425 = vmax.f32 %v3297, %v3361
        %v3426 = vmax.f32 %v3298, %v3362
        %v3427 = vmax.f32 %v3299, %v3363
        %v3428 = vmax.f32 %v3300, %v3364
        %v3429 = vmax.f32 %v3301, %v3365
        %v3430 = vmax.f32 %v3302, %v3366
        %v3431 = vmax.f32 %v3303, %v3367
        %v3432 = vmax.f32 %v3304, %v3368
        %v3433 = vmax.f32 %v3305, %v3369
        %v3434 = vmax.f32 %v3306, %v3370
        %v3435 = vmax.f32 %v3307, %v3371
        %v3436 = vmax.f32 %v3308, %v3372
        %v3437 = vmax.f32 %v3309, %v3373
        %v3438 = vmax.f32 %v3310, %v3374
        %v3439 = vld [vmem:[%s7] sm:$0x1]
        %v3441 = vlaneseq
        %v3442 = vshrl.u32 %v3441, 7
        %v3443 = vsub.s32 0, %v3442
        %v3444 = vrot.slane %v3439, %v3443
        %v3446 = vmul.f32 %v3375, %v3444
        %v3447 = vmul.f32 %v3376, %v3444
        %v3448 = vmul.f32 %v3377, %v3444
        %v3449 = vmul.f32 %v3378, %v3444
        %v3450 = vmul.f32 %v3379, %v3444
        %v3451 = vmul.f32 %v3380, %v3444
        %v3452 = vmul.f32 %v3381, %v3444
        %v3453 = vmul.f32 %v3382, %v3444
        %v3454 = vmul.f32 %v3383, %v3444
        %v3455 = vmul.f32 %v3384, %v3444
        %v3456 = vmul.f32 %v3385, %v3444
        %v3457 = vmul.f32 %v3386, %v3444
        %v3458 = vmul.f32 %v3387, %v3444
        %v3459 = vmul.f32 %v3388, %v3444
        %v3460 = vmul.f32 %v3389, %v3444
        %v3461 = vmul.f32 %v3390, %v3444
        %v3462 = vmul.f32 %v3391, %v3444
        %v3463 = vmul.f32 %v3392, %v3444
        %v3464 = vmul.f32 %v3393, %v3444
        %v3465 = vmul.f32 %v3394, %v3444
        %v3466 = vmul.f32 %v3395, %v3444
        %v3467 = vmul.f32 %v3396, %v3444
        %v3468 = vmul.f32 %v3397, %v3444
        %v3469 = vmul.f32 %v3398, %v3444
        %v3470 = vmul.f32 %v3399, %v3444
        %v3471 = vmul.f32 %v3400, %v3444
        %v3472 = vmul.f32 %v3401, %v3444
        %v3473 = vmul.f32 %v3402, %v3444
        %v3474 = vmul.f32 %v3403, %v3444
        %v3475 = vmul.f32 %v3404, %v3444
        %v3476 = vmul.f32 %v3405, %v3444
        %v3477 = vmul.f32 %v3406, %v3444
        %v3478 = vmul.f32 %v3407, %v3444
        %v3479 = vmul.f32 %v3408, %v3444
        %v3480 = vmul.f32 %v3409, %v3444
        %v3481 = vmul.f32 %v3410, %v3444
        %v3482 = vmul.f32 %v3411, %v3444
        %v3483 = vmul.f32 %v3412, %v3444
        %v3484 = vmul.f32 %v3413, %v3444
        %v3485 = vmul.f32 %v3414, %v3444
        %v3486 = vmul.f32 %v3415, %v3444
        %v3487 = vmul.f32 %v3416, %v3444
        %v3488 = vmul.f32 %v3417, %v3444
        %v3489 = vmul.f32 %v3418, %v3444
        %v3490 = vmul.f32 %v3419, %v3444
        %v3491 = vmul.f32 %v3420, %v3444
        %v3492 = vmul.f32 %v3421, %v3444
        %v3493 = vmul.f32 %v3422, %v3444
        %v3494 = vmul.f32 %v3423, %v3444
        %v3495 = vmul.f32 %v3424, %v3444
        %v3496 = vmul.f32 %v3425, %v3444
        %v3497 = vmul.f32 %v3426, %v3444
        %v3498 = vmul.f32 %v3427, %v3444
        %v3499 = vmul.f32 %v3428, %v3444
        %v3500 = vmul.f32 %v3429, %v3444
        %v3501 = vmul.f32 %v3430, %v3444
        %v3502 = vmul.f32 %v3431, %v3444
        %v3503 = vmul.f32 %v3432, %v3444
        %v3504 = vmul.f32 %v3433, %v3444
        %v3505 = vmul.f32 %v3434, %v3444
        %v3506 = vmul.f32 %v3435, %v3444
        %v3507 = vmul.f32 %v3436, %v3444
        %v3508 = vmul.f32 %v3437, %v3444
        %v3509 = vmul.f32 %v3438, %v3444
        %3510 = vadd.xlane.f32.xlu0 %v3446
        %v3511 = vpop.xlane.xlu0 %3510
        %3512 = vadd.xlane.f32.xlu0 %v3447
        %v3513 = vpop.xlane.xlu0 %3512
        %3514 = vadd.xlane.f32.xlu0 %v3448
        %v3515 = vpop.xlane.xlu0 %3514
        %3516 = vadd.xlane.f32.xlu0 %v3449
        %v3517 = vpop.xlane.xlu0 %3516
        %3518 = vadd.xlane.f32.xlu0 %v3450
        %v3519 = vpop.xlane.xlu0 %3518
        %3520 = vadd.xlane.f32.xlu0 %v3451
        %v3521 = vpop.xlane.xlu0 %3520
        %3522 = vadd.xlane.f32.xlu0 %v3452
        %v3523 = vpop.xlane.xlu0 %3522
        %3524 = vadd.xlane.f32.xlu0 %v3453
        %v3525 = vpop.xlane.xlu0 %3524
        %3526 = vadd.xlane.f32.xlu0 %v3454
        %v3527 = vpop.xlane.xlu0 %3526
        %3528 = vadd.xlane.f32.xlu0 %v3455
        %v3529 = vpop.xlane.xlu0 %3528
        %3530 = vadd.xlane.f32.xlu0 %v3456
        %v3531 = vpop.xlane.xlu0 %3530
        %3532 = vadd.xlane.f32.xlu0 %v3457
        %v3533 = vpop.xlane.xlu0 %3532
        %3534 = vadd.xlane.f32.xlu0 %v3458
        %v3535 = vpop.xlane.xlu0 %3534
        %3536 = vadd.xlane.f32.xlu0 %v3459
        %v3537 = vpop.xlane.xlu0 %3536
        %3538 = vadd.xlane.f32.xlu0 %v3460
        %v3539 = vpop.xlane.xlu0 %3538
        %3540 = vadd.xlane.f32.xlu0 %v3461
        %v3541 = vpop.xlane.xlu0 %3540
        %3542 = vadd.xlane.f32.xlu0 %v3462
        %v3543 = vpop.xlane.xlu0 %3542
        %3544 = vadd.xlane.f32.xlu0 %v3463
        %v3545 = vpop.xlane.xlu0 %3544
        %3546 = vadd.xlane.f32.xlu0 %v3464
        %v3547 = vpop.xlane.xlu0 %3546
        %3548 = vadd.xlane.f32.xlu0 %v3465
        %v3549 = vpop.xlane.xlu0 %3548
        %3550 = vadd.xlane.f32.xlu0 %v3466
        %v3551 = vpop.xlane.xlu0 %3550
        %3552 = vadd.xlane.f32.xlu0 %v3467
        %v3553 = vpop.xlane.xlu0 %3552
        %3554 = vadd.xlane.f32.xlu0 %v3468
        %v3555 = vpop.xlane.xlu0 %3554
        %3556 = vadd.xlane.f32.xlu0 %v3469
        %v3557 = vpop.xlane.xlu0 %3556
        %3558 = vadd.xlane.f32.xlu0 %v3470
        %v3559 = vpop.xlane.xlu0 %3558
        %3560 = vadd.xlane.f32.xlu0 %v3471
        %v3561 = vpop.xlane.xlu0 %3560
        %3562 = vadd.xlane.f32.xlu0 %v3472
        %v3563 = vpop.xlane.xlu0 %3562
        %3564 = vadd.xlane.f32.xlu0 %v3473
        %v3565 = vpop.xlane.xlu0 %3564
        %3566 = vadd.xlane.f32.xlu0 %v3474
        %v3567 = vpop.xlane.xlu0 %3566
        %3568 = vadd.xlane.f32.xlu0 %v3475
        %v3569 = vpop.xlane.xlu0 %3568
        %3570 = vadd.xlane.f32.xlu0 %v3476
        %v3571 = vpop.xlane.xlu0 %3570
        %3572 = vadd.xlane.f32.xlu0 %v3477
        %v3573 = vpop.xlane.xlu0 %3572
        %3574 = vadd.xlane.f32.xlu0 %v3478
        %v3575 = vpop.xlane.xlu0 %3574
        %3576 = vadd.xlane.f32.xlu0 %v3479
        %v3577 = vpop.xlane.xlu0 %3576
        %3578 = vadd.xlane.f32.xlu0 %v3480
        %v3579 = vpop.xlane.xlu0 %3578
        %3580 = vadd.xlane.f32.xlu0 %v3481
        %v3581 = vpop.xlane.xlu0 %3580
        %3582 = vadd.xlane.f32.xlu0 %v3482
        %v3583 = vpop.xlane.xlu0 %3582
        %3584 = vadd.xlane.f32.xlu0 %v3483
        %v3585 = vpop.xlane.xlu0 %3584
        %3586 = vadd.xlane.f32.xlu0 %v3484
        %v3587 = vpop.xlane.xlu0 %3586
        %3588 = vadd.xlane.f32.xlu0 %v3485
        %v3589 = vpop.xlane.xlu0 %3588
        %3590 = vadd.xlane.f32.xlu0 %v3486
        %v3591 = vpop.xlane.xlu0 %3590
        %3592 = vadd.xlane.f32.xlu0 %v3487
        %v3593 = vpop.xlane.xlu0 %3592
        %3594 = vadd.xlane.f32.xlu0 %v3488
        %v3595 = vpop.xlane.xlu0 %3594
        %3596 = vadd.xlane.f32.xlu0 %v3489
        %v3597 = vpop.xlane.xlu0 %3596
        %3598 = vadd.xlane.f32.xlu0 %v3490
        %v3599 = vpop.xlane.xlu0 %3598
        %3600 = vadd.xlane.f32.xlu0 %v3491
        %v3601 = vpop.xlane.xlu0 %3600
        %3602 = vadd.xlane.f32.xlu0 %v3492
        %v3603 = vpop.xlane.xlu0 %3602
        %3604 = vadd.xlane.f32.xlu0 %v3493
        %v3605 = vpop.xlane.xlu0 %3604
        %3606 = vadd.xlane.f32.xlu0 %v3494
        %v3607 = vpop.xlane.xlu0 %3606
        %3608 = vadd.xlane.f32.xlu0 %v3495
        %v3609 = vpop.xlane.xlu0 %3608
        %3610 = vadd.xlane.f32.xlu0 %v3496
        %v3611 = vpop.xlane.xlu0 %3610
        %3612 = vadd.xlane.f32.xlu0 %v3497
        %v3613 = vpop.xlane.xlu0 %3612
        %3614 = vadd.xlane.f32.xlu0 %v3498
        %v3615 = vpop.xlane.xlu0 %3614
        %3616 = vadd.xlane.f32.xlu0 %v3499
        %v3617 = vpop.xlane.xlu0 %3616
        %3618 = vadd.xlane.f32.xlu0 %v3500
        %v3619 = vpop.xlane.xlu0 %3618
        %3620 = vadd.xlane.f32.xlu0 %v3501
        %v3621 = vpop.xlane.xlu0 %3620
        %3622 = vadd.xlane.f32.xlu0 %v3502
        %v3623 = vpop.xlane.xlu0 %3622
        %3624 = vadd.xlane.f32.xlu0 %v3503
        %v3625 = vpop.xlane.xlu0 %3624
        %3626 = vadd.xlane.f32.xlu0 %v3504
        %v3627 = vpop.xlane.xlu0 %3626
        %3628 = vadd.xlane.f32.xlu0 %v3505
        %v3629 = vpop.xlane.xlu0 %3628
        %3630 = vadd.xlane.f32.xlu0 %v3506
        %v3631 = vpop.xlane.xlu0 %3630
        %3632 = vadd.xlane.f32.xlu0 %v3507
        %v3633 = vpop.xlane.xlu0 %3632
        %3634 = vadd.xlane.f32.xlu0 %v3508
        %v3635 = vpop.xlane.xlu0 %3634
        %3636 = vadd.xlane.f32.xlu0 %v3509
        %v3637 = vpop.xlane.xlu0 %3636
        %s3638 = sld [smem:[#allocation2]]
        %v3639 = vstv %s3638
        %v3640 = vadd.f32 %v3511, %v3639
        %v3641 = vadd.f32 %v3513, %v3639
        %v3642 = vadd.f32 %v3515, %v3639
        %v3643 = vadd.f32 %v3517, %v3639
        %v3644 = vadd.f32 %v3519, %v3639
        %v3645 = vadd.f32 %v3521, %v3639
        %v3646 = vadd.f32 %v3523, %v3639
        %v3647 = vadd.f32 %v3525, %v3639
        %v3648 = vadd.f32 %v3527, %v3639
        %v3649 = vadd.f32 %v3529, %v3639
        %v3650 = vadd.f32 %v3531, %v3639
        %v3651 = vadd.f32 %v3533, %v3639
        %v3652 = vadd.f32 %v3535, %v3639
        %v3653 = vadd.f32 %v3537, %v3639
        %v3654 = vadd.f32 %v3539, %v3639
        %v3655 = vadd.f32 %v3541, %v3639
        %v3656 = vadd.f32 %v3543, %v3639
        %v3657 = vadd.f32 %v3545, %v3639
        %v3658 = vadd.f32 %v3547, %v3639
        %v3659 = vadd.f32 %v3549, %v3639
        %v3660 = vadd.f32 %v3551, %v3639
        %v3661 = vadd.f32 %v3553, %v3639
        %v3662 = vadd.f32 %v3555, %v3639
        %v3663 = vadd.f32 %v3557, %v3639
        %v3664 = vadd.f32 %v3559, %v3639
        %v3665 = vadd.f32 %v3561, %v3639
        %v3666 = vadd.f32 %v3563, %v3639
        %v3667 = vadd.f32 %v3565, %v3639
        %v3668 = vadd.f32 %v3567, %v3639
        %v3669 = vadd.f32 %v3569, %v3639
        %v3670 = vadd.f32 %v3571, %v3639
        %v3671 = vadd.f32 %v3573, %v3639
        %v3672 = vadd.f32 %v3575, %v3639
        %v3673 = vadd.f32 %v3577, %v3639
        %v3674 = vadd.f32 %v3579, %v3639
        %v3675 = vadd.f32 %v3581, %v3639
        %v3676 = vadd.f32 %v3583, %v3639
        %v3677 = vadd.f32 %v3585, %v3639
        %v3678 = vadd.f32 %v3587, %v3639
        %v3679 = vadd.f32 %v3589, %v3639
        %v3680 = vadd.f32 %v3591, %v3639
        %v3681 = vadd.f32 %v3593, %v3639
        %v3682 = vadd.f32 %v3595, %v3639
        %v3683 = vadd.f32 %v3597, %v3639
        %v3684 = vadd.f32 %v3599, %v3639
        %v3685 = vadd.f32 %v3601, %v3639
        %v3686 = vadd.f32 %v3603, %v3639
        %v3687 = vadd.f32 %v3605, %v3639
        %v3688 = vadd.f32 %v3607, %v3639
        %v3689 = vadd.f32 %v3609, %v3639
        %v3690 = vadd.f32 %v3611, %v3639
        %v3691 = vadd.f32 %v3613, %v3639
        %v3692 = vadd.f32 %v3615, %v3639
        %v3693 = vadd.f32 %v3617, %v3639
        %v3694 = vadd.f32 %v3619, %v3639
        %v3695 = vadd.f32 %v3621, %v3639
        %v3696 = vadd.f32 %v3623, %v3639
        %v3697 = vadd.f32 %v3625, %v3639
        %v3698 = vadd.f32 %v3627, %v3639
        %v3699 = vadd.f32 %v3629, %v3639
        %v3700 = vadd.f32 %v3631, %v3639
        %v3701 = vadd.f32 %v3633, %v3639
        %v3702 = vadd.f32 %v3635, %v3639
        %v3703 = vadd.f32 %v3637, %v3639
        %v3768 = vlaneseq
        %v3769 = vand.u32 %v3768, 127
        %v3770 = vlaneseq
        %v3771 = vshrl.u32 %v3770, 7
        %v3772 = vsub.s32 %v3769, %v3771
        %v3773 = vrot.slane %v3640, %v3772
        %v3774 = vadd.s32 %v3769, 4294967288
        %v3775 = vlaneseq
        %v3776 = vshrl.u32 %v3775, 7
        %v3777 = vsub.s32 %v3774, %v3776
        %v3778 = vrot.slane %v3641, %v3777
        %vm3779 = vcmask 130112
        %v3780 = vsel %vm3779, %v3778, %v3773
        %v3781 = vadd.s32 %v3769, 4294967280
        %v3782 = vlaneseq
        %v3783 = vshrl.u32 %v3782, 7
        %v3784 = vsub.s32 %v3781, %v3783
        %v3785 = vrot.slane %v3642, %v3784
        %vm3786 = vcmask 195712
        %v3787 = vsel %vm3786, %v3785, %v3780
        %v3788 = vadd.s32 %v3769, 4294967272
        %v3789 = vlaneseq
        %v3790 = vshrl.u32 %v3789, 7
        %v3791 = vsub.s32 %v3788, %v3790
        %v3792 = vrot.slane %v3643, %v3791
        %vm3793 = vcmask 261312
        %v3794 = vsel %vm3793, %v3792, %v3787
        %v3795 = vadd.s32 %v3769, 4294967264
        %v3796 = vlaneseq
        %v3797 = vshrl.u32 %v3796, 7
        %v3798 = vsub.s32 %v3795, %v3797
        %v3799 = vrot.slane %v3644, %v3798
        %vm3800 = vcmask 326912
        %v3801 = vsel %vm3800, %v3799, %v3794
        %v3802 = vadd.s32 %v3769, 4294967256
        %v3803 = vlaneseq
        %v3804 = vshrl.u32 %v3803, 7
        %v3805 = vsub.s32 %v3802, %v3804
        %v3806 = vrot.slane %v3645, %v3805
        %vm3807 = vcmask 392512
        %v3808 = vsel %vm3807, %v3806, %v3801
        %v3809 = vadd.s32 %v3769, 4294967248
        %v3810 = vlaneseq
        %v3811 = vshrl.u32 %v3810, 7
        %v3812 = vsub.s32 %v3809, %v3811
        %v3813 = vrot.slane %v3646, %v3812
        %vm3814 = vcmask 458112
        %v3815 = vsel %vm3814, %v3813, %v3808
        %v3816 = vadd.s32 %v3769, 4294967240
        %v3817 = vlaneseq
        %v3818 = vshrl.u32 %v3817, 7
        %v3819 = vsub.s32 %v3816, %v3818
        %v3820 = vrot.slane %v3647, %v3819
        %vm3821 = vcmask 523712
        %v3822 = vsel %vm3821, %v3820, %v3815
        %v3823 = vadd.s32 %v3769, 4294967232
        %v3824 = vlaneseq
        %v3825 = vshrl.u32 %v3824, 7
        %v3826 = vsub.s32 %v3823, %v3825
        %v3827 = vrot.slane %v3648, %v3826
        %vm3828 = vcmask 589312
        %v3829 = vsel %vm3828, %v3827, %v3822
        %v3830 = vadd.s32 %v3769, 4294967224
        %v3831 = vlaneseq
        %v3832 = vshrl.u32 %v3831, 7
        %v3833 = vsub.s32 %v3830, %v3832
        %v3834 = vrot.slane %v3649, %v3833
        %vm3835 = vcmask 654912
        %v3836 = vsel %vm3835, %v3834, %v3829
        %v3837 = vadd.s32 %v3769, 4294967216
        %v3838 = vlaneseq
        %v3839 = vshrl.u32 %v3838, 7
        %v3840 = vsub.s32 %v3837, %v3839
        %v3841 = vrot.slane %v3650, %v3840
        %vm3842 = vcmask 720512
        %v3843 = vsel %vm3842, %v3841, %v3836
        %v3844 = vadd.s32 %v3769, 4294967208
        %v3845 = vlaneseq
        %v3846 = vshrl.u32 %v3845, 7
        %v3847 = vsub.s32 %v3844, %v3846
        %v3848 = vrot.slane %v3651, %v3847
        %vm3849 = vcmask 786112
        %v3850 = vsel %vm3849, %v3848, %v3843
        %v3851 = vadd.s32 %v3769, 4294967200
        %v3852 = vlaneseq
        %v3853 = vshrl.u32 %v3852, 7
        %v3854 = vsub.s32 %v3851, %v3853
        %v3855 = vrot.slane %v3652, %v3854
        %vm3856 = vcmask 851712
        %v3857 = vsel %vm3856, %v3855, %v3850
        %v3858 = vadd.s32 %v3769, 4294967192
        %v3859 = vlaneseq
        %v3860 = vshrl.u32 %v3859, 7
        %v3861 = vsub.s32 %v3858, %v3860
        %v3862 = vrot.slane %v3653, %v3861
        %vm3863 = vcmask 917312
        %v3864 = vsel %vm3863, %v3862, %v3857
        %v3865 = vadd.s32 %v3769, 4294967184
        %v3866 = vlaneseq
        %v3867 = vshrl.u32 %v3866, 7
        %v3868 = vsub.s32 %v3865, %v3867
        %v3869 = vrot.slane %v3654, %v3868
        %vm3870 = vcmask 982912
        %v3871 = vsel %vm3870, %v3869, %v3864
        %v3872 = vadd.s32 %v3769, 4294967176
        %v3873 = vlaneseq
        %v3874 = vshrl.u32 %v3873, 7
        %v3875 = vsub.s32 %v3872, %v3874
        %v3876 = vrot.slane %v3655, %v3875
        %vm3877 = vcmask 1048512
        %v3878 = vsel %vm3877, %v3876, %v3871
        %v3879 = vlaneseq
        %v3880 = vshrl.u32 %v3879, 7
        %v3881 = vsub.s32 %v3769, %v3880
        %v3882 = vrot.slane %v3656, %v3881
        %v3883 = vlaneseq
        %v3884 = vshrl.u32 %v3883, 7
        %v3885 = vsub.s32 %v3774, %v3884
        %v3886 = vrot.slane %v3657, %v3885
        %v3887 = vsel %vm3779, %v3886, %v3882
        %v3888 = vlaneseq
        %v3889 = vshrl.u32 %v3888, 7
        %v3890 = vsub.s32 %v3781, %v3889
        %v3891 = vrot.slane %v3658, %v3890
        %v3892 = vsel %vm3786, %v3891, %v3887
        %v3893 = vlaneseq
        %v3894 = vshrl.u32 %v3893, 7
        %v3895 = vsub.s32 %v3788, %v3894
        %v3896 = vrot.slane %v3659, %v3895
        %v3897 = vsel %vm3793, %v3896, %v3892
        %v3898 = vlaneseq
        %v3899 = vshrl.u32 %v3898, 7
        %v3900 = vsub.s32 %v3795, %v3899
        %v3901 = vrot.slane %v3660, %v3900
        %v3902 = vsel %vm3800, %v3901, %v3897
        %v3903 = vlaneseq
        %v3904 = vshrl.u32 %v3903, 7
        %v3905 = vsub.s32 %v3802, %v3904
        %v3906 = vrot.slane %v3661, %v3905
        %v3907 = vsel %vm3807, %v3906, %v3902
        %v3908 = vlaneseq
        %v3909 = vshrl.u32 %v3908, 7
        %v3910 = vsub.s32 %v3809, %v3909
        %v3911 = vrot.slane %v3662, %v3910
        %v3912 = vsel %vm3814, %v3911, %v3907
        %v3913 = vlaneseq
        %v3914 = vshrl.u32 %v3913, 7
        %v3915 = vsub.s32 %v3816, %v3914
        %v3916 = vrot.slane %v3663, %v3915
        %v3917 = vsel %vm3821, %v3916, %v3912
        %v3918 = vlaneseq
        %v3919 = vshrl.u32 %v3918, 7
        %v3920 = vsub.s32 %v3823, %v3919
        %v3921 = vrot.slane %v3664, %v3920
        %v3922 = vsel %vm3828, %v3921, %v3917
        %v3923 = vlaneseq
        %v3924 = vshrl.u32 %v3923, 7
        %v3925 = vsub.s32 %v3830, %v3924
        %v3926 = vrot.slane %v3665, %v3925
        %v3927 = vsel %vm3835, %v3926, %v3922
        %v3928 = vlaneseq
        %v3929 = vshrl.u32 %v3928, 7
        %v3930 = vsub.s32 %v3837, %v3929
        %v3931 = vrot.slane %v3666, %v3930
        %v3932 = vsel %vm3842, %v3931, %v3927
        %v3933 = vlaneseq
        %v3934 = vshrl.u32 %v3933, 7
        %v3935 = vsub.s32 %v3844, %v3934
        %v3936 = vrot.slane %v3667, %v3935
        %v3937 = vsel %vm3849, %v3936, %v3932
        %v3938 = vlaneseq
        %v3939 = vshrl.u32 %v3938, 7
        %v3940 = vsub.s32 %v3851, %v3939
        %v3941 = vrot.slane %v3668, %v3940
        %v3942 = vsel %vm3856, %v3941, %v3937
        %v3943 = vlaneseq
        %v3944 = vshrl.u32 %v3943, 7
        %v3945 = vsub.s32 %v3858, %v3944
        %v3946 = vrot.slane %v3669, %v3945
        %v3947 = vsel %vm3863, %v3946, %v3942
        %v3948 = vlaneseq
        %v3949 = vshrl.u32 %v3948, 7
        %v3950 = vsub.s32 %v3865, %v3949
        %v3951 = vrot.slane %v3670, %v3950
        %v3952 = vsel %vm3870, %v3951, %v3947
        %v3953 = vlaneseq
        %v3954 = vshrl.u32 %v3953, 7
        %v3955 = vsub.s32 %v3872, %v3954
        %v3956 = vrot.slane %v3671, %v3955
        %v3957 = vsel %vm3877, %v3956, %v3952
        %v3958 = vlaneseq
        %v3959 = vshrl.u32 %v3958, 7
        %v3960 = vsub.s32 %v3769, %v3959
        %v3961 = vrot.slane %v3672, %v3960
        %v3962 = vlaneseq
        %v3963 = vshrl.u32 %v3962, 7
        %v3964 = vsub.s32 %v3774, %v3963
        %v3965 = vrot.slane %v3673, %v3964
        %v3966 = vsel %vm3779, %v3965, %v3961
        %v3967 = vlaneseq
        %v3968 = vshrl.u32 %v3967, 7
        %v3969 = vsub.s32 %v3781, %v3968
        %v3970 = vrot.slane %v3674, %v3969
        %v3971 = vsel %vm3786, %v3970, %v3966
        %v3972 = vlaneseq
        %v3973 = vshrl.u32 %v3972, 7
        %v3974 = vsub.s32 %v3788, %v3973
        %v3975 = vrot.slane %v3675, %v3974
        %v3976 = vsel %vm3793, %v3975, %v3971
        %v3977 = vlaneseq
        %v3978 = vshrl.u32 %v3977, 7
        %v3979 = vsub.s32 %v3795, %v3978
        %v3980 = vrot.slane %v3676, %v3979
        %v3981 = vsel %vm3800, %v3980, %v3976
        %v3982 = vlaneseq
        %v3983 = vshrl.u32 %v3982, 7
        %v3984 = vsub.s32 %v3802, %v3983
        %v3985 = vrot.slane %v3677, %v3984
        %v3986 = vsel %vm3807, %v3985, %v3981
        %v3987 = vlaneseq
        %v3988 = vshrl.u32 %v3987, 7
        %v3989 = vsub.s32 %v3809, %v3988
        %v3990 = vrot.slane %v3678, %v3989
        %v3991 = vsel %vm3814, %v3990, %v3986
        %v3992 = vlaneseq
        %v3993 = vshrl.u32 %v3992, 7
        %v3994 = vsub.s32 %v3816, %v3993
        %v3995 = vrot.slane %v3679, %v3994
        %v3996 = vsel %vm3821, %v3995, %v3991
        %v3997 = vlaneseq
        %v3998 = vshrl.u32 %v3997, 7
        %v3999 = vsub.s32 %v3823, %v3998
        %v4000 = vrot.slane %v3680, %v3999
        %v4001 = vsel %vm3828, %v4000, %v3996
        %v4002 = vlaneseq
        %v4003 = vshrl.u32 %v4002, 7
        %v4004 = vsub.s32 %v3830, %v4003
        %v4005 = vrot.slane %v3681, %v4004
        %v4006 = vsel %vm3835, %v4005, %v4001
        %v4007 = vlaneseq
        %v4008 = vshrl.u32 %v4007, 7
        %v4009 = vsub.s32 %v3837, %v4008
        %v4010 = vrot.slane %v3682, %v4009
        %v4011 = vsel %vm3842, %v4010, %v4006
        %v4012 = vlaneseq
        %v4013 = vshrl.u32 %v4012, 7
        %v4014 = vsub.s32 %v3844, %v4013
        %v4015 = vrot.slane %v3683, %v4014
        %v4016 = vsel %vm3849, %v4015, %v4011
        %v4017 = vlaneseq
        %v4018 = vshrl.u32 %v4017, 7
        %v4019 = vsub.s32 %v3851, %v4018
        %v4020 = vrot.slane %v3684, %v4019
        %v4021 = vsel %vm3856, %v4020, %v4016
        %v4022 = vlaneseq
        %v4023 = vshrl.u32 %v4022, 7
        %v4024 = vsub.s32 %v3858, %v4023
        %v4025 = vrot.slane %v3685, %v4024
        %v4026 = vsel %vm3863, %v4025, %v4021
        %v4027 = vlaneseq
        %v4028 = vshrl.u32 %v4027, 7
        %v4029 = vsub.s32 %v3865, %v4028
        %v4030 = vrot.slane %v3686, %v4029
        %v4031 = vsel %vm3870, %v4030, %v4026
        %v4032 = vlaneseq
        %v4033 = vshrl.u32 %v4032, 7
        %v4034 = vsub.s32 %v3872, %v4033
        %v4035 = vrot.slane %v3687, %v4034
        %v4036 = vsel %vm3877, %v4035, %v4031
        %v4037 = vlaneseq
        %v4038 = vshrl.u32 %v4037, 7
        %v4039 = vsub.s32 %v3769, %v4038
        %v4040 = vrot.slane %v3688, %v4039
        %v4041 = vlaneseq
        %v4042 = vshrl.u32 %v4041, 7
        %v4043 = vsub.s32 %v3774, %v4042
        %v4044 = vrot.slane %v3689, %v4043
        %v4045 = vsel %vm3779, %v4044, %v4040
        %v4046 = vlaneseq
        %v4047 = vshrl.u32 %v4046, 7
        %v4048 = vsub.s32 %v3781, %v4047
        %v4049 = vrot.slane %v3690, %v4048
        %v4050 = vsel %vm3786, %v4049, %v4045
        %v4051 = vlaneseq
        %v4052 = vshrl.u32 %v4051, 7
        %v4053 = vsub.s32 %v3788, %v4052
        %v4054 = vrot.slane %v3691, %v4053
        %v4055 = vsel %vm3793, %v4054, %v4050
        %v4056 = vlaneseq
        %v4057 = vshrl.u32 %v4056, 7
        %v4058 = vsub.s32 %v3795, %v4057
        %v4059 = vrot.slane %v3692, %v4058
        %v4060 = vsel %vm3800, %v4059, %v4055
        %v4061 = vlaneseq
        %v4062 = vshrl.u32 %v4061, 7
        %v4063 = vsub.s32 %v3802, %v4062
        %v4064 = vrot.slane %v3693, %v4063
        %v4065 = vsel %vm3807, %v4064, %v4060
        %v4066 = vlaneseq
        %v4067 = vshrl.u32 %v4066, 7
        %v4068 = vsub.s32 %v3809, %v4067
        %v4069 = vrot.slane %v3694, %v4068
        %v4070 = vsel %vm3814, %v4069, %v4065
        %v4071 = vlaneseq
        %v4072 = vshrl.u32 %v4071, 7
        %v4073 = vsub.s32 %v3816, %v4072
        %v4074 = vrot.slane %v3695, %v4073
        %v4075 = vsel %vm3821, %v4074, %v4070
        %v4076 = vlaneseq
        %v4077 = vshrl.u32 %v4076, 7
        %v4078 = vsub.s32 %v3823, %v4077
        %v4079 = vrot.slane %v3696, %v4078
        %v4080 = vsel %vm3828, %v4079, %v4075
        %v4081 = vlaneseq
        %v4082 = vshrl.u32 %v4081, 7
        %v4083 = vsub.s32 %v3830, %v4082
        %v4084 = vrot.slane %v3697, %v4083
        %v4085 = vsel %vm3835, %v4084, %v4080
        %v4086 = vlaneseq
        %v4087 = vshrl.u32 %v4086, 7
        %v4088 = vsub.s32 %v3837, %v4087
        %v4089 = vrot.slane %v3698, %v4088
        %v4090 = vsel %vm3842, %v4089, %v4085
        %v4091 = vlaneseq
        %v4092 = vshrl.u32 %v4091, 7
        %v4093 = vsub.s32 %v3844, %v4092
        %v4094 = vrot.slane %v3699, %v4093
        %v4095 = vsel %vm3849, %v4094, %v4090
        %v4096 = vlaneseq
        %v4097 = vshrl.u32 %v4096, 7
        %v4098 = vsub.s32 %v3851, %v4097
        %v4099 = vrot.slane %v3700, %v4098
        %v4100 = vsel %vm3856, %v4099, %v4095
        %v4101 = vlaneseq
        %v4102 = vshrl.u32 %v4101, 7
        %v4103 = vsub.s32 %v3858, %v4102
        %v4104 = vrot.slane %v3701, %v4103
        %v4105 = vsel %vm3863, %v4104, %v4100
        %v4106 = vlaneseq
        %v4107 = vshrl.u32 %v4106, 7
        %v4108 = vsub.s32 %v3865, %v4107
        %v4109 = vrot.slane %v3702, %v4108
        %v4110 = vsel %vm3870, %v4109, %v4105
        %v4111 = vlaneseq
        %v4112 = vshrl.u32 %v4111, 7
        %v4113 = vsub.s32 %v3872, %v4112
        %v4114 = vrot.slane %v3703, %v4113
        %v4115 = vsel %vm3877, %v4114, %v4110
        %vm4116 = vcmask 1041409
        %v4117 = vsel %vm4116, %v3957, %v3878
        %vm4118 = vcmask 1042434
        %v4119 = vsel %vm4118, %v4036, %v4117
        %vm4120 = vcmask 1043459
        %v4121 = vsel %vm4120, %v4115, %v4119
        %4123 = vst [vmem:[%s327] sm:$0xf] %v4121
        %s4124 = sand.u32 %s226, 1
        %s4125 = scalar_lea.sflag [#allocation4], %s4124
        %s4126 = sand.u32 %s226, 1
        %s4127 = smul.addr %s4126, 4
        %s4128 = scalar_lea.vmem [#allocation3], %s4127
        // Predicated region
        $region57: #{tpu_custom_call.1} parent=55 // pred_check
          %p4129 = pneg %p236
        $region58: #{tpu_custom_call.1} parent=55 // pred_check_branch
          %4131 = sbr.rel (%p4129) target = $region60
        $region59: #{tpu_custom_call.1} parent=55 // pred_region
          %s4133 = ssub.s32 64, 64
          %4134 = vsyncadd %s4125, %s4133
          %s4135 = smul.addr %s24, 64
          %s4136 = scalar_lea.hbm %s9, %s4135
          %s4138 = sshll.u32 %s4128, 4
          %s4139 = int_to_ptr.vmem [resolvable:$true] %s4138
          %4141 = dma.vmem_to_hbm [thread:$0]  %s4139, 64, %s4136, %s4125
        $region60: #{tpu_custom_call.1} parent=55 // pred_fallthru
          _
      $region56: #{tpu_custom_call.1} parent=5 // pred_fallthru
        _
      %p4142 = scmp.le.s32.totalorder 2, %s19
      // Predicated region
      $region61: #{tpu_custom_call.1} parent=5 // pred_check
        %p4143 = pneg %p4142
      $region62: #{tpu_custom_call.1} parent=5 // pred_check_branch
        %4145 = sbr.rel (%p4143) target = $region64
      $region63: #{tpu_custom_call.1} parent=5 // pred_region
        %s4146 = ssub.s32 %s19, 2
        // Predicated region
        $region65: #{tpu_custom_call.1} parent=63 // pred_check
          %p4147 = pneg %p242
        $region66: #{tpu_custom_call.1} parent=63 // pred_check_branch
          %4149 = sbr.rel (%p4147) target = $region68
        $region67: #{tpu_custom_call.1} parent=63 // pred_region
          %s4150 = sand.u32 %s227, 1
          %s4151 = scalar_lea.sflag [#allocation4], %s4150
          %s4152 = sand.u32 %s227, 1
          %s4153 = smul.addr %s4152, 4
          %s4154 = scalar_lea.vmem [#allocation3], %s4153
          %4155 = dma.done %s4151, 64
        $region68: #{tpu_custom_call.1} parent=63 // pred_fallthru
          _
      $region64: #{tpu_custom_call.1} parent=5 // pred_fallthru
        _
    $region6: #{tpu_custom_call.1} parent=1 // loop_footer
      %s23 = sadd.s32 1, %s19
    $region7: #{tpu_custom_call.1} parent=1 // loop_footer_branch
      %18 = sbr.rel target = $region3
    $region8: #{tpu_custom_call.1} parent=1 // loop_exit
      _
    %4156 = vsyncpa [#allocation4], 1
    %s4157 = scalar_lea.sflag [#allocation4], 1
    %4158 = vsyncpa %s4157, 1

</llo_original>
